<compile_context>
chip_gen: v5e
topology: v5e:2x2
jax: 0.10.0
libtpu: 0.0.40
codegen_flags: <defaults>
</compile_context>

<pallas_src>
import functools

import jax
import jax.numpy as jnp
from jax.experimental import pallas as pl
from jax.experimental.pallas import tpu as pltpu

EPS = 1e-5
NUM_GROUPS = 32


def _gn_silu_tconv(h, w_ref, b_ref, g_ref, e_ref, pool_ref, scat_ref, mask,
                   *, F, HW, HW_pad, mm_dtype):
    """GroupNorm(32, padded-T stats) -> SiLU -> temporal conv (k=3, replicate pad).

    h:        (Cin, N) f32, N = F*HW_pad, columns frame-major; padded lanes are 0.
    w_ref:    (Cout, 3*Cin) tap-stacked weights, already in mm_dtype.
    b_ref:    (Cout, 1) f32;  g_ref / e_ref: (Cin, 1) f32 GroupNorm gamma / beta.
    pool_ref: (G, Cin) f32 one-hot channel->group pooling matrix (wrapper-built).
    scat_ref: (Cin, G) f32 = pool.T (group->channel broadcast).
    mask:     (1, N) f32 lane-validity mask, or None when HW == HW_pad.
    returns   (Cout, N) f32 with padded lanes forced back to 0.
    """
    Cin, N = h.shape
    cpg = Cin // NUM_GROUPS
    denom = float((F + 2) * HW * cpg)   # PyTorch normalizes the replicate-padded tensor

    head = h[:, :HW_pad]                # frame 0 (padded lanes already 0)
    tail = h[:, N - HW_pad:]            # frame F-1
    # Per-channel sums over the padded temporal extent (edge frames counted twice).
    s_c = (jnp.sum(h, axis=1, keepdims=True)
           + jnp.sum(head, axis=1, keepdims=True)
           + jnp.sum(tail, axis=1, keepdims=True))              # (Cin, 1)
    q_c = (jnp.sum(h * h, axis=1, keepdims=True)
           + jnp.sum(head * head, axis=1, keepdims=True)
           + jnp.sum(tail * tail, axis=1, keepdims=True))       # (Cin, 1)

    if cpg == 1:
        # groups == channels (e.g. C == 32): group pooling is the identity.
        mean_c = s_c / denom
        inv_c = jax.lax.rsqrt(q_c / denom - mean_c * mean_c + EPS)
    else:
        # Pool channel stats into groups with tiny (G,Cin)@(Cin,1) mat-vecs using
        # wrapper-built one-hot matrices (no per-layer iota; N=1 pushes negligible).
        pool = pool_ref[...]
        scat = scat_ref[...]
        mean_g = jnp.dot(pool, s_c, preferred_element_type=jnp.float32) / denom
        m2_g = jnp.dot(pool, q_c, preferred_element_type=jnp.float32) / denom
        inv_g = jax.lax.rsqrt(m2_g - mean_g * mean_g + EPS)
        mean_c = jnp.dot(scat, mean_g, preferred_element_type=jnp.float32)
        inv_c = jnp.dot(scat, inv_g, preferred_element_type=jnp.float32)

    # GroupNorm affine folded into a single mul + add over the slab.
    scale = inv_c * g_ref[...]                                   # (Cin, 1)
    shift = e_ref[...] - mean_c * scale                          # (Cin, 1)
    xn = h * scale + shift
    # SiLU with a single EUP transcendental; cast to mm_dtype BEFORE building the
    # taps so the 3-tap operand is built once, in the narrow dtype.
    a = (0.5 * xn * (jnp.tanh(0.5 * xn) + 1.0)).astype(mm_dtype)

    # 3-tap temporal operand with replicate padding (clamped frame shifts), stacked
    # along channels (sublanes) -> one K = 3*Cin MXU matmul. All lane offsets are
    # multiples of HW_pad (a multiple of 128), so slices/concats stay vreg-aligned.
    tap_prev = jnp.concatenate([a[:, :HW_pad], a[:, :N - HW_pad]], axis=1)  # max(f-1,0)
    tap_next = jnp.concatenate([a[:, HW_pad:], a[:, N - HW_pad:]], axis=1)  # min(f+1,F-1)
    a3 = jnp.concatenate([tap_prev, a, tap_next], axis=0)                   # (3*Cin, N)

    out = jnp.dot(w_ref[...], a3, preferred_element_type=jnp.float32)       # (Cout, N)
    out = out + b_ref[...]
    if mask is not None:
        # Zero the padded lanes so the next layer's GroupNorm sums stay exact.
        out = out * mask
    return out


def _fused_block_kernel(x_ref, mask_ref, pool_ref, scat_ref,
                        w1, b1, g1, e1, w2, b2, g2, e2,
                        w3, b3, g3, e3, w4, b4, g4, e4,
                        o_ref, *, F, HW, HW_pad, mm_dtype):
    """One batch element: 4 fused GN+SiLU+temporal-conv layers + residual add."""
    x = x_ref[0].astype(jnp.float32)       # (C, N); also serves as the residual
    mask = mask_ref[...] if HW != HW_pad else None
    h = x
    for w_ref, b_ref, g_ref, e_ref in ((w1, b1, g1, e1), (w2, b2, g2, e2),
                                       (w3, b3, g3, e3), (w4, b4, g4, e4)):
        h = _gn_silu_tconv(h, w_ref, b_ref, g_ref, e_ref, pool_ref, scat_ref, mask,
                           F=F, HW=HW, HW_pad=HW_pad, mm_dtype=mm_dtype)
    o_ref[...] = (h + x).reshape(o_ref.shape).astype(o_ref.dtype)


def temporal_conv_block_forward(x, params, *, prefer_bf16_matmul=False):
    """x: (B, C, F, H, W) (PyTorch NCDHW). Returns the same shape/dtype."""
    B, C, F, H, W = x.shape
    HW = H * W
    assert C % NUM_GROUPS == 0, "GroupNorm(32, C) requires C % 32 == 0"
    # Round the frame stride up to a full vreg lane width so every temporal-tap
    # slice/concat and the output store are lane-aligned (no vst.msk).
    HW_pad = ((HW + 127) // 128) * 128
    N_pad = F * HW_pad

    mm_dtype = (jnp.bfloat16 if (x.dtype == jnp.bfloat16 or prefer_bf16_matmul)
                else jnp.float32)

    # NCDHW is channels-major: (B, C, F, HW) is a free reshape; zero-pad the lane axis.
    x2 = x.reshape(B, C, F, HW)
    if HW_pad != HW:
        x2 = jnp.pad(x2, ((0, 0), (0, 0), (0, 0), (0, HW_pad - HW)))
    x2 = x2.reshape(B, C, N_pad)

    # Per-frame lane-validity mask (frame-major) and one-hot group matrices, built
    # once here instead of re-emitting iotas per layer inside the kernel.
    valid = jnp.arange(HW_pad) < HW
    mask = jnp.broadcast_to(valid, (F, HW_pad)).reshape(1, N_pad).astype(jnp.float32)
    G = NUM_GROUPS
    cpg = C // G
    pool = (jnp.arange(C)[None, :] // cpg ==
            jnp.arange(G)[:, None]).astype(jnp.float32)            # (G, C)
    scat = pool.T                                                   # (C, G)

    args = [x2, mask, pool, scat]
    in_specs = [pl.BlockSpec((1, C, N_pad), lambda i: (i, 0, 0)),
                pl.BlockSpec((1, N_pad), lambda i: (0, 0)),
                pl.BlockSpec((G, C), lambda i: (0, 0)),
                pl.BlockSpec((C, G), lambda i: (0, 0))]
    for name in ("conv1", "conv2", "conv3", "conv4"):
        w, b, gamma, beta = params[name]
        k, cin, cout = w.shape
        assert k == 3 and cin == C and cout == C, (
            "default TemporalConvBlock requires in_dim == out_dim for every layer")
        # (3, Cin, Cout) -> (Cout, 3*Cin); column index dt*Cin + c matches the
        # [prev; cur; next] channel stacking inside the kernel. Pre-cast to mm_dtype.
        w_stk = jnp.transpose(w, (2, 0, 1)).reshape(cout, 3 * cin).astype(mm_dtype)
        args += [w_stk, b.reshape(cout, 1).astype(jnp.float32),
                 gamma.reshape(cin, 1).astype(jnp.float32),
                 beta.reshape(cin, 1).astype(jnp.float32)]
        in_specs += [pl.BlockSpec((cout, 3 * cin), lambda i: (0, 0)),
                     pl.BlockSpec((cout, 1), lambda i: (0, 0)),
                     pl.BlockSpec((cin, 1), lambda i: (0, 0)),
                     pl.BlockSpec((cin, 1), lambda i: (0, 0))]

    kernel = functools.partial(_fused_block_kernel, F=F, HW=HW, HW_pad=HW_pad,
                               mm_dtype=mm_dtype)

    # VMEM budget: double-buffered I/O + params plus a bound on the fused body's
    # live temporaries; ceiling is per-generation physical VMEM minus ~15% headroom
    # for Mosaic internal scratch (v5e/v6e: 128 MiB, v7x: 64 MiB).
    itemsize = jnp.dtype(x.dtype).itemsize
    mm_itemsize = jnp.dtype(mm_dtype).itemsize
    io_bytes = 2 * C * N_pad * itemsize
    param_bytes = sum(int(a.size) * a.dtype.itemsize for a in args[1:])
    temp_bytes = (5 * 4 + 6 * mm_itemsize) * C * N_pad
    est = 2 * (io_bytes + param_bytes) + temp_bytes
    try:
        vmem_cap = int(pltpu.get_tpu_info().vmem_capacity_bytes)
    except Exception:
        vmem_cap = 64 * 1024 * 1024
    ceiling = max(int(vmem_cap * 0.85), 32 * 1024 * 1024)
    vmem_limit = int(min(max(est, 32 * 1024 * 1024), ceiling))

    out = pl.pallas_call(
        kernel,
        out_shape=jax.ShapeDtypeStruct((B, C, N_pad), x.dtype),
        grid=(B,),
        in_specs=in_specs,
        out_specs=pl.BlockSpec((1, C, N_pad), lambda i: (i, 0, 0)),
        compiler_params=pltpu.CompilerParams(
            dimension_semantics=("parallel",),
            vmem_limit_bytes=vmem_limit),
    )(*args)

    out = out.reshape(B, C, F, HW_pad)[..., :HW]
    return out.reshape(B, C, F, H, W)


# ---------------- pure-JAX reference (correctness check only) ----------------
def _ref_layer(h, w, b, gamma, beta):
    B, C, F, H, W = h.shape
    hp = jnp.concatenate([h[:, :, :1], h, h[:, :, -1:]], axis=2)     # replicate pad T
    cpg = C // NUM_GROUPS
    xg = hp.reshape(B, NUM_GROUPS, cpg, F + 2, H, W)
    mean = xg.mean(axis=(2, 3, 4, 5), keepdims=True)
    var = ((xg - mean) ** 2).mean(axis=(2, 3, 4, 5), keepdims=True)
    xn = ((xg - mean) / jnp.sqrt(var + EPS)).reshape(B, C, F + 2, H, W)
    xn = xn * gamma.reshape(1, C, 1, 1, 1) + beta.reshape(1, C, 1, 1, 1)
    a = xn * jax.nn.sigmoid(xn)
    Cout = w.shape[2]
    out = jnp.zeros((B, Cout, F, H, W), jnp.float32)
    for dt in range(3):   # valid temporal conv, kernel size 3
        out = out + jnp.einsum('bcfhw,cd->bdfhw', a[:, :, dt:dt + F], w[dt])
    return out + b.reshape(1, Cout, 1, 1, 1)


def _ref_forward(x, params):
    h = x.astype(jnp.float32)
    identity = h
    for name in ("conv1", "conv2", "conv3", "conv4"):
        h = _ref_layer(h, *params[name])
    return (identity + h).astype(x.dtype)


if __name__ == "__main__":
    def make_layer(k, cin, cout):
        kw, kb, kg, ke = jax.random.split(k, 4)
        w = 0.05 * jax.random.normal(kw, (3, cin, cout), jnp.float32)
        b = 0.05 * jax.random.normal(kb, (cout,), jnp.float32)
        gamma = 1.0 + 0.1 * jax.random.normal(kg, (cin,), jnp.float32)
        beta = 0.1 * jax.random.normal(ke, (cin,), jnp.float32)
        return (w, b, gamma, beta)

    def run_case(case_key, B, C, F, H, W, *, prefer_bf16_matmul, atol, rtol):
        keys = jax.random.split(case_key, 5)
        # NOTE: the PyTorch module zero-initializes conv4 (making output == input);
        # random conv4 params are used here so the check exercises all four layers.
        params = {name: make_layer(keys[i], C, C)
                  for i, name in enumerate(("conv1", "conv2", "conv3", "conv4"))}
        x = jax.random.normal(keys[4], (B, C, F, H, W), jnp.float32)
        out = jax.block_until_ready(
            temporal_conv_block_forward(x, params,
                                        prefer_bf16_matmul=prefer_bf16_matmul))
        assert out.shape == x.shape and out.dtype == x.dtype
        ref = _ref_forward(x, params)
        if not jnp.allclose(out, ref, atol=atol, rtol=rtol):
            err = float(jnp.max(jnp.abs(out - ref)))
            raise AssertionError(
                f"Pallas mismatch (B={B},C={C},F={F},H={H},W={W},"
                f"bf16mm={prefer_bf16_matmul}): max abs err = {err}")

    key = jax.random.PRNGKey(0)
    k1, k2 = jax.random.split(key)
    # lane-aligned spatial size (H*W == 256), groups == channels (cpg == 1)
    run_case(k1, B=2, C=32, F=8, H=16, W=16,
             prefer_bf16_matmul=False, atol=2e-3, rtol=2e-3)
    # unaligned spatial size (H*W == 144 -> padded to 256) and 2 channels per group
    run_case(k2, B=1, C=64, F=5, H=12, W=12,
             prefer_bf16_matmul=False, atol=2e-3, rtol=2e-3)
    # bf16 MXU operands with f32 accumulation (looser tolerance sanity check)
    run_case(k1, B=2, C=32, F=8, H=16, W=16,
             prefer_bf16_matmul=True, atol=5e-2, rtol=5e-2)

    print("KERNEL_OK")
</pallas_src>

<mosaic_0001>
module attributes {stable_mosaic.version = 11 : i64} {
  func.func @_fused_block_kernel(%arg0: i32, %arg1: memref<1x32x2048xf32, #tpu.memory_space<vmem>>, %arg2: memref<1x2048xf32, #tpu.memory_space<vmem>>, %arg3: memref<32x32xf32, #tpu.memory_space<vmem>>, %arg4: memref<32x32xf32, #tpu.memory_space<vmem>>, %arg5: memref<32x96xf32, #tpu.memory_space<vmem>>, %arg6: memref<32x1xf32, #tpu.memory_space<vmem>>, %arg7: memref<32x1xf32, #tpu.memory_space<vmem>>, %arg8: memref<32x1xf32, #tpu.memory_space<vmem>>, %arg9: memref<32x96xf32, #tpu.memory_space<vmem>>, %arg10: memref<32x1xf32, #tpu.memory_space<vmem>>, %arg11: memref<32x1xf32, #tpu.memory_space<vmem>>, %arg12: memref<32x1xf32, #tpu.memory_space<vmem>>, %arg13: memref<32x96xf32, #tpu.memory_space<vmem>>, %arg14: memref<32x1xf32, #tpu.memory_space<vmem>>, %arg15: memref<32x1xf32, #tpu.memory_space<vmem>>, %arg16: memref<32x1xf32, #tpu.memory_space<vmem>>, %arg17: memref<32x96xf32, #tpu.memory_space<vmem>>, %arg18: memref<32x1xf32, #tpu.memory_space<vmem>>, %arg19: memref<32x1xf32, #tpu.memory_space<vmem>>, %arg20: memref<32x1xf32, #tpu.memory_space<vmem>>, %arg21: memref<1x32x2048xf32, #tpu.memory_space<vmem>>) attributes {dimension_semantics = [#tpu.dimension_semantics<parallel>], iteration_bounds = array<i64: 2>, scalar_prefetch = 0 : i64, scratch_operands = 0 : i64, tpu.core_type = #tpu.core_type<tc>, window_params = [{transform_indices = @transform_0, window_bounds = array<i64: 1, 32, 2048>}, {pipeline_mode = #tpu.pipeline_mode<synchronous>, transform_indices = @transform_1, window_bounds = array<i64: 1, 2048>}, {pipeline_mode = #tpu.pipeline_mode<synchronous>, transform_indices = @transform_2, window_bounds = array<i64: 32, 32>}, {pipeline_mode = #tpu.pipeline_mode<synchronous>, transform_indices = @transform_3, window_bounds = array<i64: 32, 32>}, {pipeline_mode = #tpu.pipeline_mode<synchronous>, transform_indices = @transform_4, window_bounds = array<i64: 32, 96>}, {pipeline_mode = #tpu.pipeline_mode<synchronous>, transform_indices = @transform_5, window_bounds = array<i64: 32, 1>}, {pipeline_mode = #tpu.pipeline_mode<synchronous>, transform_indices = @transform_6, window_bounds = array<i64: 32, 1>}, {pipeline_mode = #tpu.pipeline_mode<synchronous>, transform_indices = @transform_7, window_bounds = array<i64: 32, 1>}, {pipeline_mode = #tpu.pipeline_mode<synchronous>, transform_indices = @transform_8, window_bounds = array<i64: 32, 96>}, {pipeline_mode = #tpu.pipeline_mode<synchronous>, transform_indices = @transform_9, window_bounds = array<i64: 32, 1>}, {pipeline_mode = #tpu.pipeline_mode<synchronous>, transform_indices = @transform_10, window_bounds = array<i64: 32, 1>}, {pipeline_mode = #tpu.pipeline_mode<synchronous>, transform_indices = @transform_11, window_bounds = array<i64: 32, 1>}, {pipeline_mode = #tpu.pipeline_mode<synchronous>, transform_indices = @transform_12, window_bounds = array<i64: 32, 96>}, {pipeline_mode = #tpu.pipeline_mode<synchronous>, transform_indices = @transform_13, window_bounds = array<i64: 32, 1>}, {pipeline_mode = #tpu.pipeline_mode<synchronous>, transform_indices = @transform_14, window_bounds = array<i64: 32, 1>}, {pipeline_mode = #tpu.pipeline_mode<synchronous>, transform_indices = @transform_15, window_bounds = array<i64: 32, 1>}, {pipeline_mode = #tpu.pipeline_mode<synchronous>, transform_indices = @transform_16, window_bounds = array<i64: 32, 96>}, {pipeline_mode = #tpu.pipeline_mode<synchronous>, transform_indices = @transform_17, window_bounds = array<i64: 32, 1>}, {pipeline_mode = #tpu.pipeline_mode<synchronous>, transform_indices = @transform_18, window_bounds = array<i64: 32, 1>}, {pipeline_mode = #tpu.pipeline_mode<synchronous>, transform_indices = @transform_19, window_bounds = array<i64: 32, 1>}, {transform_indices = @transform_20, window_bounds = array<i64: 1, 32, 2048>}]} {
    %c0 = arith.constant 0 : index
    %c0_0 = arith.constant 0 : index
    %c0_1 = arith.constant 0 : index
    %0 = vector.load %arg1[%c0, %c0_0, %c0_1] : memref<1x32x2048xf32, #tpu.memory_space<vmem>>, vector<1x32x2048xf32>
    %1 = vector.shape_cast %0 : vector<1x32x2048xf32> to vector<32x2048xf32>
    %2 = vector.extract_strided_slice %1 {offsets = [0, 0], sizes = [32, 256], strides = [1, 1]} : vector<32x2048xf32> to vector<32x256xf32>
    %3 = vector.extract_strided_slice %1 {offsets = [0, 1792], sizes = [32, 256], strides = [1, 1]} : vector<32x2048xf32> to vector<32x256xf32>
    %cst = arith.constant dense<0.000000e+00> : vector<32xf32>
    %4 = vector.multi_reduction <add>, %1, %cst [1] : vector<32x2048xf32> to vector<32xf32>
    %5 = vector.shape_cast %4 : vector<32xf32> to vector<32x1xf32>
    %cst_2 = arith.constant dense<0.000000e+00> : vector<32xf32>
    %6 = vector.multi_reduction <add>, %2, %cst_2 [1] : vector<32x256xf32> to vector<32xf32>
    %7 = vector.shape_cast %6 : vector<32xf32> to vector<32x1xf32>
    %8 = arith.addf %5, %7 : vector<32x1xf32>
    %cst_3 = arith.constant dense<0.000000e+00> : vector<32xf32>
    %9 = vector.multi_reduction <add>, %3, %cst_3 [1] : vector<32x256xf32> to vector<32xf32>
    %10 = vector.shape_cast %9 : vector<32xf32> to vector<32x1xf32>
    %11 = arith.addf %8, %10 : vector<32x1xf32>
    %12 = arith.mulf %1, %1 : vector<32x2048xf32>
    %cst_4 = arith.constant dense<0.000000e+00> : vector<32xf32>
    %13 = vector.multi_reduction <add>, %12, %cst_4 [1] : vector<32x2048xf32> to vector<32xf32>
    %14 = vector.shape_cast %13 : vector<32xf32> to vector<32x1xf32>
    %15 = arith.mulf %2, %2 : vector<32x256xf32>
    %cst_5 = arith.constant dense<0.000000e+00> : vector<32xf32>
    %16 = vector.multi_reduction <add>, %15, %cst_5 [1] : vector<32x256xf32> to vector<32xf32>
    %17 = vector.shape_cast %16 : vector<32xf32> to vector<32x1xf32>
    %18 = arith.addf %14, %17 : vector<32x1xf32>
    %19 = arith.mulf %3, %3 : vector<32x256xf32>
    %cst_6 = arith.constant dense<0.000000e+00> : vector<32xf32>
    %20 = vector.multi_reduction <add>, %19, %cst_6 [1] : vector<32x256xf32> to vector<32xf32>
    %21 = vector.shape_cast %20 : vector<32xf32> to vector<32x1xf32>
    %22 = arith.addf %18, %21 : vector<32x1xf32>
    %cst_7 = arith.constant 2.560000e+03 : f32
    %23 = vector.broadcast %cst_7 : f32 to vector<32x1xf32>
    %24 = arith.divf %11, %23 : vector<32x1xf32>
    %cst_8 = arith.constant 2.560000e+03 : f32
    %25 = vector.broadcast %cst_8 : f32 to vector<32x1xf32>
    %26 = arith.divf %22, %25 : vector<32x1xf32>
    %27 = arith.mulf %24, %24 : vector<32x1xf32>
    %28 = arith.subf %26, %27 : vector<32x1xf32>
    %cst_9 = arith.constant 9.99999974E-6 : f32
    %29 = vector.broadcast %cst_9 : f32 to vector<32x1xf32>
    %30 = arith.addf %28, %29 : vector<32x1xf32>
    %31 = math.rsqrt %30 : vector<32x1xf32>
    %c0_10 = arith.constant 0 : index
    %c0_11 = arith.constant 0 : index
    %32 = vector.load %arg7[%c0_10, %c0_11] : memref<32x1xf32, #tpu.memory_space<vmem>>, vector<32x1xf32>
    %33 = arith.mulf %31, %32 : vector<32x1xf32>
    %c0_12 = arith.constant 0 : index
    %c0_13 = arith.constant 0 : index
    %34 = vector.load %arg8[%c0_12, %c0_13] : memref<32x1xf32, #tpu.memory_space<vmem>>, vector<32x1xf32>
    %35 = arith.mulf %24, %33 : vector<32x1xf32>
    %36 = arith.subf %34, %35 : vector<32x1xf32>
    %37 = vector.broadcast %33 : vector<32x1xf32> to vector<32x2048xf32>
    %38 = arith.mulf %1, %37 : vector<32x2048xf32>
    %39 = vector.broadcast %36 : vector<32x1xf32> to vector<32x2048xf32>
    %40 = arith.addf %38, %39 : vector<32x2048xf32>
    %cst_14 = arith.constant 5.000000e-01 : f32
    %41 = vector.broadcast %cst_14 : f32 to vector<32x2048xf32>
    %42 = arith.mulf %41, %40 : vector<32x2048xf32>
    %cst_15 = arith.constant 5.000000e-01 : f32
    %43 = vector.broadcast %cst_15 : f32 to vector<32x2048xf32>
    %44 = arith.mulf %43, %40 : vector<32x2048xf32>
    %45 = math.tanh %44 : vector<32x2048xf32>
    %cst_16 = arith.constant 1.000000e+00 : f32
    %46 = vector.broadcast %cst_16 : f32 to vector<32x2048xf32>
    %47 = arith.addf %45, %46 : vector<32x2048xf32>
    %48 = arith.mulf %42, %47 : vector<32x2048xf32>
    %49 = vector.extract_strided_slice %48 {offsets = [0, 0], sizes = [32, 256], strides = [1, 1]} : vector<32x2048xf32> to vector<32x256xf32>
    %50 = vector.extract_strided_slice %48 {offsets = [0, 0], sizes = [32, 1792], strides = [1, 1]} : vector<32x2048xf32> to vector<32x1792xf32>
    %51 = tpu.concatenate %49, %50 in 1 : vector<32x256xf32>, vector<32x1792xf32> -> vector<32x2048xf32>
    %52 = vector.extract_strided_slice %48 {offsets = [0, 256], sizes = [32, 1792], strides = [1, 1]} : vector<32x2048xf32> to vector<32x1792xf32>
    %53 = vector.extract_strided_slice %48 {offsets = [0, 1792], sizes = [32, 256], strides = [1, 1]} : vector<32x2048xf32> to vector<32x256xf32>
    %54 = tpu.concatenate %52, %53 in 1 : vector<32x1792xf32>, vector<32x256xf32> -> vector<32x2048xf32>
    %55 = tpu.concatenate %51, %48, %54 in 0 : vector<32x2048xf32>, vector<32x2048xf32>, vector<32x2048xf32> -> vector<96x2048xf32>
    %c0_17 = arith.constant 0 : index
    %c0_18 = arith.constant 0 : index
    %56 = vector.load %arg5[%c0_17, %c0_18] : memref<32x96xf32, #tpu.memory_space<vmem>>, vector<32x96xf32>
    %cst_19 = arith.constant dense<0.000000e+00> : vector<32x2048xf32>
    %57 = tpu.matmul %56, %55, %cst_19 {dimension_numbers = #tpu.dot_dimension_numbers<[1], [0], [0], [1], [0, 0, 1, 1], [], []>} : vector<32x96xf32>, vector<96x2048xf32>, vector<32x2048xf32> -> vector<32x2048xf32>
    %c0_20 = arith.constant 0 : index
    %c0_21 = arith.constant 0 : index
    %58 = vector.load %arg6[%c0_20, %c0_21] : memref<32x1xf32, #tpu.memory_space<vmem>>, vector<32x1xf32>
    %59 = vector.broadcast %58 : vector<32x1xf32> to vector<32x2048xf32>
    %60 = arith.addf %57, %59 : vector<32x2048xf32>
    %61 = vector.extract_strided_slice %60 {offsets = [0, 0], sizes = [32, 256], strides = [1, 1]} : vector<32x2048xf32> to vector<32x256xf32>
    %62 = vector.extract_strided_slice %60 {offsets = [0, 1792], sizes = [32, 256], strides = [1, 1]} : vector<32x2048xf32> to vector<32x256xf32>
    %cst_22 = arith.constant dense<0.000000e+00> : vector<32xf32>
    %63 = vector.multi_reduction <add>, %60, %cst_22 [1] : vector<32x2048xf32> to vector<32xf32>
    %64 = vector.shape_cast %63 : vector<32xf32> to vector<32x1xf32>
    %cst_23 = arith.constant dense<0.000000e+00> : vector<32xf32>
    %65 = vector.multi_reduction <add>, %61, %cst_23 [1] : vector<32x256xf32> to vector<32xf32>
    %66 = vector.shape_cast %65 : vector<32xf32> to vector<32x1xf32>
    %67 = arith.addf %64, %66 : vector<32x1xf32>
    %cst_24 = arith.constant dense<0.000000e+00> : vector<32xf32>
    %68 = vector.multi_reduction <add>, %62, %cst_24 [1] : vector<32x256xf32> to vector<32xf32>
    %69 = vector.shape_cast %68 : vector<32xf32> to vector<32x1xf32>
    %70 = arith.addf %67, %69 : vector<32x1xf32>
    %71 = arith.mulf %60, %60 : vector<32x2048xf32>
    %cst_25 = arith.constant dense<0.000000e+00> : vector<32xf32>
    %72 = vector.multi_reduction <add>, %71, %cst_25 [1] : vector<32x2048xf32> to vector<32xf32>
    %73 = vector.shape_cast %72 : vector<32xf32> to vector<32x1xf32>
    %74 = arith.mulf %61, %61 : vector<32x256xf32>
    %cst_26 = arith.constant dense<0.000000e+00> : vector<32xf32>
    %75 = vector.multi_reduction <add>, %74, %cst_26 [1] : vector<32x256xf32> to vector<32xf32>
    %76 = vector.shape_cast %75 : vector<32xf32> to vector<32x1xf32>
    %77 = arith.addf %73, %76 : vector<32x1xf32>
    %78 = arith.mulf %62, %62 : vector<32x256xf32>
    %cst_27 = arith.constant dense<0.000000e+00> : vector<32xf32>
    %79 = vector.multi_reduction <add>, %78, %cst_27 [1] : vector<32x256xf32> to vector<32xf32>
    %80 = vector.shape_cast %79 : vector<32xf32> to vector<32x1xf32>
    %81 = arith.addf %77, %80 : vector<32x1xf32>
    %cst_28 = arith.constant 2.560000e+03 : f32
    %82 = vector.broadcast %cst_28 : f32 to vector<32x1xf32>
    %83 = arith.divf %70, %82 : vector<32x1xf32>
    %cst_29 = arith.constant 2.560000e+03 : f32
    %84 = vector.broadcast %cst_29 : f32 to vector<32x1xf32>
    %85 = arith.divf %81, %84 : vector<32x1xf32>
    %86 = arith.mulf %83, %83 : vector<32x1xf32>
    %87 = arith.subf %85, %86 : vector<32x1xf32>
    %cst_30 = arith.constant 9.99999974E-6 : f32
    %88 = vector.broadcast %cst_30 : f32 to vector<32x1xf32>
    %89 = arith.addf %87, %88 : vector<32x1xf32>
    %90 = math.rsqrt %89 : vector<32x1xf32>
    %c0_31 = arith.constant 0 : index
    %c0_32 = arith.constant 0 : index
    %91 = vector.load %arg11[%c0_31, %c0_32] : memref<32x1xf32, #tpu.memory_space<vmem>>, vector<32x1xf32>
    %92 = arith.mulf %90, %91 : vector<32x1xf32>
    %c0_33 = arith.constant 0 : index
    %c0_34 = arith.constant 0 : index
    %93 = vector.load %arg12[%c0_33, %c0_34] : memref<32x1xf32, #tpu.memory_space<vmem>>, vector<32x1xf32>
    %94 = arith.mulf %83, %92 : vector<32x1xf32>
    %95 = arith.subf %93, %94 : vector<32x1xf32>
    %96 = vector.broadcast %92 : vector<32x1xf32> to vector<32x2048xf32>
    %97 = arith.mulf %60, %96 : vector<32x2048xf32>
    %98 = vector.broadcast %95 : vector<32x1xf32> to vector<32x2048xf32>
    %99 = arith.addf %97, %98 : vector<32x2048xf32>
    %cst_35 = arith.constant 5.000000e-01 : f32
    %100 = vector.broadcast %cst_35 : f32 to vector<32x2048xf32>
    %101 = arith.mulf %100, %99 : vector<32x2048xf32>
    %cst_36 = arith.constant 5.000000e-01 : f32
    %102 = vector.broadcast %cst_36 : f32 to vector<32x2048xf32>
    %103 = arith.mulf %102, %99 : vector<32x2048xf32>
    %104 = math.tanh %103 : vector<32x2048xf32>
    %cst_37 = arith.constant 1.000000e+00 : f32
    %105 = vector.broadcast %cst_37 : f32 to vector<32x2048xf32>
    %106 = arith.addf %104, %105 : vector<32x2048xf32>
    %107 = arith.mulf %101, %106 : vector<32x2048xf32>
    %108 = vector.extract_strided_slice %107 {offsets = [0, 0], sizes = [32, 256], strides = [1, 1]} : vector<32x2048xf32> to vector<32x256xf32>
    %109 = vector.extract_strided_slice %107 {offsets = [0, 0], sizes = [32, 1792], strides = [1, 1]} : vector<32x2048xf32> to vector<32x1792xf32>
    %110 = tpu.concatenate %108, %109 in 1 : vector<32x256xf32>, vector<32x1792xf32> -> vector<32x2048xf32>
    %111 = vector.extract_strided_slice %107 {offsets = [0, 256], sizes = [32, 1792], strides = [1, 1]} : vector<32x2048xf32> to vector<32x1792xf32>
    %112 = vector.extract_strided_slice %107 {offsets = [0, 1792], sizes = [32, 256], strides = [1, 1]} : vector<32x2048xf32> to vector<32x256xf32>
    %113 = tpu.concatenate %111, %112 in 1 : vector<32x1792xf32>, vector<32x256xf32> -> vector<32x2048xf32>
    %114 = tpu.concatenate %110, %107, %113 in 0 : vector<32x2048xf32>, vector<32x2048xf32>, vector<32x2048xf32> -> vector<96x2048xf32>
    %c0_38 = arith.constant 0 : index
    %c0_39 = arith.constant 0 : index
    %115 = vector.load %arg9[%c0_38, %c0_39] : memref<32x96xf32, #tpu.memory_space<vmem>>, vector<32x96xf32>
    %cst_40 = arith.constant dense<0.000000e+00> : vector<32x2048xf32>
    %116 = tpu.matmul %115, %114, %cst_40 {dimension_numbers = #tpu.dot_dimension_numbers<[1], [0], [0], [1], [0, 0, 1, 1], [], []>} : vector<32x96xf32>, vector<96x2048xf32>, vector<32x2048xf32> -> vector<32x2048xf32>
    %c0_41 = arith.constant 0 : index
    %c0_42 = arith.constant 0 : index
    %117 = vector.load %arg10[%c0_41, %c0_42] : memref<32x1xf32, #tpu.memory_space<vmem>>, vector<32x1xf32>
    %118 = vector.broadcast %117 : vector<32x1xf32> to vector<32x2048xf32>
    %119 = arith.addf %116, %118 : vector<32x2048xf32>
    %120 = vector.extract_strided_slice %119 {offsets = [0, 0], sizes = [32, 256], strides = [1, 1]} : vector<32x2048xf32> to vector<32x256xf32>
    %121 = vector.extract_strided_slice %119 {offsets = [0, 1792], sizes = [32, 256], strides = [1, 1]} : vector<32x2048xf32> to vector<32x256xf32>
    %cst_43 = arith.constant dense<0.000000e+00> : vector<32xf32>
    %122 = vector.multi_reduction <add>, %119, %cst_43 [1] : vector<32x2048xf32> to vector<32xf32>
    %123 = vector.shape_cast %122 : vector<32xf32> to vector<32x1xf32>
    %cst_44 = arith.constant dense<0.000000e+00> : vector<32xf32>
    %124 = vector.multi_reduction <add>, %120, %cst_44 [1] : vector<32x256xf32> to vector<32xf32>
    %125 = vector.shape_cast %124 : vector<32xf32> to vector<32x1xf32>
    %126 = arith.addf %123, %125 : vector<32x1xf32>
    %cst_45 = arith.constant dense<0.000000e+00> : vector<32xf32>
    %127 = vector.multi_reduction <add>, %121, %cst_45 [1] : vector<32x256xf32> to vector<32xf32>
    %128 = vector.shape_cast %127 : vector<32xf32> to vector<32x1xf32>
    %129 = arith.addf %126, %128 : vector<32x1xf32>
    %130 = arith.mulf %119, %119 : vector<32x2048xf32>
    %cst_46 = arith.constant dense<0.000000e+00> : vector<32xf32>
    %131 = vector.multi_reduction <add>, %130, %cst_46 [1] : vector<32x2048xf32> to vector<32xf32>
    %132 = vector.shape_cast %131 : vector<32xf32> to vector<32x1xf32>
    %133 = arith.mulf %120, %120 : vector<32x256xf32>
    %cst_47 = arith.constant dense<0.000000e+00> : vector<32xf32>
    %134 = vector.multi_reduction <add>, %133, %cst_47 [1] : vector<32x256xf32> to vector<32xf32>
    %135 = vector.shape_cast %134 : vector<32xf32> to vector<32x1xf32>
    %136 = arith.addf %132, %135 : vector<32x1xf32>
    %137 = arith.mulf %121, %121 : vector<32x256xf32>
    %cst_48 = arith.constant dense<0.000000e+00> : vector<32xf32>
    %138 = vector.multi_reduction <add>, %137, %cst_48 [1] : vector<32x256xf32> to vector<32xf32>
    %139 = vector.shape_cast %138 : vector<32xf32> to vector<32x1xf32>
    %140 = arith.addf %136, %139 : vector<32x1xf32>
    %cst_49 = arith.constant 2.560000e+03 : f32
    %141 = vector.broadcast %cst_49 : f32 to vector<32x1xf32>
    %142 = arith.divf %129, %141 : vector<32x1xf32>
    %cst_50 = arith.constant 2.560000e+03 : f32
    %143 = vector.broadcast %cst_50 : f32 to vector<32x1xf32>
    %144 = arith.divf %140, %143 : vector<32x1xf32>
    %145 = arith.mulf %142, %142 : vector<32x1xf32>
    %146 = arith.subf %144, %145 : vector<32x1xf32>
    %cst_51 = arith.constant 9.99999974E-6 : f32
    %147 = vector.broadcast %cst_51 : f32 to vector<32x1xf32>
    %148 = arith.addf %146, %147 : vector<32x1xf32>
    %149 = math.rsqrt %148 : vector<32x1xf32>
    %c0_52 = arith.constant 0 : index
    %c0_53 = arith.constant 0 : index
    %150 = vector.load %arg15[%c0_52, %c0_53] : memref<32x1xf32, #tpu.memory_space<vmem>>, vector<32x1xf32>
    %151 = arith.mulf %149, %150 : vector<32x1xf32>
    %c0_54 = arith.constant 0 : index
    %c0_55 = arith.constant 0 : index
    %152 = vector.load %arg16[%c0_54, %c0_55] : memref<32x1xf32, #tpu.memory_space<vmem>>, vector<32x1xf32>
    %153 = arith.mulf %142, %151 : vector<32x1xf32>
    %154 = arith.subf %152, %153 : vector<32x1xf32>
    %155 = vector.broadcast %151 : vector<32x1xf32> to vector<32x2048xf32>
    %156 = arith.mulf %119, %155 : vector<32x2048xf32>
    %157 = vector.broadcast %154 : vector<32x1xf32> to vector<32x2048xf32>
    %158 = arith.addf %156, %157 : vector<32x2048xf32>
    %cst_56 = arith.constant 5.000000e-01 : f32
    %159 = vector.broadcast %cst_56 : f32 to vector<32x2048xf32>
    %160 = arith.mulf %159, %158 : vector<32x2048xf32>
    %cst_57 = arith.constant 5.000000e-01 : f32
    %161 = vector.broadcast %cst_57 : f32 to vector<32x2048xf32>
    %162 = arith.mulf %161, %158 : vector<32x2048xf32>
    %163 = math.tanh %162 : vector<32x2048xf32>
    %cst_58 = arith.constant 1.000000e+00 : f32
    %164 = vector.broadcast %cst_58 : f32 to vector<32x2048xf32>
    %165 = arith.addf %163, %164 : vector<32x2048xf32>
    %166 = arith.mulf %160, %165 : vector<32x2048xf32>
    %167 = vector.extract_strided_slice %166 {offsets = [0, 0], sizes = [32, 256], strides = [1, 1]} : vector<32x2048xf32> to vector<32x256xf32>
    %168 = vector.extract_strided_slice %166 {offsets = [0, 0], sizes = [32, 1792], strides = [1, 1]} : vector<32x2048xf32> to vector<32x1792xf32>
    %169 = tpu.concatenate %167, %168 in 1 : vector<32x256xf32>, vector<32x1792xf32> -> vector<32x2048xf32>
    %170 = vector.extract_strided_slice %166 {offsets = [0, 256], sizes = [32, 1792], strides = [1, 1]} : vector<32x2048xf32> to vector<32x1792xf32>
    %171 = vector.extract_strided_slice %166 {offsets = [0, 1792], sizes = [32, 256], strides = [1, 1]} : vector<32x2048xf32> to vector<32x256xf32>
    %172 = tpu.concatenate %170, %171 in 1 : vector<32x1792xf32>, vector<32x256xf32> -> vector<32x2048xf32>
    %173 = tpu.concatenate %169, %166, %172 in 0 : vector<32x2048xf32>, vector<32x2048xf32>, vector<32x2048xf32> -> vector<96x2048xf32>
    %c0_59 = arith.constant 0 : index
    %c0_60 = arith.constant 0 : index
    %174 = vector.load %arg13[%c0_59, %c0_60] : memref<32x96xf32, #tpu.memory_space<vmem>>, vector<32x96xf32>
    %cst_61 = arith.constant dense<0.000000e+00> : vector<32x2048xf32>
    %175 = tpu.matmul %174, %173, %cst_61 {dimension_numbers = #tpu.dot_dimension_numbers<[1], [0], [0], [1], [0, 0, 1, 1], [], []>} : vector<32x96xf32>, vector<96x2048xf32>, vector<32x2048xf32> -> vector<32x2048xf32>
    %c0_62 = arith.constant 0 : index
    %c0_63 = arith.constant 0 : index
    %176 = vector.load %arg14[%c0_62, %c0_63] : memref<32x1xf32, #tpu.memory_space<vmem>>, vector<32x1xf32>
    %177 = vector.broadcast %176 : vector<32x1xf32> to vector<32x2048xf32>
    %178 = arith.addf %175, %177 : vector<32x2048xf32>
    %179 = vector.extract_strided_slice %178 {offsets = [0, 0], sizes = [32, 256], strides = [1, 1]} : vector<32x2048xf32> to vector<32x256xf32>
    %180 = vector.extract_strided_slice %178 {offsets = [0, 1792], sizes = [32, 256], strides = [1, 1]} : vector<32x2048xf32> to vector<32x256xf32>
    %cst_64 = arith.constant dense<0.000000e+00> : vector<32xf32>
    %181 = vector.multi_reduction <add>, %178, %cst_64 [1] : vector<32x2048xf32> to vector<32xf32>
    %182 = vector.shape_cast %181 : vector<32xf32> to vector<32x1xf32>
    %cst_65 = arith.constant dense<0.000000e+00> : vector<32xf32>
    %183 = vector.multi_reduction <add>, %179, %cst_65 [1] : vector<32x256xf32> to vector<32xf32>
    %184 = vector.shape_cast %183 : vector<32xf32> to vector<32x1xf32>
    %185 = arith.addf %182, %184 : vector<32x1xf32>
    %cst_66 = arith.constant dense<0.000000e+00> : vector<32xf32>
    %186 = vector.multi_reduction <add>, %180, %cst_66 [1] : vector<32x256xf32> to vector<32xf32>
    %187 = vector.shape_cast %186 : vector<32xf32> to vector<32x1xf32>
    %188 = arith.addf %185, %187 : vector<32x1xf32>
    %189 = arith.mulf %178, %178 : vector<32x2048xf32>
    %cst_67 = arith.constant dense<0.000000e+00> : vector<32xf32>
    %190 = vector.multi_reduction <add>, %189, %cst_67 [1] : vector<32x2048xf32> to vector<32xf32>
    %191 = vector.shape_cast %190 : vector<32xf32> to vector<32x1xf32>
    %192 = arith.mulf %179, %179 : vector<32x256xf32>
    %cst_68 = arith.constant dense<0.000000e+00> : vector<32xf32>
    %193 = vector.multi_reduction <add>, %192, %cst_68 [1] : vector<32x256xf32> to vector<32xf32>
    %194 = vector.shape_cast %193 : vector<32xf32> to vector<32x1xf32>
    %195 = arith.addf %191, %194 : vector<32x1xf32>
    %196 = arith.mulf %180, %180 : vector<32x256xf32>
    %cst_69 = arith.constant dense<0.000000e+00> : vector<32xf32>
    %197 = vector.multi_reduction <add>, %196, %cst_69 [1] : vector<32x256xf32> to vector<32xf32>
    %198 = vector.shape_cast %197 : vector<32xf32> to vector<32x1xf32>
    %199 = arith.addf %195, %198 : vector<32x1xf32>
    %cst_70 = arith.constant 2.560000e+03 : f32
    %200 = vector.broadcast %cst_70 : f32 to vector<32x1xf32>
    %201 = arith.divf %188, %200 : vector<32x1xf32>
    %cst_71 = arith.constant 2.560000e+03 : f32
    %202 = vector.broadcast %cst_71 : f32 to vector<32x1xf32>
    %203 = arith.divf %199, %202 : vector<32x1xf32>
    %204 = arith.mulf %201, %201 : vector<32x1xf32>
    %205 = arith.subf %203, %204 : vector<32x1xf32>
    %cst_72 = arith.constant 9.99999974E-6 : f32
    %206 = vector.broadcast %cst_72 : f32 to vector<32x1xf32>
    %207 = arith.addf %205, %206 : vector<32x1xf32>
    %208 = math.rsqrt %207 : vector<32x1xf32>
    %c0_73 = arith.constant 0 : index
    %c0_74 = arith.constant 0 : index
    %209 = vector.load %arg19[%c0_73, %c0_74] : memref<32x1xf32, #tpu.memory_space<vmem>>, vector<32x1xf32>
    %210 = arith.mulf %208, %209 : vector<32x1xf32>
    %c0_75 = arith.constant 0 : index
    %c0_76 = arith.constant 0 : index
    %211 = vector.load %arg20[%c0_75, %c0_76] : memref<32x1xf32, #tpu.memory_space<vmem>>, vector<32x1xf32>
    %212 = arith.mulf %201, %210 : vector<32x1xf32>
    %213 = arith.subf %211, %212 : vector<32x1xf32>
    %214 = vector.broadcast %210 : vector<32x1xf32> to vector<32x2048xf32>
    %215 = arith.mulf %178, %214 : vector<32x2048xf32>
    %216 = vector.broadcast %213 : vector<32x1xf32> to vector<32x2048xf32>
    %217 = arith.addf %215, %216 : vector<32x2048xf32>
    %cst_77 = arith.constant 5.000000e-01 : f32
    %218 = vector.broadcast %cst_77 : f32 to vector<32x2048xf32>
    %219 = arith.mulf %218, %217 : vector<32x2048xf32>
    %cst_78 = arith.constant 5.000000e-01 : f32
    %220 = vector.broadcast %cst_78 : f32 to vector<32x2048xf32>
    %221 = arith.mulf %220, %217 : vector<32x2048xf32>
    %222 = math.tanh %221 : vector<32x2048xf32>
    %cst_79 = arith.constant 1.000000e+00 : f32
    %223 = vector.broadcast %cst_79 : f32 to vector<32x2048xf32>
    %224 = arith.addf %222, %223 : vector<32x2048xf32>
    %225 = arith.mulf %219, %224 : vector<32x2048xf32>
    %226 = vector.extract_strided_slice %225 {offsets = [0, 0], sizes = [32, 256], strides = [1, 1]} : vector<32x2048xf32> to vector<32x256xf32>
    %227 = vector.extract_strided_slice %225 {offsets = [0, 0], sizes = [32, 1792], strides = [1, 1]} : vector<32x2048xf32> to vector<32x1792xf32>
    %228 = tpu.concatenate %226, %227 in 1 : vector<32x256xf32>, vector<32x1792xf32> -> vector<32x2048xf32>
    %229 = vector.extract_strided_slice %225 {offsets = [0, 256], sizes = [32, 1792], strides = [1, 1]} : vector<32x2048xf32> to vector<32x1792xf32>
    %230 = vector.extract_strided_slice %225 {offsets = [0, 1792], sizes = [32, 256], strides = [1, 1]} : vector<32x2048xf32> to vector<32x256xf32>
    %231 = tpu.concatenate %229, %230 in 1 : vector<32x1792xf32>, vector<32x256xf32> -> vector<32x2048xf32>
    %232 = tpu.concatenate %228, %225, %231 in 0 : vector<32x2048xf32>, vector<32x2048xf32>, vector<32x2048xf32> -> vector<96x2048xf32>
    %c0_80 = arith.constant 0 : index
    %c0_81 = arith.constant 0 : index
    %233 = vector.load %arg17[%c0_80, %c0_81] : memref<32x96xf32, #tpu.memory_space<vmem>>, vector<32x96xf32>
    %cst_82 = arith.constant dense<0.000000e+00> : vector<32x2048xf32>
    %234 = tpu.matmul %233, %232, %cst_82 {dimension_numbers = #tpu.dot_dimension_numbers<[1], [0], [0], [1], [0, 0, 1, 1], [], []>} : vector<32x96xf32>, vector<96x2048xf32>, vector<32x2048xf32> -> vector<32x2048xf32>
    %c0_83 = arith.constant 0 : index
    %c0_84 = arith.constant 0 : index
    %235 = vector.load %arg18[%c0_83, %c0_84] : memref<32x1xf32, #tpu.memory_space<vmem>>, vector<32x1xf32>
    %236 = vector.broadcast %235 : vector<32x1xf32> to vector<32x2048xf32>
    %237 = arith.addf %234, %236 : vector<32x2048xf32>
    %238 = arith.addf %237, %1 : vector<32x2048xf32>
    %239 = vector.shape_cast %238 : vector<32x2048xf32> to vector<1x32x2048xf32>
    %c0_85 = arith.constant 0 : index
    %c0_86 = arith.constant 0 : index
    %c0_87 = arith.constant 0 : index
    %240 = vector.load %arg21[%c0_85, %c0_86, %c0_87] : memref<1x32x2048xf32, #tpu.memory_space<vmem>>, vector<1x32x2048xf32>
    tpu.vector_store %arg21[%c0_85, %c0_86, %c0_87], %239 {strides = array<i32>} : memref<1x32x2048xf32, #tpu.memory_space<vmem>>, vector<1x32x2048xf32>,
    return
  }
  func.func @transform_0(%arg0: i32) -> (i32, i32, i32) {
    %c0_i32 = arith.constant 0 : i32
    %c0_i32_0 = arith.constant 0 : i32
    %c0_i32_1 = arith.constant 0 : i32
    return %arg0, %c0_i32, %c0_i32_0 : i32, i32, i32
  }
  func.func @transform_1(%arg0: i32) -> (i32, i32) {
    %c0_i32 = arith.constant 0 : i32
    %c0_i32_0 = arith.constant 0 : i32
    %c0_i32_1 = arith.constant 0 : i32
    return %c0_i32, %c0_i32_0 : i32, i32
  }
  func.func @transform_2(%arg0: i32) -> (i32, i32) {
    %c0_i32 = arith.constant 0 : i32
    %c0_i32_0 = arith.constant 0 : i32
    %c0_i32_1 = arith.constant 0 : i32
    return %c0_i32, %c0_i32_0 : i32, i32
  }
  func.func @transform_3(%arg0: i32) -> (i32, i32) {
    %c0_i32 = arith.constant 0 : i32
    %c0_i32_0 = arith.constant 0 : i32
    %c0_i32_1 = arith.constant 0 : i32
    return %c0_i32, %c0_i32_0 : i32, i32
  }
  func.func @transform_4(%arg0: i32) -> (i32, i32) {
    %c0_i32 = arith.constant 0 : i32
    %c0_i32_0 = arith.constant 0 : i32
    %c0_i32_1 = arith.constant 0 : i32
    return %c0_i32, %c0_i32_0 : i32, i32
  }
  func.func @transform_5(%arg0: i32) -> (i32, i32) {
    %c0_i32 = arith.constant 0 : i32
    %c0_i32_0 = arith.constant 0 : i32
    %c0_i32_1 = arith.constant 0 : i32
    return %c0_i32, %c0_i32_0 : i32, i32
  }
  func.func @transform_6(%arg0: i32) -> (i32, i32) {
    %c0_i32 = arith.constant 0 : i32
    %c0_i32_0 = arith.constant 0 : i32
    %c0_i32_1 = arith.constant 0 : i32
    return %c0_i32, %c0_i32_0 : i32, i32
  }
  func.func @transform_7(%arg0: i32) -> (i32, i32) {
    %c0_i32 = arith.constant 0 : i32
    %c0_i32_0 = arith.constant 0 : i32
    %c0_i32_1 = arith.constant 0 : i32
    return %c0_i32, %c0_i32_0 : i32, i32
  }
  func.func @transform_8(%arg0: i32) -> (i32, i32) {
    %c0_i32 = arith.constant 0 : i32
    %c0_i32_0 = arith.constant 0 : i32
    %c0_i32_1 = arith.constant 0 : i32
    return %c0_i32, %c0_i32_0 : i32, i32
  }
  func.func @transform_9(%arg0: i32) -> (i32, i32) {
    %c0_i32 = arith.constant 0 : i32
    %c0_i32_0 = arith.constant 0 : i32
    %c0_i32_1 = arith.constant 0 : i32
    return %c0_i32, %c0_i32_0 : i32, i32
  }
  func.func @transform_10(%arg0: i32) -> (i32, i32) {
    %c0_i32 = arith.constant 0 : i32
    %c0_i32_0 = arith.constant 0 : i32
    %c0_i32_1 = arith.constant 0 : i32
    return %c0_i32, %c0_i32_0 : i32, i32
  }
  func.func @transform_11(%arg0: i32) -> (i32, i32) {
    %c0_i32 = arith.constant 0 : i32
    %c0_i32_0 = arith.constant 0 : i32
    %c0_i32_1 = arith.constant 0 : i32
    return %c0_i32, %c0_i32_0 : i32, i32
  }
  func.func @transform_12(%arg0: i32) -> (i32, i32) {
    %c0_i32 = arith.constant 0 : i32
    %c0_i32_0 = arith.constant 0 : i32
    %c0_i32_1 = arith.constant 0 : i32
    return %c0_i32, %c0_i32_0 : i32, i32
  }
  func.func @transform_13(%arg0: i32) -> (i32, i32) {
    %c0_i32 = arith.constant 0 : i32
    %c0_i32_0 = arith.constant 0 : i32
    %c0_i32_1 = arith.constant 0 : i32
    return %c0_i32, %c0_i32_0 : i32, i32
  }
  func.func @transform_14(%arg0: i32) -> (i32, i32) {
    %c0_i32 = arith.constant 0 : i32
    %c0_i32_0 = arith.constant 0 : i32
    %c0_i32_1 = arith.constant 0 : i32
    return %c0_i32, %c0_i32_0 : i32, i32
  }
  func.func @transform_15(%arg0: i32) -> (i32, i32) {
    %c0_i32 = arith.constant 0 : i32
    %c0_i32_0 = arith.constant 0 : i32
    %c0_i32_1 = arith.constant 0 : i32
    return %c0_i32, %c0_i32_0 : i32, i32
  }
  func.func @transform_16(%arg0: i32) -> (i32, i32) {
    %c0_i32 = arith.constant 0 : i32
    %c0_i32_0 = arith.constant 0 : i32
    %c0_i32_1 = arith.constant 0 : i32
    return %c0_i32, %c0_i32_0 : i32, i32
  }
  func.func @transform_17(%arg0: i32) -> (i32, i32) {
    %c0_i32 = arith.constant 0 : i32
    %c0_i32_0 = arith.constant 0 : i32
    %c0_i32_1 = arith.constant 0 : i32
    return %c0_i32, %c0_i32_0 : i32, i32
  }
  func.func @transform_18(%arg0: i32) -> (i32, i32) {
    %c0_i32 = arith.constant 0 : i32
    %c0_i32_0 = arith.constant 0 : i32
    %c0_i32_1 = arith.constant 0 : i32
    return %c0_i32, %c0_i32_0 : i32, i32
  }
  func.func @transform_19(%arg0: i32) -> (i32, i32) {
    %c0_i32 = arith.constant 0 : i32
    %c0_i32_0 = arith.constant 0 : i32
    %c0_i32_1 = arith.constant 0 : i32
    return %c0_i32, %c0_i32_0 : i32, i32
  }
  func.func @transform_20(%arg0: i32) -> (i32, i32, i32) {
    %c0_i32 = arith.constant 0 : i32
    %c0_i32_0 = arith.constant 0 : i32
    %c0_i32_1 = arith.constant 0 : i32
    return %arg0, %c0_i32, %c0_i32_0 : i32, i32, i32
  }
}

</mosaic_0001>

<llo_original>
// kernel: tpu_custom_call.1
$region0: #{tpu_custom_call.1}
  #allocation0 [shape = 'u32[]', space=smem, size = 0x4, offset = 0x4, fixed_abs, tag = 'smem constant byte address 0x4 - core index']
  #allocation1 [shape = 'u32[72,128]{1,0:T(1,128)}', space=vmem, size = 0x9000, scoped, tag = 'internal scratch']
  %s0 = inlined_call_operand.hbm [shape: f32[2,32,2048], index: 0, kind: input, shape index: {}]
  %s1 = inlined_call_operand.vmem [shape: f32[1,2048], index: 1, kind: input, shape index: {}]
  %s2 = inlined_call_operand.vmem [shape: f32[32,32], index: 2, kind: input, shape index: {}]
  %s3 = inlined_call_operand.vmem [shape: f32[32,32], index: 3, kind: input, shape index: {}]
  %s4 = inlined_call_operand.vmem [shape: f32[32,96], index: 4, kind: input, shape index: {}]
  %s5 = inlined_call_operand.vmem [shape: f32[32,1], index: 5, kind: input, shape index: {}]
  %s6 = inlined_call_operand.vmem [shape: f32[32,1], index: 6, kind: input, shape index: {}]
  %s7 = inlined_call_operand.vmem [shape: f32[32,1], index: 7, kind: input, shape index: {}]
  %s8 = inlined_call_operand.vmem [shape: f32[32,96], index: 8, kind: input, shape index: {}]
  %s9 = inlined_call_operand.vmem [shape: f32[32,1], index: 9, kind: input, shape index: {}]
  %s10 = inlined_call_operand.vmem [shape: f32[32,1], index: 10, kind: input, shape index: {}]
  %s11 = inlined_call_operand.vmem [shape: f32[32,1], index: 11, kind: input, shape index: {}]
  %s12 = inlined_call_operand.vmem [shape: f32[32,96], index: 12, kind: input, shape index: {}]
  %s13 = inlined_call_operand.vmem [shape: f32[32,1], index: 13, kind: input, shape index: {}]
  %s14 = inlined_call_operand.vmem [shape: f32[32,1], index: 14, kind: input, shape index: {}]
  %s15 = inlined_call_operand.vmem [shape: f32[32,1], index: 15, kind: input, shape index: {}]
  %s16 = inlined_call_operand.vmem [shape: f32[32,96], index: 16, kind: input, shape index: {}]
  %s17 = inlined_call_operand.vmem [shape: f32[32,1], index: 17, kind: input, shape index: {}]
  %s18 = inlined_call_operand.vmem [shape: f32[32,1], index: 18, kind: input, shape index: {}]
  %s19 = inlined_call_operand.vmem [shape: f32[32,1], index: 19, kind: input, shape index: {}]
  %s20 = inlined_call_operand.hbm [shape: f32[2,32,2048], index: 20, kind: output, shape index: {}]
  %s21 = sld [smem:[#allocation0]]
  $region117: #{tpu_custom_call.1} parent=0
    _
  %s23 = ssub.s32 1, %s21
  %s24 = scalar_select 0, %s23, %s21
  $region1: #{tpu_custom_call.1} parent=0
    #allocation2 [shape = 'u8[524288]{0}', space=vmem, size = 0x80000, scoped, tag = 'input window, operand 0']
    #allocation3 [shape = 's32[2]{0}', space=sflag, size = 0x8, scoped, tag = 'scoped memory for tpu_custom_call.1']
    #allocation4 [shape = 's32[2]{0}', space=sflag, size = 0x8, scoped, tag = 'scoped memory for tpu_custom_call.1']
    #allocation5 [shape = 'u8[524288]{0}', space=vmem, size = 0x80000, scoped, tag = 'output window, operand 0']
    %25 = vsyncpa [#allocation3], 0
    %s26 = scalar_lea.sflag [#allocation3], 1
    %27 = vsyncpa %s26, 0
    %28 = vsyncpa [#allocation4], 0
    %s29 = scalar_lea.sflag [#allocation4], 1
    %30 = vsyncpa %s29, 0
    loop: start=0, step=1, limit=4
    $region2: #{tpu_custom_call.1} parent=1 // loop_pre_header
      _
    $region3: #{tpu_custom_call.1} parent=1 // loop_header
      %s32 = sphi 0, %s36
      %p33 = scmp.ge.s32.totalorder %s32, 4
      %s42 = sphi 0, %s44
      %s45 = sphi 0, %s42
      %s46 = sphi 0, %s45
      %s62 = sphi 0, %s46
      %s66 = sphi 0, %s66
      %s68 = sphi 0, %s66
      %s69 = sphi 0, %s68
      %s83 = sphi 0, %s69
      %s87 = sphi 0, %s87
      %s89 = sphi 0, %s87
      %s90 = sphi 0, %s89
      %s104 = sphi 0, %s90
      %s108 = sphi 0, %s108
      %s110 = sphi 0, %s108
      %s111 = sphi 0, %s110
      %s125 = sphi 0, %s111
      %s129 = sphi 0, %s129
      %s131 = sphi 0, %s129
      %s132 = sphi 0, %s131
      %s146 = sphi 0, %s132
      %s150 = sphi 0, %s150
      %s152 = sphi 0, %s150
      %s153 = sphi 0, %s152
      %s167 = sphi 0, %s153
      %s171 = sphi 0, %s171
      %s173 = sphi 0, %s171
      %s174 = sphi 0, %s173
      %s188 = sphi 0, %s174
      %s192 = sphi 0, %s192
      %s194 = sphi 0, %s192
      %s195 = sphi 0, %s194
      %s209 = sphi 0, %s195
      %s213 = sphi 0, %s213
      %s215 = sphi 0, %s213
      %s216 = sphi 0, %s215
      %s230 = sphi 0, %s216
      %s234 = sphi 0, %s234
      %s236 = sphi 0, %s234
      %s237 = sphi 0, %s236
      %s251 = sphi 0, %s237
      %s255 = sphi 0, %s255
      %s257 = sphi 0, %s255
      %s258 = sphi 0, %s257
      %s272 = sphi 0, %s258
      %s276 = sphi 0, %s276
      %s278 = sphi 0, %s276
      %s279 = sphi 0, %s278
      %s293 = sphi 0, %s279
      %s297 = sphi 0, %s297
      %s299 = sphi 0, %s297
      %s300 = sphi 0, %s299
      %s314 = sphi 0, %s300
      %s318 = sphi 0, %s318
      %s320 = sphi 0, %s318
      %s321 = sphi 0, %s320
      %s335 = sphi 0, %s321
      %s339 = sphi 0, %s339
      %s341 = sphi 0, %s339
      %s342 = sphi 0, %s341
      %s356 = sphi 0, %s342
      %s360 = sphi 0, %s360
      %s362 = sphi 0, %s360
      %s363 = sphi 0, %s362
      %s377 = sphi 0, %s363
      %s381 = sphi 0, %s381
      %s383 = sphi 0, %s381
      %s384 = sphi 0, %s383
      %s398 = sphi 0, %s384
      %s402 = sphi 0, %s402
      %s404 = sphi 0, %s402
      %s405 = sphi 0, %s404
      %s419 = sphi 0, %s405
      %s423 = sphi 0, %s423
      %s425 = sphi 0, %s423
      %s426 = sphi 0, %s425
      %s440 = sphi 0, %s426
      %s444 = sphi 0, %s444
      %s446 = sphi 0, %s444
      %s447 = sphi 0, %s446
      %s461 = sphi 0, %s447
      %s467 = sphi 0, %s469
      %s470 = sphi 0, %s467
      %s471 = sphi 0, %s470
      %s487 = sphi 0, %s471
    $region4: #{tpu_custom_call.1} parent=1 // loop_header_branch
      %35 = sbr.rel (%p33) target = $region8
    $region5: #{tpu_custom_call.1} parent=1 // loop_body
      %s37 = ssub.s32 %s32, 1
      %s38 = ssub.s32 %s32, 2
      %s39 = sadd.s32 %s32, 1
      %s40 = ssub.s32 %s32, %s39
      %p41 = scmp.eq.s32.totalorder %s40, 0
      %s43 = sadd.s32 %s42, 1
      %s44 = scalar_select %p41, %s42, %s43
      %p47 = pneg %p41
      %p48 = scmp.eq.s32.totalorder %s32, 1
      %p49 = por %p47, %p48
      %p50 = scmp.ne.s32.totalorder %s42, %s45
      %p51 = scmp.eq.s32.totalorder %s32, 0
      %p52 = por %p50, %p51
      %p53 = scmp.ne.s32.totalorder %s42, %s45
      %p54 = scmp.eq.s32.totalorder %s37, 1
      %p55 = por %p53, %p54
      %p56 = scmp.ne.s32.totalorder %s45, %s46
      %p57 = scmp.eq.s32.totalorder %s37, 0
      %p58 = por %p56, %p57
      %p59 = scmp.ne.s32.totalorder %s45, %s46
      %p60 = scmp.eq.s32.totalorder %s38, 1
      %p61 = por %p59, %p60
      %p63 = scmp.ne.s32.totalorder %s46, %s62
      %p64 = scmp.eq.s32.totalorder %s38, 0
      %p65 = por %p63, %p64
      %s67 = sadd.s32 %s66, 1
      %p70 = scmp.eq.s32.totalorder %s32, 1
      %p71 = scmp.ne.s32.totalorder %s66, %s68
      %p72 = scmp.eq.s32.totalorder %s32, 0
      %p73 = por %p71, %p72
      %p74 = scmp.ne.s32.totalorder %s66, %s68
      %p75 = scmp.eq.s32.totalorder %s37, 1
      %p76 = por %p74, %p75
      %p77 = scmp.ne.s32.totalorder %s68, %s69
      %p78 = scmp.eq.s32.totalorder %s37, 0
      %p79 = por %p77, %p78
      %p80 = scmp.ne.s32.totalorder %s68, %s69
      %p81 = scmp.eq.s32.totalorder %s38, 1
      %p82 = por %p80, %p81
      %p84 = scmp.ne.s32.totalorder %s69, %s83
      %p85 = scmp.eq.s32.totalorder %s38, 0
      %p86 = por %p84, %p85
      %s88 = sadd.s32 %s87, 1
      %p91 = scmp.eq.s32.totalorder %s32, 1
      %p92 = scmp.ne.s32.totalorder %s87, %s89
      %p93 = scmp.eq.s32.totalorder %s32, 0
      %p94 = por %p92, %p93
      %p95 = scmp.ne.s32.totalorder %s87, %s89
      %p96 = scmp.eq.s32.totalorder %s37, 1
      %p97 = por %p95, %p96
      %p98 = scmp.ne.s32.totalorder %s89, %s90
      %p99 = scmp.eq.s32.totalorder %s37, 0
      %p100 = por %p98, %p99
      %p101 = scmp.ne.s32.totalorder %s89, %s90
      %p102 = scmp.eq.s32.totalorder %s38, 1
      %p103 = por %p101, %p102
      %p105 = scmp.ne.s32.totalorder %s90, %s104
      %p106 = scmp.eq.s32.totalorder %s38, 0
      %p107 = por %p105, %p106
      %s109 = sadd.s32 %s108, 1
      %p112 = scmp.eq.s32.totalorder %s32, 1
      %p113 = scmp.ne.s32.totalorder %s108, %s110
      %p114 = scmp.eq.s32.totalorder %s32, 0
      %p115 = por %p113, %p114
      %p116 = scmp.ne.s32.totalorder %s108, %s110
      %p117 = scmp.eq.s32.totalorder %s37, 1
      %p118 = por %p116, %p117
      %p119 = scmp.ne.s32.totalorder %s110, %s111
      %p120 = scmp.eq.s32.totalorder %s37, 0
      %p121 = por %p119, %p120
      %p122 = scmp.ne.s32.totalorder %s110, %s111
      %p123 = scmp.eq.s32.totalorder %s38, 1
      %p124 = por %p122, %p123
      %p126 = scmp.ne.s32.totalorder %s111, %s125
      %p127 = scmp.eq.s32.totalorder %s38, 0
      %p128 = por %p126, %p127
      %s130 = sadd.s32 %s129, 1
      %p133 = scmp.eq.s32.totalorder %s32, 1
      %p134 = scmp.ne.s32.totalorder %s129, %s131
      %p135 = scmp.eq.s32.totalorder %s32, 0
      %p136 = por %p134, %p135
      %p137 = scmp.ne.s32.totalorder %s129, %s131
      %p138 = scmp.eq.s32.totalorder %s37, 1
      %p139 = por %p137, %p138
      %p140 = scmp.ne.s32.totalorder %s131, %s132
      %p141 = scmp.eq.s32.totalorder %s37, 0
      %p142 = por %p140, %p141
      %p143 = scmp.ne.s32.totalorder %s131, %s132
      %p144 = scmp.eq.s32.totalorder %s38, 1
      %p145 = por %p143, %p144
      %p147 = scmp.ne.s32.totalorder %s132, %s146
      %p148 = scmp.eq.s32.totalorder %s38, 0
      %p149 = por %p147, %p148
      %s151 = sadd.s32 %s150, 1
      %p154 = scmp.eq.s32.totalorder %s32, 1
      %p155 = scmp.ne.s32.totalorder %s150, %s152
      %p156 = scmp.eq.s32.totalorder %s32, 0
      %p157 = por %p155, %p156
      %p158 = scmp.ne.s32.totalorder %s150, %s152
      %p159 = scmp.eq.s32.totalorder %s37, 1
      %p160 = por %p158, %p159
      %p161 = scmp.ne.s32.totalorder %s152, %s153
      %p162 = scmp.eq.s32.totalorder %s37, 0
      %p163 = por %p161, %p162
      %p164 = scmp.ne.s32.totalorder %s152, %s153
      %p165 = scmp.eq.s32.totalorder %s38, 1
      %p166 = por %p164, %p165
      %p168 = scmp.ne.s32.totalorder %s153, %s167
      %p169 = scmp.eq.s32.totalorder %s38, 0
      %p170 = por %p168, %p169
      %s172 = sadd.s32 %s171, 1
      %p175 = scmp.eq.s32.totalorder %s32, 1
      %p176 = scmp.ne.s32.totalorder %s171, %s173
      %p177 = scmp.eq.s32.totalorder %s32, 0
      %p178 = por %p176, %p177
      %p179 = scmp.ne.s32.totalorder %s171, %s173
      %p180 = scmp.eq.s32.totalorder %s37, 1
      %p181 = por %p179, %p180
      %p182 = scmp.ne.s32.totalorder %s173, %s174
      %p183 = scmp.eq.s32.totalorder %s37, 0
      %p184 = por %p182, %p183
      %p185 = scmp.ne.s32.totalorder %s173, %s174
      %p186 = scmp.eq.s32.totalorder %s38, 1
      %p187 = por %p185, %p186
      %p189 = scmp.ne.s32.totalorder %s174, %s188
      %p190 = scmp.eq.s32.totalorder %s38, 0
      %p191 = por %p189, %p190
      %s193 = sadd.s32 %s192, 1
      %p196 = scmp.eq.s32.totalorder %s32, 1
      %p197 = scmp.ne.s32.totalorder %s192, %s194
      %p198 = scmp.eq.s32.totalorder %s32, 0
      %p199 = por %p197, %p198
      %p200 = scmp.ne.s32.totalorder %s192, %s194
      %p201 = scmp.eq.s32.totalorder %s37, 1
      %p202 = por %p200, %p201
      %p203 = scmp.ne.s32.totalorder %s194, %s195
      %p204 = scmp.eq.s32.totalorder %s37, 0
      %p205 = por %p203, %p204
      %p206 = scmp.ne.s32.totalorder %s194, %s195
      %p207 = scmp.eq.s32.totalorder %s38, 1
      %p208 = por %p206, %p207
      %p210 = scmp.ne.s32.totalorder %s195, %s209
      %p211 = scmp.eq.s32.totalorder %s38, 0
      %p212 = por %p210, %p211
      %s214 = sadd.s32 %s213, 1
      %p217 = scmp.eq.s32.totalorder %s32, 1
      %p218 = scmp.ne.s32.totalorder %s213, %s215
      %p219 = scmp.eq.s32.totalorder %s32, 0
      %p220 = por %p218, %p219
      %p221 = scmp.ne.s32.totalorder %s213, %s215
      %p222 = scmp.eq.s32.totalorder %s37, 1
      %p223 = por %p221, %p222
      %p224 = scmp.ne.s32.totalorder %s215, %s216
      %p225 = scmp.eq.s32.totalorder %s37, 0
      %p226 = por %p224, %p225
      %p227 = scmp.ne.s32.totalorder %s215, %s216
      %p228 = scmp.eq.s32.totalorder %s38, 1
      %p229 = por %p227, %p228
      %p231 = scmp.ne.s32.totalorder %s216, %s230
      %p232 = scmp.eq.s32.totalorder %s38, 0
      %p233 = por %p231, %p232
      %s235 = sadd.s32 %s234, 1
      %p238 = scmp.eq.s32.totalorder %s32, 1
      %p239 = scmp.ne.s32.totalorder %s234, %s236
      %p240 = scmp.eq.s32.totalorder %s32, 0
      %p241 = por %p239, %p240
      %p242 = scmp.ne.s32.totalorder %s234, %s236
      %p243 = scmp.eq.s32.totalorder %s37, 1
      %p244 = por %p242, %p243
      %p245 = scmp.ne.s32.totalorder %s236, %s237
      %p246 = scmp.eq.s32.totalorder %s37, 0
      %p247 = por %p245, %p246
      %p248 = scmp.ne.s32.totalorder %s236, %s237
      %p249 = scmp.eq.s32.totalorder %s38, 1
      %p250 = por %p248, %p249
      %p252 = scmp.ne.s32.totalorder %s237, %s251
      %p253 = scmp.eq.s32.totalorder %s38, 0
      %p254 = por %p252, %p253
      %s256 = sadd.s32 %s255, 1
      %p259 = scmp.eq.s32.totalorder %s32, 1
      %p260 = scmp.ne.s32.totalorder %s255, %s257
      %p261 = scmp.eq.s32.totalorder %s32, 0
      %p262 = por %p260, %p261
      %p263 = scmp.ne.s32.totalorder %s255, %s257
      %p264 = scmp.eq.s32.totalorder %s37, 1
      %p265 = por %p263, %p264
      %p266 = scmp.ne.s32.totalorder %s257, %s258
      %p267 = scmp.eq.s32.totalorder %s37, 0
      %p268 = por %p266, %p267
      %p269 = scmp.ne.s32.totalorder %s257, %s258
      %p270 = scmp.eq.s32.totalorder %s38, 1
      %p271 = por %p269, %p270
      %p273 = scmp.ne.s32.totalorder %s258, %s272
      %p274 = scmp.eq.s32.totalorder %s38, 0
      %p275 = por %p273, %p274
      %s277 = sadd.s32 %s276, 1
      %p280 = scmp.eq.s32.totalorder %s32, 1
      %p281 = scmp.ne.s32.totalorder %s276, %s278
      %p282 = scmp.eq.s32.totalorder %s32, 0
      %p283 = por %p281, %p282
      %p284 = scmp.ne.s32.totalorder %s276, %s278
      %p285 = scmp.eq.s32.totalorder %s37, 1
      %p286 = por %p284, %p285
      %p287 = scmp.ne.s32.totalorder %s278, %s279
      %p288 = scmp.eq.s32.totalorder %s37, 0
      %p289 = por %p287, %p288
      %p290 = scmp.ne.s32.totalorder %s278, %s279
      %p291 = scmp.eq.s32.totalorder %s38, 1
      %p292 = por %p290, %p291
      %p294 = scmp.ne.s32.totalorder %s279, %s293
      %p295 = scmp.eq.s32.totalorder %s38, 0
      %p296 = por %p294, %p295
      %s298 = sadd.s32 %s297, 1
      %p301 = scmp.eq.s32.totalorder %s32, 1
      %p302 = scmp.ne.s32.totalorder %s297, %s299
      %p303 = scmp.eq.s32.totalorder %s32, 0
      %p304 = por %p302, %p303
      %p305 = scmp.ne.s32.totalorder %s297, %s299
      %p306 = scmp.eq.s32.totalorder %s37, 1
      %p307 = por %p305, %p306
      %p308 = scmp.ne.s32.totalorder %s299, %s300
      %p309 = scmp.eq.s32.totalorder %s37, 0
      %p310 = por %p308, %p309
      %p311 = scmp.ne.s32.totalorder %s299, %s300
      %p312 = scmp.eq.s32.totalorder %s38, 1
      %p313 = por %p311, %p312
      %p315 = scmp.ne.s32.totalorder %s300, %s314
      %p316 = scmp.eq.s32.totalorder %s38, 0
      %p317 = por %p315, %p316
      %s319 = sadd.s32 %s318, 1
      %p322 = scmp.eq.s32.totalorder %s32, 1
      %p323 = scmp.ne.s32.totalorder %s318, %s320
      %p324 = scmp.eq.s32.totalorder %s32, 0
      %p325 = por %p323, %p324
      %p326 = scmp.ne.s32.totalorder %s318, %s320
      %p327 = scmp.eq.s32.totalorder %s37, 1
      %p328 = por %p326, %p327
      %p329 = scmp.ne.s32.totalorder %s320, %s321
      %p330 = scmp.eq.s32.totalorder %s37, 0
      %p331 = por %p329, %p330
      %p332 = scmp.ne.s32.totalorder %s320, %s321
      %p333 = scmp.eq.s32.totalorder %s38, 1
      %p334 = por %p332, %p333
      %p336 = scmp.ne.s32.totalorder %s321, %s335
      %p337 = scmp.eq.s32.totalorder %s38, 0
      %p338 = por %p336, %p337
      %s340 = sadd.s32 %s339, 1
      %p343 = scmp.eq.s32.totalorder %s32, 1
      %p344 = scmp.ne.s32.totalorder %s339, %s341
      %p345 = scmp.eq.s32.totalorder %s32, 0
      %p346 = por %p344, %p345
      %p347 = scmp.ne.s32.totalorder %s339, %s341
      %p348 = scmp.eq.s32.totalorder %s37, 1
      %p349 = por %p347, %p348
      %p350 = scmp.ne.s32.totalorder %s341, %s342
      %p351 = scmp.eq.s32.totalorder %s37, 0
      %p352 = por %p350, %p351
      %p353 = scmp.ne.s32.totalorder %s341, %s342
      %p354 = scmp.eq.s32.totalorder %s38, 1
      %p355 = por %p353, %p354
      %p357 = scmp.ne.s32.totalorder %s342, %s356
      %p358 = scmp.eq.s32.totalorder %s38, 0
      %p359 = por %p357, %p358
      %s361 = sadd.s32 %s360, 1
      %p364 = scmp.eq.s32.totalorder %s32, 1
      %p365 = scmp.ne.s32.totalorder %s360, %s362
      %p366 = scmp.eq.s32.totalorder %s32, 0
      %p367 = por %p365, %p366
      %p368 = scmp.ne.s32.totalorder %s360, %s362
      %p369 = scmp.eq.s32.totalorder %s37, 1
      %p370 = por %p368, %p369
      %p371 = scmp.ne.s32.totalorder %s362, %s363
      %p372 = scmp.eq.s32.totalorder %s37, 0
      %p373 = por %p371, %p372
      %p374 = scmp.ne.s32.totalorder %s362, %s363
      %p375 = scmp.eq.s32.totalorder %s38, 1
      %p376 = por %p374, %p375
      %p378 = scmp.ne.s32.totalorder %s363, %s377
      %p379 = scmp.eq.s32.totalorder %s38, 0
      %p380 = por %p378, %p379
      %s382 = sadd.s32 %s381, 1
      %p385 = scmp.eq.s32.totalorder %s32, 1
      %p386 = scmp.ne.s32.totalorder %s381, %s383
      %p387 = scmp.eq.s32.totalorder %s32, 0
      %p388 = por %p386, %p387
      %p389 = scmp.ne.s32.totalorder %s381, %s383
      %p390 = scmp.eq.s32.totalorder %s37, 1
      %p391 = por %p389, %p390
      %p392 = scmp.ne.s32.totalorder %s383, %s384
      %p393 = scmp.eq.s32.totalorder %s37, 0
      %p394 = por %p392, %p393
      %p395 = scmp.ne.s32.totalorder %s383, %s384
      %p396 = scmp.eq.s32.totalorder %s38, 1
      %p397 = por %p395, %p396
      %p399 = scmp.ne.s32.totalorder %s384, %s398
      %p400 = scmp.eq.s32.totalorder %s38, 0
      %p401 = por %p399, %p400
      %s403 = sadd.s32 %s402, 1
      %p406 = scmp.eq.s32.totalorder %s32, 1
      %p407 = scmp.ne.s32.totalorder %s402, %s404
      %p408 = scmp.eq.s32.totalorder %s32, 0
      %p409 = por %p407, %p408
      %p410 = scmp.ne.s32.totalorder %s402, %s404
      %p411 = scmp.eq.s32.totalorder %s37, 1
      %p412 = por %p410, %p411
      %p413 = scmp.ne.s32.totalorder %s404, %s405
      %p414 = scmp.eq.s32.totalorder %s37, 0
      %p415 = por %p413, %p414
      %p416 = scmp.ne.s32.totalorder %s404, %s405
      %p417 = scmp.eq.s32.totalorder %s38, 1
      %p418 = por %p416, %p417
      %p420 = scmp.ne.s32.totalorder %s405, %s419
      %p421 = scmp.eq.s32.totalorder %s38, 0
      %p422 = por %p420, %p421
      %s424 = sadd.s32 %s423, 1
      %p427 = scmp.eq.s32.totalorder %s32, 1
      %p428 = scmp.ne.s32.totalorder %s423, %s425
      %p429 = scmp.eq.s32.totalorder %s32, 0
      %p430 = por %p428, %p429
      %p431 = scmp.ne.s32.totalorder %s423, %s425
      %p432 = scmp.eq.s32.totalorder %s37, 1
      %p433 = por %p431, %p432
      %p434 = scmp.ne.s32.totalorder %s425, %s426
      %p435 = scmp.eq.s32.totalorder %s37, 0
      %p436 = por %p434, %p435
      %p437 = scmp.ne.s32.totalorder %s425, %s426
      %p438 = scmp.eq.s32.totalorder %s38, 1
      %p439 = por %p437, %p438
      %p441 = scmp.ne.s32.totalorder %s426, %s440
      %p442 = scmp.eq.s32.totalorder %s38, 0
      %p443 = por %p441, %p442
      %s445 = sadd.s32 %s444, 1
      %p448 = scmp.eq.s32.totalorder %s32, 1
      %p449 = scmp.ne.s32.totalorder %s444, %s446
      %p450 = scmp.eq.s32.totalorder %s32, 0
      %p451 = por %p449, %p450
      %p452 = scmp.ne.s32.totalorder %s444, %s446
      %p453 = scmp.eq.s32.totalorder %s37, 1
      %p454 = por %p452, %p453
      %p455 = scmp.ne.s32.totalorder %s446, %s447
      %p456 = scmp.eq.s32.totalorder %s37, 0
      %p457 = por %p455, %p456
      %p458 = scmp.ne.s32.totalorder %s446, %s447
      %p459 = scmp.eq.s32.totalorder %s38, 1
      %p460 = por %p458, %p459
      %p462 = scmp.ne.s32.totalorder %s447, %s461
      %p463 = scmp.eq.s32.totalorder %s38, 0
      %p464 = por %p462, %p463
      %s465 = ssub.s32 %s32, %s39
      %p466 = scmp.eq.s32.totalorder %s465, 0
      %s468 = sadd.s32 %s467, 1
      %s469 = scalar_select %p466, %s467, %s468
      %p472 = pneg %p466
      %p473 = scmp.eq.s32.totalorder %s32, 1
      %p474 = por %p472, %p473
      %p475 = scmp.ne.s32.totalorder %s467, %s470
      %p476 = scmp.eq.s32.totalorder %s32, 0
      %p477 = por %p475, %p476
      %p478 = scmp.ne.s32.totalorder %s467, %s470
      %p479 = scmp.eq.s32.totalorder %s37, 1
      %p480 = por %p478, %p479
      %p481 = scmp.ne.s32.totalorder %s470, %s471
      %p482 = scmp.eq.s32.totalorder %s37, 0
      %p483 = por %p481, %p482
      %p484 = scmp.ne.s32.totalorder %s470, %s471
      %p485 = scmp.eq.s32.totalorder %s38, 1
      %p486 = por %p484, %p485
      %p488 = scmp.ne.s32.totalorder %s471, %s487
      %p489 = scmp.eq.s32.totalorder %s38, 0
      %p490 = por %p488, %p489
      %p491 = scmp.le.s32.totalorder 1, %s32
      %p492 = scmp.lt.s32.totalorder %s32, 3
      %p493 = pnand %p491, %p492
      %p494 = pneg %p493
      // Predicated region
      $region9: #{tpu_custom_call.1} parent=5 // pred_check
        _
      $region10: #{tpu_custom_call.1} parent=5 // pred_check_branch
        %496 = sbr.rel (%p493) target = $region12
      $region11: #{tpu_custom_call.1} parent=5 // pred_region
        %s497 = ssub.s32 %s32, 1
        // Predicated region
        $region13: #{tpu_custom_call.1} parent=11 // pred_check
          %p498 = pneg %p79
        $region14: #{tpu_custom_call.1} parent=11 // pred_check_branch
          %500 = sbr.rel (%p498) target = $region16
        $region15: #{tpu_custom_call.1} parent=11 // pred_region
          _
        $region16: #{tpu_custom_call.1} parent=11 // pred_fallthru
          _
        // Predicated region
        $region17: #{tpu_custom_call.1} parent=11 // pred_check
          %p501 = pneg %p100
        $region18: #{tpu_custom_call.1} parent=11 // pred_check_branch
          %503 = sbr.rel (%p501) target = $region20
        $region19: #{tpu_custom_call.1} parent=11 // pred_region
          _
        $region20: #{tpu_custom_call.1} parent=11 // pred_fallthru
          _
        // Predicated region
        $region21: #{tpu_custom_call.1} parent=11 // pred_check
          %p504 = pneg %p121
        $region22: #{tpu_custom_call.1} parent=11 // pred_check_branch
          %506 = sbr.rel (%p504) target = $region24
        $region23: #{tpu_custom_call.1} parent=11 // pred_region
          _
        $region24: #{tpu_custom_call.1} parent=11 // pred_fallthru
          _
        // Predicated region
        $region25: #{tpu_custom_call.1} parent=11 // pred_check
          %p507 = pneg %p142
        $region26: #{tpu_custom_call.1} parent=11 // pred_check_branch
          %509 = sbr.rel (%p507) target = $region28
        $region27: #{tpu_custom_call.1} parent=11 // pred_region
          _
        $region28: #{tpu_custom_call.1} parent=11 // pred_fallthru
          _
        // Predicated region
        $region29: #{tpu_custom_call.1} parent=11 // pred_check
          %p510 = pneg %p163
        $region30: #{tpu_custom_call.1} parent=11 // pred_check_branch
          %512 = sbr.rel (%p510) target = $region32
        $region31: #{tpu_custom_call.1} parent=11 // pred_region
          _
        $region32: #{tpu_custom_call.1} parent=11 // pred_fallthru
          _
        // Predicated region
        $region33: #{tpu_custom_call.1} parent=11 // pred_check
          %p513 = pneg %p184
        $region34: #{tpu_custom_call.1} parent=11 // pred_check_branch
          %515 = sbr.rel (%p513) target = $region36
        $region35: #{tpu_custom_call.1} parent=11 // pred_region
          _
        $region36: #{tpu_custom_call.1} parent=11 // pred_fallthru
          _
        // Predicated region
        $region37: #{tpu_custom_call.1} parent=11 // pred_check
          %p516 = pneg %p205
        $region38: #{tpu_custom_call.1} parent=11 // pred_check_branch
          %518 = sbr.rel (%p516) target = $region40
        $region39: #{tpu_custom_call.1} parent=11 // pred_region
          _
        $region40: #{tpu_custom_call.1} parent=11 // pred_fallthru
          _
        // Predicated region
        $region41: #{tpu_custom_call.1} parent=11 // pred_check
          %p519 = pneg %p226
        $region42: #{tpu_custom_call.1} parent=11 // pred_check_branch
          %521 = sbr.rel (%p519) target = $region44
        $region43: #{tpu_custom_call.1} parent=11 // pred_region
          _
        $region44: #{tpu_custom_call.1} parent=11 // pred_fallthru
          _
        // Predicated region
        $region45: #{tpu_custom_call.1} parent=11 // pred_check
          %p522 = pneg %p247
        $region46: #{tpu_custom_call.1} parent=11 // pred_check_branch
          %524 = sbr.rel (%p522) target = $region48
        $region47: #{tpu_custom_call.1} parent=11 // pred_region
          _
        $region48: #{tpu_custom_call.1} parent=11 // pred_fallthru
          _
        // Predicated region
        $region49: #{tpu_custom_call.1} parent=11 // pred_check
          %p525 = pneg %p268
        $region50: #{tpu_custom_call.1} parent=11 // pred_check_branch
          %527 = sbr.rel (%p525) target = $region52
        $region51: #{tpu_custom_call.1} parent=11 // pred_region
          _
        $region52: #{tpu_custom_call.1} parent=11 // pred_fallthru
          _
        // Predicated region
        $region53: #{tpu_custom_call.1} parent=11 // pred_check
          %p528 = pneg %p289
        $region54: #{tpu_custom_call.1} parent=11 // pred_check_branch
          %530 = sbr.rel (%p528) target = $region56
        $region55: #{tpu_custom_call.1} parent=11 // pred_region
          _
        $region56: #{tpu_custom_call.1} parent=11 // pred_fallthru
          _
        // Predicated region
        $region57: #{tpu_custom_call.1} parent=11 // pred_check
          %p531 = pneg %p310
        $region58: #{tpu_custom_call.1} parent=11 // pred_check_branch
          %533 = sbr.rel (%p531) target = $region60
        $region59: #{tpu_custom_call.1} parent=11 // pred_region
          _
        $region60: #{tpu_custom_call.1} parent=11 // pred_fallthru
          _
        // Predicated region
        $region61: #{tpu_custom_call.1} parent=11 // pred_check
          %p534 = pneg %p331
        $region62: #{tpu_custom_call.1} parent=11 // pred_check_branch
          %536 = sbr.rel (%p534) target = $region64
        $region63: #{tpu_custom_call.1} parent=11 // pred_region
          _
        $region64: #{tpu_custom_call.1} parent=11 // pred_fallthru
          _
        // Predicated region
        $region65: #{tpu_custom_call.1} parent=11 // pred_check
          %p537 = pneg %p352
        $region66: #{tpu_custom_call.1} parent=11 // pred_check_branch
          %539 = sbr.rel (%p537) target = $region68
        $region67: #{tpu_custom_call.1} parent=11 // pred_region
          _
        $region68: #{tpu_custom_call.1} parent=11 // pred_fallthru
          _
        // Predicated region
        $region69: #{tpu_custom_call.1} parent=11 // pred_check
          %p540 = pneg %p373
        $region70: #{tpu_custom_call.1} parent=11 // pred_check_branch
          %542 = sbr.rel (%p540) target = $region72
        $region71: #{tpu_custom_call.1} parent=11 // pred_region
          _
        $region72: #{tpu_custom_call.1} parent=11 // pred_fallthru
          _
        // Predicated region
        $region73: #{tpu_custom_call.1} parent=11 // pred_check
          %p543 = pneg %p394
        $region74: #{tpu_custom_call.1} parent=11 // pred_check_branch
          %545 = sbr.rel (%p543) target = $region76
        $region75: #{tpu_custom_call.1} parent=11 // pred_region
          _
        $region76: #{tpu_custom_call.1} parent=11 // pred_fallthru
          _
        // Predicated region
        $region77: #{tpu_custom_call.1} parent=11 // pred_check
          %p546 = pneg %p415
        $region78: #{tpu_custom_call.1} parent=11 // pred_check_branch
          %548 = sbr.rel (%p546) target = $region80
        $region79: #{tpu_custom_call.1} parent=11 // pred_region
          _
        $region80: #{tpu_custom_call.1} parent=11 // pred_fallthru
          _
        // Predicated region
        $region81: #{tpu_custom_call.1} parent=11 // pred_check
          %p549 = pneg %p436
        $region82: #{tpu_custom_call.1} parent=11 // pred_check_branch
          %551 = sbr.rel (%p549) target = $region84
        $region83: #{tpu_custom_call.1} parent=11 // pred_region
          _
        $region84: #{tpu_custom_call.1} parent=11 // pred_fallthru
          _
        // Predicated region
        $region85: #{tpu_custom_call.1} parent=11 // pred_check
          %p552 = pneg %p457
        $region86: #{tpu_custom_call.1} parent=11 // pred_check_branch
          %554 = sbr.rel (%p552) target = $region88
        $region87: #{tpu_custom_call.1} parent=11 // pred_region
          _
        $region88: #{tpu_custom_call.1} parent=11 // pred_fallthru
          _
      $region12: #{tpu_custom_call.1} parent=5 // pred_fallthru
        _
      %p555 = scmp.lt.s32.totalorder %s32, 2
      // Predicated region
      $region89: #{tpu_custom_call.1} parent=5 // pred_check
        %p556 = pneg %p555
      $region90: #{tpu_custom_call.1} parent=5 // pred_check_branch
        %558 = sbr.rel (%p556) target = $region92
      $region91: #{tpu_custom_call.1} parent=5 // pred_region
        // Predicated region
        $region93: #{tpu_custom_call.1} parent=91 // pred_check
          %p559 = pneg %p52
        $region94: #{tpu_custom_call.1} parent=91 // pred_check_branch
          %561 = sbr.rel (%p559) target = $region96
        $region95: #{tpu_custom_call.1} parent=91 // pred_region
          %s562 = sand.u32 %s42, 1
          %s563 = scalar_lea.sflag [#allocation3], %s562
          %s564 = sand.u32 %s42, 1
          %s565 = smul.addr %s564, 512
          %s566 = scalar_lea.vmem [#allocation2], %s565
          %568 = vsyncadd %s563, 0
          %s569 = smul.addr %s32, 64
          %s570 = smul.addr %s569, 8
          %s571 = scalar_lea.hbm %s0, %s570
          %s572 = sshll.u32 %s571, 4
          %s573 = int_to_ptr.hbm [resolvable:$true] %s572
          %s574 = sshll.u32 %s566, 4
          %s575 = int_to_ptr.vmem [resolvable:$true] %s574
          %580 = dma.hbm_to_vmem [thread:$0]  %s573, 8192, %s575, %s563, 2048, 2048, 128
        $region96: #{tpu_custom_call.1} parent=91 // pred_fallthru
          _
      $region92: #{tpu_custom_call.1} parent=5 // pred_fallthru
        _
      %p581 = scmp.le.s32.totalorder 1, %s32
      %p582 = scmp.lt.s32.totalorder %s32, 3
      %p583 = pnand %p581, %p582
      %p584 = pneg %p583
      // Predicated region
      $region97: #{tpu_custom_call.1} parent=5 // pred_check
        _
      $region98: #{tpu_custom_call.1} parent=5 // pred_check_branch
        %586 = sbr.rel (%p583) target = $region100
      $region99: #{tpu_custom_call.1} parent=5 // pred_region
        %s587 = ssub.s32 %s32, 1
        %s588 = sand.u32 %s45, 1
        %s589 = scalar_lea.sflag [#allocation3], %s588
        %s590 = sand.u32 %s45, 1
        %s591 = smul.addr %s590, 512
        %s592 = scalar_lea.vmem [#allocation2], %s591
        // Predicated region
        $region101: #{tpu_custom_call.1} parent=99 // pred_check
          %p593 = pneg %p58
        $region102: #{tpu_custom_call.1} parent=99 // pred_check_branch
          %595 = sbr.rel (%p593) target = $region104
        $region103: #{tpu_custom_call.1} parent=99 // pred_region
          %597 = dma.done %s589, 8192
        $region104: #{tpu_custom_call.1} parent=99 // pred_fallthru
          _
        %s598 = sand.u32 %s45, 1
        %s599 = scalar_lea.sflag [#allocation3], %s598
        %s600 = sand.u32 %s45, 1
        %s601 = smul.addr %s600, 512
        %s602 = scalar_lea.vmem [#allocation2], %s601
        %p603 = pneg %p58
        %p604 = pneg %p55
        %p605 = pneg %p79
        %p606 = pneg %p76
        %p607 = pneg %p100
        %p608 = pneg %p97
        %p609 = pneg %p121
        %p610 = pneg %p118
        %p611 = pneg %p142
        %p612 = pneg %p139
        %p613 = pneg %p163
        %p614 = pneg %p160
        %p615 = pneg %p184
        %p616 = pneg %p181
        %p617 = pneg %p205
        %p618 = pneg %p202
        %p619 = pneg %p226
        %p620 = pneg %p223
        %p621 = pneg %p247
        %p622 = pneg %p244
        %p623 = pneg %p268
        %p624 = pneg %p265
        %p625 = pneg %p289
        %p626 = pneg %p286
        %p627 = pneg %p310
        %p628 = pneg %p307
        %p629 = pneg %p331
        %p630 = pneg %p328
        %p631 = pneg %p352
        %p632 = pneg %p349
        %p633 = pneg %p373
        %p634 = pneg %p370
        %p635 = pneg %p394
        %p636 = pneg %p391
        %p637 = pneg %p415
        %p638 = pneg %p412
        %p639 = pneg %p436
        %p640 = pneg %p433
        %p641 = pneg %p457
        %p642 = pneg %p454
        %p643 = pneg %p483
        %p644 = pneg %p480
        %s645 = sand.u32 %s470, 1
        %s646 = scalar_lea.sflag [#allocation4], %s645
        %s647 = sand.u32 %s470, 1
        %s648 = smul.addr %s647, 512
        %s649 = scalar_lea.vmem [#allocation5], %s648
        %v650 = vld [vmem:[%s592] sm:$0xff]
        %v651 = vld [vmem:[%s592 + $0x8] sm:$0xff]
        %v652 = vld [vmem:[%s592 + $0x10] sm:$0xff]
        %v653 = vld [vmem:[%s592 + $0x18] sm:$0xff]
        %v654 = vld [vmem:[%s592 + $0x20] sm:$0xff]
        %v655 = vld [vmem:[%s592 + $0x28] sm:$0xff]
        %v656 = vld [vmem:[%s592 + $0x30] sm:$0xff]
        %v657 = vld [vmem:[%s592 + $0x38] sm:$0xff]
        %v658 = vld [vmem:[%s592 + $0x40] sm:$0xff]
        %v659 = vld [vmem:[%s592 + $0x48] sm:$0xff]
        %v660 = vld [vmem:[%s592 + $0x50] sm:$0xff]
        %v661 = vld [vmem:[%s592 + $0x58] sm:$0xff]
        %v662 = vld [vmem:[%s592 + $0x60] sm:$0xff]
        %v663 = vld [vmem:[%s592 + $0x68] sm:$0xff]
        %v664 = vld [vmem:[%s592 + $0x70] sm:$0xff]
        %v665 = vld [vmem:[%s592 + $0x78] sm:$0xff]
        %v666 = vld [vmem:[%s592 + $0x80] sm:$0xff]
        %v667 = vld [vmem:[%s592 + $0x88] sm:$0xff]
        %v668 = vld [vmem:[%s592 + $0x90] sm:$0xff]
        %v669 = vld [vmem:[%s592 + $0x98] sm:$0xff]
        %v670 = vld [vmem:[%s592 + $0xa0] sm:$0xff]
        %v671 = vld [vmem:[%s592 + $0xa8] sm:$0xff]
        %v672 = vld [vmem:[%s592 + $0xb0] sm:$0xff]
        %v673 = vld [vmem:[%s592 + $0xb8] sm:$0xff]
        %v674 = vld [vmem:[%s592 + $0xc0] sm:$0xff]
        %v675 = vld [vmem:[%s592 + $0xc8] sm:$0xff]
        %v676 = vld [vmem:[%s592 + $0xd0] sm:$0xff]
        %v677 = vld [vmem:[%s592 + $0xd8] sm:$0xff]
        %v678 = vld [vmem:[%s592 + $0xe0] sm:$0xff]
        %v679 = vld [vmem:[%s592 + $0xe8] sm:$0xff]
        %v680 = vld [vmem:[%s592 + $0xf0] sm:$0xff]
        %v681 = vld [vmem:[%s592 + $0xf8] sm:$0xff]
        %v682 = vld [vmem:[%s592 + $0x100] sm:$0xff]
        %v683 = vld [vmem:[%s592 + $0x108] sm:$0xff]
        %v684 = vld [vmem:[%s592 + $0x110] sm:$0xff]
        %v685 = vld [vmem:[%s592 + $0x118] sm:$0xff]
        %v686 = vld [vmem:[%s592 + $0x120] sm:$0xff]
        %v687 = vld [vmem:[%s592 + $0x128] sm:$0xff]
        %v688 = vld [vmem:[%s592 + $0x130] sm:$0xff]
        %v689 = vld [vmem:[%s592 + $0x138] sm:$0xff]
        %v690 = vld [vmem:[%s592 + $0x140] sm:$0xff]
        %v691 = vld [vmem:[%s592 + $0x148] sm:$0xff]
        %v692 = vld [vmem:[%s592 + $0x150] sm:$0xff]
        %v693 = vld [vmem:[%s592 + $0x158] sm:$0xff]
        %v694 = vld [vmem:[%s592 + $0x160] sm:$0xff]
        %v695 = vld [vmem:[%s592 + $0x168] sm:$0xff]
        %v696 = vld [vmem:[%s592 + $0x170] sm:$0xff]
        %v697 = vld [vmem:[%s592 + $0x178] sm:$0xff]
        %v698 = vld [vmem:[%s592 + $0x180] sm:$0xff]
        %v699 = vld [vmem:[%s592 + $0x188] sm:$0xff]
        %v700 = vld [vmem:[%s592 + $0x190] sm:$0xff]
        %v701 = vld [vmem:[%s592 + $0x198] sm:$0xff]
        %v702 = vld [vmem:[%s592 + $0x1a0] sm:$0xff]
        %v703 = vld [vmem:[%s592 + $0x1a8] sm:$0xff]
        %v704 = vld [vmem:[%s592 + $0x1b0] sm:$0xff]
        %v705 = vld [vmem:[%s592 + $0x1b8] sm:$0xff]
        %v706 = vld [vmem:[%s592 + $0x1c0] sm:$0xff]
        %v707 = vld [vmem:[%s592 + $0x1c8] sm:$0xff]
        %v708 = vld [vmem:[%s592 + $0x1d0] sm:$0xff]
        %v709 = vld [vmem:[%s592 + $0x1d8] sm:$0xff]
        %v710 = vld [vmem:[%s592 + $0x1e0] sm:$0xff]
        %v711 = vld [vmem:[%s592 + $0x1e8] sm:$0xff]
        %v712 = vld [vmem:[%s592 + $0x1f0] sm:$0xff]
        %v713 = vld [vmem:[%s592 + $0x1f8] sm:$0xff]
        %v714 = vadd.f32 %v650, %v651
        %v715 = vadd.f32 %v714, %v652
        %v716 = vadd.f32 %v715, %v653
        %v717 = vadd.f32 %v716, %v654
        %v718 = vadd.f32 %v717, %v655
        %v719 = vadd.f32 %v718, %v656
        %v720 = vadd.f32 %v719, %v657
        %v721 = vadd.f32 %v720, %v658
        %v722 = vadd.f32 %v721, %v659
        %v723 = vadd.f32 %v722, %v660
        %v724 = vadd.f32 %v723, %v661
        %v725 = vadd.f32 %v724, %v662
        %v726 = vadd.f32 %v725, %v663
        %v727 = vadd.f32 %v726, %v664
        %v728 = vadd.f32 %v727, %v665
        %729 = vadd.xlane.f32.xlu0 %v728
        %v730 = vpop.xlane.xlu0 %729
        %v731 = vadd.f32 %v666, %v667
        %v732 = vadd.f32 %v731, %v668
        %v733 = vadd.f32 %v732, %v669
        %v734 = vadd.f32 %v733, %v670
        %v735 = vadd.f32 %v734, %v671
        %v736 = vadd.f32 %v735, %v672
        %v737 = vadd.f32 %v736, %v673
        %v738 = vadd.f32 %v737, %v674
        %v739 = vadd.f32 %v738, %v675
        %v740 = vadd.f32 %v739, %v676
        %v741 = vadd.f32 %v740, %v677
        %v742 = vadd.f32 %v741, %v678
        %v743 = vadd.f32 %v742, %v679
        %v744 = vadd.f32 %v743, %v680
        %v745 = vadd.f32 %v744, %v681
        %746 = vadd.xlane.f32.xlu0 %v745
        %v747 = vpop.xlane.xlu0 %746
        %v748 = vadd.f32 %v682, %v683
        %v749 = vadd.f32 %v748, %v684
        %v750 = vadd.f32 %v749, %v685
        %v751 = vadd.f32 %v750, %v686
        %v752 = vadd.f32 %v751, %v687
        %v753 = vadd.f32 %v752, %v688
        %v754 = vadd.f32 %v753, %v689
        %v755 = vadd.f32 %v754, %v690
        %v756 = vadd.f32 %v755, %v691
        %v757 = vadd.f32 %v756, %v692
        %v758 = vadd.f32 %v757, %v693
        %v759 = vadd.f32 %v758, %v694
        %v760 = vadd.f32 %v759, %v695
        %v761 = vadd.f32 %v760, %v696
        %v762 = vadd.f32 %v761, %v697
        %763 = vadd.xlane.f32.xlu0 %v762
        %v764 = vpop.xlane.xlu0 %763
        %v765 = vadd.f32 %v698, %v699
        %v766 = vadd.f32 %v765, %v700
        %v767 = vadd.f32 %v766, %v701
        %v768 = vadd.f32 %v767, %v702
        %v769 = vadd.f32 %v768, %v703
        %v770 = vadd.f32 %v769, %v704
        %v771 = vadd.f32 %v770, %v705
        %v772 = vadd.f32 %v771, %v706
        %v773 = vadd.f32 %v772, %v707
        %v774 = vadd.f32 %v773, %v708
        %v775 = vadd.f32 %v774, %v709
        %v776 = vadd.f32 %v775, %v710
        %v777 = vadd.f32 %v776, %v711
        %v778 = vadd.f32 %v777, %v712
        %v779 = vadd.f32 %v778, %v713
        %780 = vadd.xlane.f32.xlu0 %v779
        %v781 = vpop.xlane.xlu0 %780
        %782 = vadd.xlane.f32.xlu0 %v714
        %v783 = vpop.xlane.xlu0 %782
        %784 = vadd.xlane.f32.xlu0 %v731
        %v785 = vpop.xlane.xlu0 %784
        %786 = vadd.xlane.f32.xlu0 %v748
        %v787 = vpop.xlane.xlu0 %786
        %788 = vadd.xlane.f32.xlu0 %v765
        %v789 = vpop.xlane.xlu0 %788
        %v790 = vadd.f32 %v730, %v783
        %v791 = vadd.f32 %v747, %v785
        %v792 = vadd.f32 %v764, %v787
        %v793 = vadd.f32 %v781, %v789
        %v794 = vadd.f32 %v664, %v665
        %795 = vadd.xlane.f32.xlu0 %v794
        %v796 = vpop.xlane.xlu0 %795
        %v797 = vadd.f32 %v680, %v681
        %798 = vadd.xlane.f32.xlu0 %v797
        %v799 = vpop.xlane.xlu0 %798
        %v800 = vadd.f32 %v696, %v697
        %801 = vadd.xlane.f32.xlu0 %v800
        %v802 = vpop.xlane.xlu0 %801
        %v803 = vadd.f32 %v712, %v713
        %804 = vadd.xlane.f32.xlu0 %v803
        %v805 = vpop.xlane.xlu0 %804
        %v806 = vadd.f32 %v790, %v796
        %v807 = vadd.f32 %v791, %v799
        %v808 = vadd.f32 %v792, %v802
        %v809 = vadd.f32 %v793, %v805
        %v810 = vmul.f32 %v650, %v650
        %v811 = vmul.f32 %v651, %v651
        %v812 = vmul.f32 %v652, %v652
        %v813 = vmul.f32 %v653, %v653
        %v814 = vmul.f32 %v654, %v654
        %v815 = vmul.f32 %v655, %v655
        %v816 = vmul.f32 %v656, %v656
        %v817 = vmul.f32 %v657, %v657
        %v818 = vmul.f32 %v658, %v658
        %v819 = vmul.f32 %v659, %v659
        %v820 = vmul.f32 %v660, %v660
        %v821 = vmul.f32 %v661, %v661
        %v822 = vmul.f32 %v662, %v662
        %v823 = vmul.f32 %v663, %v663
        %v824 = vmul.f32 %v664, %v664
        %v825 = vmul.f32 %v665, %v665
        %v826 = vmul.f32 %v666, %v666
        %v827 = vmul.f32 %v667, %v667
        %v828 = vmul.f32 %v668, %v668
        %v829 = vmul.f32 %v669, %v669
        %v830 = vmul.f32 %v670, %v670
        %v831 = vmul.f32 %v671, %v671
        %v832 = vmul.f32 %v672, %v672
        %v833 = vmul.f32 %v673, %v673
        %v834 = vmul.f32 %v674, %v674
        %v835 = vmul.f32 %v675, %v675
        %v836 = vmul.f32 %v676, %v676
        %v837 = vmul.f32 %v677, %v677
        %v838 = vmul.f32 %v678, %v678
        %v839 = vmul.f32 %v679, %v679
        %v840 = vmul.f32 %v680, %v680
        %v841 = vmul.f32 %v681, %v681
        %v842 = vmul.f32 %v682, %v682
        %v843 = vmul.f32 %v683, %v683
        %v844 = vmul.f32 %v684, %v684
        %v845 = vmul.f32 %v685, %v685
        %v846 = vmul.f32 %v686, %v686
        %v847 = vmul.f32 %v687, %v687
        %v848 = vmul.f32 %v688, %v688
        %v849 = vmul.f32 %v689, %v689
        %v850 = vmul.f32 %v690, %v690
        %v851 = vmul.f32 %v691, %v691
        %v852 = vmul.f32 %v692, %v692
        %v853 = vmul.f32 %v693, %v693
        %v854 = vmul.f32 %v694, %v694
        %v855 = vmul.f32 %v695, %v695
        %v856 = vmul.f32 %v696, %v696
        %v857 = vmul.f32 %v697, %v697
        %v858 = vmul.f32 %v698, %v698
        %v859 = vmul.f32 %v699, %v699
        %v860 = vmul.f32 %v700, %v700
        %v861 = vmul.f32 %v701, %v701
        %v862 = vmul.f32 %v702, %v702
        %v863 = vmul.f32 %v703, %v703
        %v864 = vmul.f32 %v704, %v704
        %v865 = vmul.f32 %v705, %v705
        %v866 = vmul.f32 %v706, %v706
        %v867 = vmul.f32 %v707, %v707
        %v868 = vmul.f32 %v708, %v708
        %v869 = vmul.f32 %v709, %v709
        %v870 = vmul.f32 %v710, %v710
        %v871 = vmul.f32 %v711, %v711
        %v872 = vmul.f32 %v712, %v712
        %v873 = vmul.f32 %v713, %v713
        %v874 = vadd.f32 %v810, %v811
        %v875 = vadd.f32 %v874, %v812
        %v876 = vadd.f32 %v875, %v813
        %v877 = vadd.f32 %v876, %v814
        %v878 = vadd.f32 %v877, %v815
        %v879 = vadd.f32 %v878, %v816
        %v880 = vadd.f32 %v879, %v817
        %v881 = vadd.f32 %v880, %v818
        %v882 = vadd.f32 %v881, %v819
        %v883 = vadd.f32 %v882, %v820
        %v884 = vadd.f32 %v883, %v821
        %v885 = vadd.f32 %v884, %v822
        %v886 = vadd.f32 %v885, %v823
        %v887 = vadd.f32 %v886, %v824
        %v888 = vadd.f32 %v887, %v825
        %889 = vadd.xlane.f32.xlu0 %v888
        %v890 = vpop.xlane.xlu0 %889
        %v891 = vadd.f32 %v826, %v827
        %v892 = vadd.f32 %v891, %v828
        %v893 = vadd.f32 %v892, %v829
        %v894 = vadd.f32 %v893, %v830
        %v895 = vadd.f32 %v894, %v831
        %v896 = vadd.f32 %v895, %v832
        %v897 = vadd.f32 %v896, %v833
        %v898 = vadd.f32 %v897, %v834
        %v899 = vadd.f32 %v898, %v835
        %v900 = vadd.f32 %v899, %v836
        %v901 = vadd.f32 %v900, %v837
        %v902 = vadd.f32 %v901, %v838
        %v903 = vadd.f32 %v902, %v839
        %v904 = vadd.f32 %v903, %v840
        %v905 = vadd.f32 %v904, %v841
        %906 = vadd.xlane.f32.xlu0 %v905
        %v907 = vpop.xlane.xlu0 %906
        %v908 = vadd.f32 %v842, %v843
        %v909 = vadd.f32 %v908, %v844
        %v910 = vadd.f32 %v909, %v845
        %v911 = vadd.f32 %v910, %v846
        %v912 = vadd.f32 %v911, %v847
        %v913 = vadd.f32 %v912, %v848
        %v914 = vadd.f32 %v913, %v849
        %v915 = vadd.f32 %v914, %v850
        %v916 = vadd.f32 %v915, %v851
        %v917 = vadd.f32 %v916, %v852
        %v918 = vadd.f32 %v917, %v853
        %v919 = vadd.f32 %v918, %v854
        %v920 = vadd.f32 %v919, %v855
        %v921 = vadd.f32 %v920, %v856
        %v922 = vadd.f32 %v921, %v857
        %923 = vadd.xlane.f32.xlu0 %v922
        %v924 = vpop.xlane.xlu0 %923
        %v925 = vadd.f32 %v858, %v859
        %v926 = vadd.f32 %v925, %v860
        %v927 = vadd.f32 %v926, %v861
        %v928 = vadd.f32 %v927, %v862
        %v929 = vadd.f32 %v928, %v863
        %v930 = vadd.f32 %v929, %v864
        %v931 = vadd.f32 %v930, %v865
        %v932 = vadd.f32 %v931, %v866
        %v933 = vadd.f32 %v932, %v867
        %v934 = vadd.f32 %v933, %v868
        %v935 = vadd.f32 %v934, %v869
        %v936 = vadd.f32 %v935, %v870
        %v937 = vadd.f32 %v936, %v871
        %v938 = vadd.f32 %v937, %v872
        %v939 = vadd.f32 %v938, %v873
        %940 = vadd.xlane.f32.xlu0 %v939
        %v941 = vpop.xlane.xlu0 %940
        %942 = vadd.xlane.f32.xlu0 %v874
        %v943 = vpop.xlane.xlu0 %942
        %944 = vadd.xlane.f32.xlu0 %v891
        %v945 = vpop.xlane.xlu0 %944
        %946 = vadd.xlane.f32.xlu0 %v908
        %v947 = vpop.xlane.xlu0 %946
        %948 = vadd.xlane.f32.xlu0 %v925
        %v949 = vpop.xlane.xlu0 %948
        %v950 = vadd.f32 %v890, %v943
        %v951 = vadd.f32 %v907, %v945
        %v952 = vadd.f32 %v924, %v947
        %v953 = vadd.f32 %v941, %v949
        %v954 = vadd.f32 %v824, %v825
        %955 = vadd.xlane.f32.xlu0 %v954
        %v956 = vpop.xlane.xlu0 %955
        %v957 = vadd.f32 %v840, %v841
        %958 = vadd.xlane.f32.xlu0 %v957
        %v959 = vpop.xlane.xlu0 %958
        %v960 = vadd.f32 %v856, %v857
        %961 = vadd.xlane.f32.xlu0 %v960
        %v962 = vpop.xlane.xlu0 %961
        %v963 = vadd.f32 %v872, %v873
        %964 = vadd.xlane.f32.xlu0 %v963
        %v965 = vpop.xlane.xlu0 %964
        %v966 = vadd.f32 %v950, %v956
        %v967 = vadd.f32 %v951, %v959
        %v968 = vadd.f32 %v952, %v962
        %v969 = vadd.f32 %v953, %v965
        %v970 = vrcp.pop 2560.0
        %v971 = vmul.f32 2560.0, %v970
        %v972 = vsub.f32 1.0, %v971
        %v973 = vmul.f32 %v970, %v972
        %v974 = vadd.f32 %v970, %v973
        %vm975 = vweird.f32 %v970
        %v976 = vsel %vm975, %v970, %v974
        %v977 = vmul.f32 %v806, %v976
        %v978 = vmul.f32 %v807, %v976
        %v979 = vmul.f32 %v808, %v976
        %v980 = vmul.f32 %v809, %v976
        %v981 = vmul.f32 %v966, %v976
        %v982 = vmul.f32 %v967, %v976
        %v983 = vmul.f32 %v968, %v976
        %v984 = vmul.f32 %v969, %v976
        %v985 = vmul.f32 %v977, %v977
        %v986 = vmul.f32 %v978, %v978
        %v987 = vmul.f32 %v979, %v979
        %v988 = vmul.f32 %v980, %v980
        %v989 = vsub.f32 %v981, %v985
        %v990 = vsub.f32 %v982, %v986
        %v991 = vsub.f32 %v983, %v987
        %v992 = vsub.f32 %v984, %v988
        %v993 = vadd.f32 %v989, 1e-05
        %v994 = vadd.f32 %v990, 1e-05
        %v995 = vadd.f32 %v991, 1e-05
        %v996 = vadd.f32 %v992, 1e-05
        %v997 = vrsqrt.pop %v993
        %v998 = vmul.f32 %v997, %v993
        %v999 = vmul.f32 %v998, %v997
        %v1000 = vmul.f32 0.5, %v999
        %v1001 = vsub.f32 1.5, %v1000
        %v1002 = vmul.f32 %v997, %v1001
        %vm1003 = vweird.f32 %v993
        %vm1004 = vweird.f32 %v997
        %vm1005 = vmor %vm1003, %vm1004
        %v1006 = vsel %vm1005, %v997, %v1002
        %v1007 = vrsqrt.pop %v994
        %v1008 = vmul.f32 %v1007, %v994
        %v1009 = vmul.f32 %v1008, %v1007
        %v1010 = vmul.f32 0.5, %v1009
        %v1011 = vsub.f32 1.5, %v1010
        %v1012 = vmul.f32 %v1007, %v1011
        %vm1013 = vweird.f32 %v994
        %vm1014 = vweird.f32 %v1007
        %vm1015 = vmor %vm1013, %vm1014
        %v1016 = vsel %vm1015, %v1007, %v1012
        %v1017 = vrsqrt.pop %v995
        %v1018 = vmul.f32 %v1017, %v995
        %v1019 = vmul.f32 %v1018, %v1017
        %v1020 = vmul.f32 0.5, %v1019
        %v1021 = vsub.f32 1.5, %v1020
        %v1022 = vmul.f32 %v1017, %v1021
        %vm1023 = vweird.f32 %v995
        %vm1024 = vweird.f32 %v1017
        %vm1025 = vmor %vm1023, %vm1024
        %v1026 = vsel %vm1025, %v1017, %v1022
        %v1027 = vrsqrt.pop %v996
        %v1028 = vmul.f32 %v1027, %v996
        %v1029 = vmul.f32 %v1028, %v1027
        %v1030 = vmul.f32 0.5, %v1029
        %v1031 = vsub.f32 1.5, %v1030
        %v1032 = vmul.f32 %v1027, %v1031
        %vm1033 = vweird.f32 %v996
        %vm1034 = vweird.f32 %v1027
        %vm1035 = vmor %vm1033, %vm1034
        %v1036 = vsel %vm1035, %v1027, %v1032
        %v1037 = vld [vmem:[%s6] sm:$0xff]
        %v1038 = vld [vmem:[%s6 + $0x8] sm:$0xff]
        %v1039 = vld [vmem:[%s6 + $0x10] sm:$0xff]
        %v1040 = vld [vmem:[%s6 + $0x18] sm:$0xff]
        %v1041 = vmul.f32 %v1006, %v1037
        %v1042 = vmul.f32 %v1016, %v1038
        %v1043 = vmul.f32 %v1026, %v1039
        %v1044 = vmul.f32 %v1036, %v1040
        %v1045 = vld [vmem:[%s7] sm:$0xff]
        %v1046 = vld [vmem:[%s7 + $0x8] sm:$0xff]
        %v1047 = vld [vmem:[%s7 + $0x10] sm:$0xff]
        %v1048 = vld [vmem:[%s7 + $0x18] sm:$0xff]
        %v1049 = vmul.f32 %v977, %v1041
        %v1050 = vmul.f32 %v978, %v1042
        %v1051 = vmul.f32 %v979, %v1043
        %v1052 = vmul.f32 %v980, %v1044
        %v1053 = vsub.f32 %v1045, %v1049
        %v1054 = vsub.f32 %v1046, %v1050
        %v1055 = vsub.f32 %v1047, %v1051
        %v1056 = vsub.f32 %v1048, %v1052
        %1058 = vset.pattern.permute.xlu0 0
        %1059 = vperm.xlu0 %1058, %v1041
        %v1060 = vpop.permute.xlu0 %1059
        %1063 = vset.pattern.permute.xlu0 0
        %1064 = vperm.xlu0 %1063, %v1042
        %v1065 = vpop.permute.xlu0 %1064
        %1068 = vset.pattern.permute.xlu0 0
        %1069 = vperm.xlu0 %1068, %v1043
        %v1070 = vpop.permute.xlu0 %1069
        %1073 = vset.pattern.permute.xlu0 0
        %1074 = vperm.xlu0 %1073, %v1044
        %v1075 = vpop.permute.xlu0 %1074
        %v1077 = vmul.f32 %v650, %v1060
        %v1078 = vmul.f32 %v651, %v1060
        %v1079 = vmul.f32 %v652, %v1060
        %v1080 = vmul.f32 %v653, %v1060
        %v1081 = vmul.f32 %v654, %v1060
        %v1082 = vmul.f32 %v655, %v1060
        %v1083 = vmul.f32 %v656, %v1060
        %v1084 = vmul.f32 %v657, %v1060
        %v1085 = vmul.f32 %v658, %v1060
        %v1086 = vmul.f32 %v659, %v1060
        %v1087 = vmul.f32 %v660, %v1060
        %v1088 = vmul.f32 %v661, %v1060
        %v1089 = vmul.f32 %v662, %v1060
        %v1090 = vmul.f32 %v663, %v1060
        %v1091 = vmul.f32 %v664, %v1060
        %v1092 = vmul.f32 %v665, %v1060
        %v1093 = vmul.f32 %v666, %v1065
        %v1094 = vmul.f32 %v667, %v1065
        %v1095 = vmul.f32 %v668, %v1065
        %v1096 = vmul.f32 %v669, %v1065
        %v1097 = vmul.f32 %v670, %v1065
        %v1098 = vmul.f32 %v671, %v1065
        %v1099 = vmul.f32 %v672, %v1065
        %v1100 = vmul.f32 %v673, %v1065
        %v1101 = vmul.f32 %v674, %v1065
        %v1102 = vmul.f32 %v675, %v1065
        %v1103 = vmul.f32 %v676, %v1065
        %v1104 = vmul.f32 %v677, %v1065
        %v1105 = vmul.f32 %v678, %v1065
        %v1106 = vmul.f32 %v679, %v1065
        %v1107 = vmul.f32 %v680, %v1065
        %v1108 = vmul.f32 %v681, %v1065
        %v1109 = vmul.f32 %v682, %v1070
        %v1110 = vmul.f32 %v683, %v1070
        %v1111 = vmul.f32 %v684, %v1070
        %v1112 = vmul.f32 %v685, %v1070
        %v1113 = vmul.f32 %v686, %v1070
        %v1114 = vmul.f32 %v687, %v1070
        %v1115 = vmul.f32 %v688, %v1070
        %v1116 = vmul.f32 %v689, %v1070
        %v1117 = vmul.f32 %v690, %v1070
        %v1118 = vmul.f32 %v691, %v1070
        %v1119 = vmul.f32 %v692, %v1070
        %v1120 = vmul.f32 %v693, %v1070
        %v1121 = vmul.f32 %v694, %v1070
        %v1122 = vmul.f32 %v695, %v1070
        %v1123 = vmul.f32 %v696, %v1070
        %v1124 = vmul.f32 %v697, %v1070
        %v1125 = vmul.f32 %v698, %v1075
        %v1126 = vmul.f32 %v699, %v1075
        %v1127 = vmul.f32 %v700, %v1075
        %v1128 = vmul.f32 %v701, %v1075
        %v1129 = vmul.f32 %v702, %v1075
        %v1130 = vmul.f32 %v703, %v1075
        %v1131 = vmul.f32 %v704, %v1075
        %v1132 = vmul.f32 %v705, %v1075
        %v1133 = vmul.f32 %v706, %v1075
        %v1134 = vmul.f32 %v707, %v1075
        %v1135 = vmul.f32 %v708, %v1075
        %v1136 = vmul.f32 %v709, %v1075
        %v1137 = vmul.f32 %v710, %v1075
        %v1138 = vmul.f32 %v711, %v1075
        %v1139 = vmul.f32 %v712, %v1075
        %v1140 = vmul.f32 %v713, %v1075
        %1142 = vset.pattern.permute.xlu0 0
        %1143 = vperm.xlu0 %1142, %v1053
        %v1144 = vpop.permute.xlu0 %1143
        %1147 = vset.pattern.permute.xlu0 0
        %1148 = vperm.xlu0 %1147, %v1054
        %v1149 = vpop.permute.xlu0 %1148
        %1152 = vset.pattern.permute.xlu0 0
        %1153 = vperm.xlu0 %1152, %v1055
        %v1154 = vpop.permute.xlu0 %1153
        %1157 = vset.pattern.permute.xlu0 0
        %1158 = vperm.xlu0 %1157, %v1056
        %v1159 = vpop.permute.xlu0 %1158
        %v1161 = vadd.f32 %v1077, %v1144
        %v1162 = vadd.f32 %v1078, %v1144
        %v1163 = vadd.f32 %v1079, %v1144
        %v1164 = vadd.f32 %v1080, %v1144
        %v1165 = vadd.f32 %v1081, %v1144
        %v1166 = vadd.f32 %v1082, %v1144
        %v1167 = vadd.f32 %v1083, %v1144
        %v1168 = vadd.f32 %v1084, %v1144
        %v1169 = vadd.f32 %v1085, %v1144
        %v1170 = vadd.f32 %v1086, %v1144
        %v1171 = vadd.f32 %v1087, %v1144
        %v1172 = vadd.f32 %v1088, %v1144
        %v1173 = vadd.f32 %v1089, %v1144
        %v1174 = vadd.f32 %v1090, %v1144
        %v1175 = vadd.f32 %v1091, %v1144
        %v1176 = vadd.f32 %v1092, %v1144
        %v1177 = vadd.f32 %v1093, %v1149
        %v1178 = vadd.f32 %v1094, %v1149
        %v1179 = vadd.f32 %v1095, %v1149
        %v1180 = vadd.f32 %v1096, %v1149
        %v1181 = vadd.f32 %v1097, %v1149
        %v1182 = vadd.f32 %v1098, %v1149
        %v1183 = vadd.f32 %v1099, %v1149
        %v1184 = vadd.f32 %v1100, %v1149
        %v1185 = vadd.f32 %v1101, %v1149
        %v1186 = vadd.f32 %v1102, %v1149
        %v1187 = vadd.f32 %v1103, %v1149
        %v1188 = vadd.f32 %v1104, %v1149
        %v1189 = vadd.f32 %v1105, %v1149
        %v1190 = vadd.f32 %v1106, %v1149
        %v1191 = vadd.f32 %v1107, %v1149
        %v1192 = vadd.f32 %v1108, %v1149
        %v1193 = vadd.f32 %v1109, %v1154
        %v1194 = vadd.f32 %v1110, %v1154
        %v1195 = vadd.f32 %v1111, %v1154
        %v1196 = vadd.f32 %v1112, %v1154
        %v1197 = vadd.f32 %v1113, %v1154
        %v1198 = vadd.f32 %v1114, %v1154
        %v1199 = vadd.f32 %v1115, %v1154
        %v1200 = vadd.f32 %v1116, %v1154
        %v1201 = vadd.f32 %v1117, %v1154
        %v1202 = vadd.f32 %v1118, %v1154
        %v1203 = vadd.f32 %v1119, %v1154
        %v1204 = vadd.f32 %v1120, %v1154
        %v1205 = vadd.f32 %v1121, %v1154
        %v1206 = vadd.f32 %v1122, %v1154
        %v1207 = vadd.f32 %v1123, %v1154
        %v1208 = vadd.f32 %v1124, %v1154
        %v1209 = vadd.f32 %v1125, %v1159
        %v1210 = vadd.f32 %v1126, %v1159
        %v1211 = vadd.f32 %v1127, %v1159
        %v1212 = vadd.f32 %v1128, %v1159
        %v1213 = vadd.f32 %v1129, %v1159
        %v1214 = vadd.f32 %v1130, %v1159
        %v1215 = vadd.f32 %v1131, %v1159
        %v1216 = vadd.f32 %v1132, %v1159
        %v1217 = vadd.f32 %v1133, %v1159
        %v1218 = vadd.f32 %v1134, %v1159
        %v1219 = vadd.f32 %v1135, %v1159
        %v1220 = vadd.f32 %v1136, %v1159
        %v1221 = vadd.f32 %v1137, %v1159
        %v1222 = vadd.f32 %v1138, %v1159
        %v1223 = vadd.f32 %v1139, %v1159
        %v1224 = vadd.f32 %v1140, %v1159
        %v1225 = vmul.f32 %v1161, 0.5
        %v1226 = vmul.f32 %v1162, 0.5
        %v1227 = vmul.f32 %v1163, 0.5
        %v1228 = vmul.f32 %v1164, 0.5
        %v1229 = vmul.f32 %v1165, 0.5
        %v1230 = vmul.f32 %v1166, 0.5
        %v1231 = vmul.f32 %v1167, 0.5
        %v1232 = vmul.f32 %v1168, 0.5
        %v1233 = vmul.f32 %v1169, 0.5
        %v1234 = vmul.f32 %v1170, 0.5
        %v1235 = vmul.f32 %v1171, 0.5
        %v1236 = vmul.f32 %v1172, 0.5
        %v1237 = vmul.f32 %v1173, 0.5
        %v1238 = vmul.f32 %v1174, 0.5
        %v1239 = vmul.f32 %v1175, 0.5
        %v1240 = vmul.f32 %v1176, 0.5
        %v1241 = vmul.f32 %v1177, 0.5
        %v1242 = vmul.f32 %v1178, 0.5
        %v1243 = vmul.f32 %v1179, 0.5
        %v1244 = vmul.f32 %v1180, 0.5
        %v1245 = vmul.f32 %v1181, 0.5
        %v1246 = vmul.f32 %v1182, 0.5
        %v1247 = vmul.f32 %v1183, 0.5
        %v1248 = vmul.f32 %v1184, 0.5
        %v1249 = vmul.f32 %v1185, 0.5
        %v1250 = vmul.f32 %v1186, 0.5
        %v1251 = vmul.f32 %v1187, 0.5
        %v1252 = vmul.f32 %v1188, 0.5
        %v1253 = vmul.f32 %v1189, 0.5
        %v1254 = vmul.f32 %v1190, 0.5
        %v1255 = vmul.f32 %v1191, 0.5
        %v1256 = vmul.f32 %v1192, 0.5
        %v1257 = vmul.f32 %v1193, 0.5
        %v1258 = vmul.f32 %v1194, 0.5
        %v1259 = vmul.f32 %v1195, 0.5
        %v1260 = vmul.f32 %v1196, 0.5
        %v1261 = vmul.f32 %v1197, 0.5
        %v1262 = vmul.f32 %v1198, 0.5
        %v1263 = vmul.f32 %v1199, 0.5
        %v1264 = vmul.f32 %v1200, 0.5
        %v1265 = vmul.f32 %v1201, 0.5
        %v1266 = vmul.f32 %v1202, 0.5
        %v1267 = vmul.f32 %v1203, 0.5
        %v1268 = vmul.f32 %v1204, 0.5
        %v1269 = vmul.f32 %v1205, 0.5
        %v1270 = vmul.f32 %v1206, 0.5
        %v1271 = vmul.f32 %v1207, 0.5
        %v1272 = vmul.f32 %v1208, 0.5
        %v1273 = vmul.f32 %v1209, 0.5
        %v1274 = vmul.f32 %v1210, 0.5
        %v1275 = vmul.f32 %v1211, 0.5
        %v1276 = vmul.f32 %v1212, 0.5
        %v1277 = vmul.f32 %v1213, 0.5
        %v1278 = vmul.f32 %v1214, 0.5
        %v1279 = vmul.f32 %v1215, 0.5
        %v1280 = vmul.f32 %v1216, 0.5
        %v1281 = vmul.f32 %v1217, 0.5
        %v1282 = vmul.f32 %v1218, 0.5
        %v1283 = vmul.f32 %v1219, 0.5
        %v1284 = vmul.f32 %v1220, 0.5
        %v1285 = vmul.f32 %v1221, 0.5
        %v1286 = vmul.f32 %v1222, 0.5
        %v1287 = vmul.f32 %v1223, 0.5
        %v1288 = vmul.f32 %v1224, 0.5
        %v1289 = vtanh.pop %v1225
        %v1290 = vtanh.pop %v1226
        %v1291 = vtanh.pop %v1227
        %v1292 = vtanh.pop %v1228
        %v1293 = vtanh.pop %v1229
        %v1294 = vtanh.pop %v1230
        %v1295 = vtanh.pop %v1231
        %v1296 = vtanh.pop %v1232
        %v1297 = vtanh.pop %v1233
        %v1298 = vtanh.pop %v1234
        %v1299 = vtanh.pop %v1235
        %v1300 = vtanh.pop %v1236
        %v1301 = vtanh.pop %v1237
        %v1302 = vtanh.pop %v1238
        %v1303 = vtanh.pop %v1239
        %v1304 = vtanh.pop %v1240
        %v1305 = vtanh.pop %v1241
        %v1306 = vtanh.pop %v1242
        %v1307 = vtanh.pop %v1243
        %v1308 = vtanh.pop %v1244
        %v1309 = vtanh.pop %v1245
        %v1310 = vtanh.pop %v1246
        %v1311 = vtanh.pop %v1247
        %v1312 = vtanh.pop %v1248
        %v1313 = vtanh.pop %v1249
        %v1314 = vtanh.pop %v1250
        %v1315 = vtanh.pop %v1251
        %v1316 = vtanh.pop %v1252
        %v1317 = vtanh.pop %v1253
        %v1318 = vtanh.pop %v1254
        %v1319 = vtanh.pop %v1255
        %v1320 = vtanh.pop %v1256
        %v1321 = vtanh.pop %v1257
        %v1322 = vtanh.pop %v1258
        %v1323 = vtanh.pop %v1259
        %v1324 = vtanh.pop %v1260
        %v1325 = vtanh.pop %v1261
        %v1326 = vtanh.pop %v1262
        %v1327 = vtanh.pop %v1263
        %v1328 = vtanh.pop %v1264
        %v1329 = vtanh.pop %v1265
        %v1330 = vtanh.pop %v1266
        %v1331 = vtanh.pop %v1267
        %v1332 = vtanh.pop %v1268
        %v1333 = vtanh.pop %v1269
        %v1334 = vtanh.pop %v1270
        %v1335 = vtanh.pop %v1271
        %v1336 = vtanh.pop %v1272
        %v1337 = vtanh.pop %v1273
        %v1338 = vtanh.pop %v1274
        %v1339 = vtanh.pop %v1275
        %v1340 = vtanh.pop %v1276
        %v1341 = vtanh.pop %v1277
        %v1342 = vtanh.pop %v1278
        %v1343 = vtanh.pop %v1279
        %v1344 = vtanh.pop %v1280
        %v1345 = vtanh.pop %v1281
        %v1346 = vtanh.pop %v1282
        %v1347 = vtanh.pop %v1283
        %v1348 = vtanh.pop %v1284
        %v1349 = vtanh.pop %v1285
        %v1350 = vtanh.pop %v1286
        %v1351 = vtanh.pop %v1287
        %v1352 = vtanh.pop %v1288
        %v1353 = vadd.f32 %v1289, 1.0
        %v1354 = vadd.f32 %v1290, 1.0
        %v1355 = vadd.f32 %v1291, 1.0
        %v1356 = vadd.f32 %v1292, 1.0
        %v1357 = vadd.f32 %v1293, 1.0
        %v1358 = vadd.f32 %v1294, 1.0
        %v1359 = vadd.f32 %v1295, 1.0
        %v1360 = vadd.f32 %v1296, 1.0
        %v1361 = vadd.f32 %v1297, 1.0
        %v1362 = vadd.f32 %v1298, 1.0
        %v1363 = vadd.f32 %v1299, 1.0
        %v1364 = vadd.f32 %v1300, 1.0
        %v1365 = vadd.f32 %v1301, 1.0
        %v1366 = vadd.f32 %v1302, 1.0
        %v1367 = vadd.f32 %v1303, 1.0
        %v1368 = vadd.f32 %v1304, 1.0
        %v1369 = vadd.f32 %v1305, 1.0
        %v1370 = vadd.f32 %v1306, 1.0
        %v1371 = vadd.f32 %v1307, 1.0
        %v1372 = vadd.f32 %v1308, 1.0
        %v1373 = vadd.f32 %v1309, 1.0
        %v1374 = vadd.f32 %v1310, 1.0
        %v1375 = vadd.f32 %v1311, 1.0
        %v1376 = vadd.f32 %v1312, 1.0
        %v1377 = vadd.f32 %v1313, 1.0
        %v1378 = vadd.f32 %v1314, 1.0
        %v1379 = vadd.f32 %v1315, 1.0
        %v1380 = vadd.f32 %v1316, 1.0
        %v1381 = vadd.f32 %v1317, 1.0
        %v1382 = vadd.f32 %v1318, 1.0
        %v1383 = vadd.f32 %v1319, 1.0
        %v1384 = vadd.f32 %v1320, 1.0
        %v1385 = vadd.f32 %v1321, 1.0
        %v1386 = vadd.f32 %v1322, 1.0
        %v1387 = vadd.f32 %v1323, 1.0
        %v1388 = vadd.f32 %v1324, 1.0
        %v1389 = vadd.f32 %v1325, 1.0
        %v1390 = vadd.f32 %v1326, 1.0
        %v1391 = vadd.f32 %v1327, 1.0
        %v1392 = vadd.f32 %v1328, 1.0
        %v1393 = vadd.f32 %v1329, 1.0
        %v1394 = vadd.f32 %v1330, 1.0
        %v1395 = vadd.f32 %v1331, 1.0
        %v1396 = vadd.f32 %v1332, 1.0
        %v1397 = vadd.f32 %v1333, 1.0
        %v1398 = vadd.f32 %v1334, 1.0
        %v1399 = vadd.f32 %v1335, 1.0
        %v1400 = vadd.f32 %v1336, 1.0
        %v1401 = vadd.f32 %v1337, 1.0
        %v1402 = vadd.f32 %v1338, 1.0
        %v1403 = vadd.f32 %v1339, 1.0
        %v1404 = vadd.f32 %v1340, 1.0
        %v1405 = vadd.f32 %v1341, 1.0
        %v1406 = vadd.f32 %v1342, 1.0
        %v1407 = vadd.f32 %v1343, 1.0
        %v1408 = vadd.f32 %v1344, 1.0
        %v1409 = vadd.f32 %v1345, 1.0
        %v1410 = vadd.f32 %v1346, 1.0
        %v1411 = vadd.f32 %v1347, 1.0
        %v1412 = vadd.f32 %v1348, 1.0
        %v1413 = vadd.f32 %v1349, 1.0
        %v1414 = vadd.f32 %v1350, 1.0
        %v1415 = vadd.f32 %v1351, 1.0
        %v1416 = vadd.f32 %v1352, 1.0
        %v1417 = vmul.f32 %v1225, %v1353
        %v1418 = vmul.f32 %v1226, %v1354
        %v1419 = vmul.f32 %v1227, %v1355
        %v1420 = vmul.f32 %v1228, %v1356
        %v1421 = vmul.f32 %v1229, %v1357
        %v1422 = vmul.f32 %v1230, %v1358
        %v1423 = vmul.f32 %v1231, %v1359
        %v1424 = vmul.f32 %v1232, %v1360
        %v1425 = vmul.f32 %v1233, %v1361
        %v1426 = vmul.f32 %v1234, %v1362
        %v1427 = vmul.f32 %v1235, %v1363
        %v1428 = vmul.f32 %v1236, %v1364
        %v1429 = vmul.f32 %v1237, %v1365
        %v1430 = vmul.f32 %v1238, %v1366
        %v1431 = vmul.f32 %v1239, %v1367
        %v1432 = vmul.f32 %v1240, %v1368
        %v1433 = vmul.f32 %v1241, %v1369
        %v1434 = vmul.f32 %v1242, %v1370
        %v1435 = vmul.f32 %v1243, %v1371
        %v1436 = vmul.f32 %v1244, %v1372
        %v1437 = vmul.f32 %v1245, %v1373
        %v1438 = vmul.f32 %v1246, %v1374
        %v1439 = vmul.f32 %v1247, %v1375
        %v1440 = vmul.f32 %v1248, %v1376
        %v1441 = vmul.f32 %v1249, %v1377
        %v1442 = vmul.f32 %v1250, %v1378
        %v1443 = vmul.f32 %v1251, %v1379
        %v1444 = vmul.f32 %v1252, %v1380
        %v1445 = vmul.f32 %v1253, %v1381
        %v1446 = vmul.f32 %v1254, %v1382
        %v1447 = vmul.f32 %v1255, %v1383
        %v1448 = vmul.f32 %v1256, %v1384
        %v1449 = vmul.f32 %v1257, %v1385
        %v1450 = vmul.f32 %v1258, %v1386
        %v1451 = vmul.f32 %v1259, %v1387
        %v1452 = vmul.f32 %v1260, %v1388
        %v1453 = vmul.f32 %v1261, %v1389
        %v1454 = vmul.f32 %v1262, %v1390
        %v1455 = vmul.f32 %v1263, %v1391
        %v1456 = vmul.f32 %v1264, %v1392
        %v1457 = vmul.f32 %v1265, %v1393
        %v1458 = vmul.f32 %v1266, %v1394
        %v1459 = vmul.f32 %v1267, %v1395
        %v1460 = vmul.f32 %v1268, %v1396
        %v1461 = vmul.f32 %v1269, %v1397
        %v1462 = vmul.f32 %v1270, %v1398
        %v1463 = vmul.f32 %v1271, %v1399
        %v1464 = vmul.f32 %v1272, %v1400
        %v1465 = vmul.f32 %v1273, %v1401
        %v1466 = vmul.f32 %v1274, %v1402
        %v1467 = vmul.f32 %v1275, %v1403
        %v1468 = vmul.f32 %v1276, %v1404
        %v1469 = vmul.f32 %v1277, %v1405
        %v1470 = vmul.f32 %v1278, %v1406
        %v1471 = vmul.f32 %v1279, %v1407
        %v1472 = vmul.f32 %v1280, %v1408
        %v1473 = vmul.f32 %v1281, %v1409
        %v1474 = vmul.f32 %v1282, %v1410
        %v1475 = vmul.f32 %v1283, %v1411
        %v1476 = vmul.f32 %v1284, %v1412
        %v1477 = vmul.f32 %v1285, %v1413
        %v1478 = vmul.f32 %v1286, %v1414
        %v1479 = vmul.f32 %v1287, %v1415
        %v1480 = vmul.f32 %v1288, %v1416
        %v1481 = vld [vmem:[%s4] sm:$0xff]
        %v1482 = vld [vmem:[%s4 + $0x8] sm:$0xff]
        %v1483 = vld [vmem:[%s4 + $0x10] sm:$0xff]
        %v1484 = vld [vmem:[%s4 + $0x18] sm:$0xff]
        %v1485 = vld [vmem:[%s5] sm:$0xff]
        %v1486 = vld [vmem:[%s5 + $0x8] sm:$0xff]
        %v1487 = vld [vmem:[%s5 + $0x10] sm:$0xff]
        %v1488 = vld [vmem:[%s5 + $0x18] sm:$0xff]
        %1490 = vset.pattern.permute.xlu0 0
        %1491 = vperm.xlu0 %1490, %v1485
        %v1492 = vpop.permute.xlu0 %1491
        %1495 = vset.pattern.permute.xlu0 0
        %1496 = vperm.xlu0 %1495, %v1486
        %v1497 = vpop.permute.xlu0 %1496
        %1500 = vset.pattern.permute.xlu0 0
        %1501 = vperm.xlu0 %1500, %v1487
        %v1502 = vpop.permute.xlu0 %1501
        %1505 = vset.pattern.permute.xlu0 0
        %1506 = vperm.xlu0 %1505, %v1488
        %v1507 = vpop.permute.xlu0 %1506
        %vm1509 = vcmask 785408
        %v1511 = vsel %vm1509, %v1481, 0
        %v1514 = vsel %vm1509, %v1482, 0
        %v1517 = vsel %vm1509, %v1483, 0
        %v1520 = vsel %vm1509, %v1484, 0
        %1522 = vmatpush.msra.mxu0 0.0
        %1523 = vmatpush.msra.mxu0 0.0
        %1524 = vmatpush.msra.mxu0 0.0
        %1525 = vmatpush.msra.mxu0 0.0
        %1526 = vmatpush.msra.mxu0 %v1467
        %1527 = vmatpush.msra.mxu0 %v1451
        %1528 = vmatpush.msra.mxu0 %v1435
        %1529 = vmatpush.msra.mxu0 %v1419
        %1530 = vmatpush.msra.mxu0 %v1465
        %1531 = vmatpush.msra.mxu0 %v1449
        %1532 = vmatpush.msra.mxu0 %v1433
        %1533 = vmatpush.msra.mxu0 %v1417
        %1534 = vmatpush.msra.mxu0 %v1465
        %1535 = vmatpush.msra.mxu0 %v1449
        %1536 = vmatpush.msra.mxu0 %v1433
        %1537 = vmatpush.msra.mxu0 %v1417
        %1538 = vmatmul.f32.gmra.mxu0 %v1511
        %v1539 = vpop.f32.mrf.mxu0
        %v1540 = vadd.f32 %v1492, %v1539
        %1541 = vmatmul.f32.gmra.mxu0 %v1514
        %v1542 = vpop.f32.mrf.mxu0
        %v1543 = vadd.f32 %v1497, %v1542
        %1544 = vmatmul.f32.gmra.mxu0 %v1517
        %v1545 = vpop.f32.mrf.mxu0
        %v1546 = vadd.f32 %v1502, %v1545
        %1547 = vmatmul.f32.gmra.mxu0 %v1520
        %v1548 = vpop.f32.mrf.mxu0
        %v1549 = vadd.f32 %v1507, %v1548
        %1550 = vdwg.mxu0
        %1551 = vmatpush.msra.mxu0 0.0
        %1552 = vmatpush.msra.mxu0 0.0
        %1553 = vmatpush.msra.mxu0 0.0
        %1554 = vmatpush.msra.mxu0 0.0
        %1555 = vmatpush.msra.mxu0 %v1468
        %1556 = vmatpush.msra.mxu0 %v1452
        %1557 = vmatpush.msra.mxu0 %v1436
        %1558 = vmatpush.msra.mxu0 %v1420
        %1559 = vmatpush.msra.mxu0 %v1466
        %1560 = vmatpush.msra.mxu0 %v1450
        %1561 = vmatpush.msra.mxu0 %v1434
        %1562 = vmatpush.msra.mxu0 %v1418
        %1563 = vmatpush.msra.mxu0 %v1466
        %1564 = vmatpush.msra.mxu0 %v1450
        %1565 = vmatpush.msra.mxu0 %v1434
        %1566 = vmatpush.msra.mxu0 %v1418
        %1567 = vmatmul.f32.gmra.mxu0 %v1511
        %v1568 = vpop.f32.mrf.mxu0
        %v1569 = vadd.f32 %v1492, %v1568
        %1570 = vmatmul.f32.gmra.mxu0 %v1514
        %v1571 = vpop.f32.mrf.mxu0
        %v1572 = vadd.f32 %v1497, %v1571
        %1573 = vmatmul.f32.gmra.mxu0 %v1517
        %v1574 = vpop.f32.mrf.mxu0
        %v1575 = vadd.f32 %v1502, %v1574
        %1576 = vmatmul.f32.gmra.mxu0 %v1520
        %v1577 = vpop.f32.mrf.mxu0
        %v1578 = vadd.f32 %v1507, %v1577
        %1579 = vdwg.mxu0
        %1580 = vmatpush.msra.mxu0 0.0
        %1581 = vmatpush.msra.mxu0 0.0
        %1582 = vmatpush.msra.mxu0 0.0
        %1583 = vmatpush.msra.mxu0 0.0
        %1584 = vmatpush.msra.mxu0 %v1469
        %1585 = vmatpush.msra.mxu0 %v1453
        %1586 = vmatpush.msra.mxu0 %v1437
        %1587 = vmatpush.msra.mxu0 %v1421
        %1588 = vmatpush.msra.mxu0 %v1467
        %1589 = vmatpush.msra.mxu0 %v1451
        %1590 = vmatpush.msra.mxu0 %v1435
        %1591 = vmatpush.msra.mxu0 %v1419
        %1592 = vmatpush.msra.mxu0 %v1465
        %1593 = vmatpush.msra.mxu0 %v1449
        %1594 = vmatpush.msra.mxu0 %v1433
        %1595 = vmatpush.msra.mxu0 %v1417
        %1596 = vmatmul.f32.gmra.mxu0 %v1511
        %v1597 = vpop.f32.mrf.mxu0
        %v1598 = vadd.f32 %v1492, %v1597
        %1599 = vmatmul.f32.gmra.mxu0 %v1514
        %v1600 = vpop.f32.mrf.mxu0
        %v1601 = vadd.f32 %v1497, %v1600
        %1602 = vmatmul.f32.gmra.mxu0 %v1517
        %v1603 = vpop.f32.mrf.mxu0
        %v1604 = vadd.f32 %v1502, %v1603
        %1605 = vmatmul.f32.gmra.mxu0 %v1520
        %v1606 = vpop.f32.mrf.mxu0
        %v1607 = vadd.f32 %v1507, %v1606
        %1608 = vdwg.mxu0
        %1609 = vmatpush.msra.mxu0 0.0
        %1610 = vmatpush.msra.mxu0 0.0
        %1611 = vmatpush.msra.mxu0 0.0
        %1612 = vmatpush.msra.mxu0 0.0
        %1613 = vmatpush.msra.mxu0 %v1470
        %1614 = vmatpush.msra.mxu0 %v1454
        %1615 = vmatpush.msra.mxu0 %v1438
        %1616 = vmatpush.msra.mxu0 %v1422
        %1617 = vmatpush.msra.mxu0 %v1468
        %1618 = vmatpush.msra.mxu0 %v1452
        %1619 = vmatpush.msra.mxu0 %v1436
        %1620 = vmatpush.msra.mxu0 %v1420
        %1621 = vmatpush.msra.mxu0 %v1466
        %1622 = vmatpush.msra.mxu0 %v1450
        %1623 = vmatpush.msra.mxu0 %v1434
        %1624 = vmatpush.msra.mxu0 %v1418
        %1625 = vmatmul.f32.gmra.mxu0 %v1511
        %v1626 = vpop.f32.mrf.mxu0
        %v1627 = vadd.f32 %v1492, %v1626
        %1628 = vmatmul.f32.gmra.mxu0 %v1514
        %v1629 = vpop.f32.mrf.mxu0
        %v1630 = vadd.f32 %v1497, %v1629
        %1631 = vmatmul.f32.gmra.mxu0 %v1517
        %v1632 = vpop.f32.mrf.mxu0
        %v1633 = vadd.f32 %v1502, %v1632
        %1634 = vmatmul.f32.gmra.mxu0 %v1520
        %v1635 = vpop.f32.mrf.mxu0
        %v1636 = vadd.f32 %v1507, %v1635
        %1637 = vdwg.mxu0
        %1638 = vmatpush.msra.mxu0 0.0
        %1639 = vmatpush.msra.mxu0 0.0
        %1640 = vmatpush.msra.mxu0 0.0
        %1641 = vmatpush.msra.mxu0 0.0
        %1642 = vmatpush.msra.mxu0 %v1471
        %1643 = vmatpush.msra.mxu0 %v1455
        %1644 = vmatpush.msra.mxu0 %v1439
        %1645 = vmatpush.msra.mxu0 %v1423
        %1646 = vmatpush.msra.mxu0 %v1469
        %1647 = vmatpush.msra.mxu0 %v1453
        %1648 = vmatpush.msra.mxu0 %v1437
        %1649 = vmatpush.msra.mxu0 %v1421
        %1650 = vmatpush.msra.mxu0 %v1467
        %1651 = vmatpush.msra.mxu0 %v1451
        %1652 = vmatpush.msra.mxu0 %v1435
        %1653 = vmatpush.msra.mxu0 %v1419
        %1654 = vmatmul.f32.gmra.mxu0 %v1511
        %v1655 = vpop.f32.mrf.mxu0
        %v1656 = vadd.f32 %v1492, %v1655
        %1657 = vmatmul.f32.gmra.mxu0 %v1514
        %v1658 = vpop.f32.mrf.mxu0
        %v1659 = vadd.f32 %v1497, %v1658
        %1660 = vmatmul.f32.gmra.mxu0 %v1517
        %v1661 = vpop.f32.mrf.mxu0
        %v1662 = vadd.f32 %v1502, %v1661
        %1663 = vmatmul.f32.gmra.mxu0 %v1520
        %v1664 = vpop.f32.mrf.mxu0
        %v1665 = vadd.f32 %v1507, %v1664
        %1666 = vdwg.mxu0
        %1667 = vmatpush.msra.mxu0 0.0
        %1668 = vmatpush.msra.mxu0 0.0
        %1669 = vmatpush.msra.mxu0 0.0
        %1670 = vmatpush.msra.mxu0 0.0
        %1671 = vmatpush.msra.mxu0 %v1472
        %1672 = vmatpush.msra.mxu0 %v1456
        %1673 = vmatpush.msra.mxu0 %v1440
        %1674 = vmatpush.msra.mxu0 %v1424
        %1675 = vmatpush.msra.mxu0 %v1470
        %1676 = vmatpush.msra.mxu0 %v1454
        %1677 = vmatpush.msra.mxu0 %v1438
        %1678 = vmatpush.msra.mxu0 %v1422
        %1679 = vmatpush.msra.mxu0 %v1468
        %1680 = vmatpush.msra.mxu0 %v1452
        %1681 = vmatpush.msra.mxu0 %v1436
        %1682 = vmatpush.msra.mxu0 %v1420
        %1683 = vmatmul.f32.gmra.mxu0 %v1511
        %v1684 = vpop.f32.mrf.mxu0
        %v1685 = vadd.f32 %v1492, %v1684
        %1686 = vmatmul.f32.gmra.mxu0 %v1514
        %v1687 = vpop.f32.mrf.mxu0
        %v1688 = vadd.f32 %v1497, %v1687
        %1689 = vmatmul.f32.gmra.mxu0 %v1517
        %v1690 = vpop.f32.mrf.mxu0
        %v1691 = vadd.f32 %v1502, %v1690
        %1692 = vmatmul.f32.gmra.mxu0 %v1520
        %v1693 = vpop.f32.mrf.mxu0
        %v1694 = vadd.f32 %v1507, %v1693
        %1695 = vdwg.mxu0
        %1696 = vmatpush.msra.mxu0 0.0
        %1697 = vmatpush.msra.mxu0 0.0
        %1698 = vmatpush.msra.mxu0 0.0
        %1699 = vmatpush.msra.mxu0 0.0
        %1700 = vmatpush.msra.mxu0 %v1473
        %1701 = vmatpush.msra.mxu0 %v1457
        %1702 = vmatpush.msra.mxu0 %v1441
        %1703 = vmatpush.msra.mxu0 %v1425
        %1704 = vmatpush.msra.mxu0 %v1471
        %1705 = vmatpush.msra.mxu0 %v1455
        %1706 = vmatpush.msra.mxu0 %v1439
        %1707 = vmatpush.msra.mxu0 %v1423
        %1708 = vmatpush.msra.mxu0 %v1469
        %1709 = vmatpush.msra.mxu0 %v1453
        %1710 = vmatpush.msra.mxu0 %v1437
        %1711 = vmatpush.msra.mxu0 %v1421
        %1712 = vmatmul.f32.gmra.mxu0 %v1511
        %v1713 = vpop.f32.mrf.mxu0
        %v1714 = vadd.f32 %v1492, %v1713
        %1715 = vmatmul.f32.gmra.mxu0 %v1514
        %v1716 = vpop.f32.mrf.mxu0
        %v1717 = vadd.f32 %v1497, %v1716
        %1718 = vmatmul.f32.gmra.mxu0 %v1517
        %v1719 = vpop.f32.mrf.mxu0
        %v1720 = vadd.f32 %v1502, %v1719
        %1721 = vmatmul.f32.gmra.mxu0 %v1520
        %v1722 = vpop.f32.mrf.mxu0
        %v1723 = vadd.f32 %v1507, %v1722
        %1724 = vdwg.mxu0
        %1725 = vmatpush.msra.mxu0 0.0
        %1726 = vmatpush.msra.mxu0 0.0
        %1727 = vmatpush.msra.mxu0 0.0
        %1728 = vmatpush.msra.mxu0 0.0
        %1729 = vmatpush.msra.mxu0 %v1474
        %1730 = vmatpush.msra.mxu0 %v1458
        %1731 = vmatpush.msra.mxu0 %v1442
        %1732 = vmatpush.msra.mxu0 %v1426
        %1733 = vmatpush.msra.mxu0 %v1472
        %1734 = vmatpush.msra.mxu0 %v1456
        %1735 = vmatpush.msra.mxu0 %v1440
        %1736 = vmatpush.msra.mxu0 %v1424
        %1737 = vmatpush.msra.mxu0 %v1470
        %1738 = vmatpush.msra.mxu0 %v1454
        %1739 = vmatpush.msra.mxu0 %v1438
        %1740 = vmatpush.msra.mxu0 %v1422
        %1741 = vmatmul.f32.gmra.mxu0 %v1511
        %v1742 = vpop.f32.mrf.mxu0
        %v1743 = vadd.f32 %v1492, %v1742
        %1744 = vmatmul.f32.gmra.mxu0 %v1514
        %v1745 = vpop.f32.mrf.mxu0
        %v1746 = vadd.f32 %v1497, %v1745
        %1747 = vmatmul.f32.gmra.mxu0 %v1517
        %v1748 = vpop.f32.mrf.mxu0
        %v1749 = vadd.f32 %v1502, %v1748
        %1750 = vmatmul.f32.gmra.mxu0 %v1520
        %v1751 = vpop.f32.mrf.mxu0
        %v1752 = vadd.f32 %v1507, %v1751
        %1753 = vdwg.mxu0
        %1754 = vmatpush.msra.mxu0 0.0
        %1755 = vmatpush.msra.mxu0 0.0
        %1756 = vmatpush.msra.mxu0 0.0
        %1757 = vmatpush.msra.mxu0 0.0
        %1758 = vmatpush.msra.mxu0 %v1475
        %1759 = vmatpush.msra.mxu0 %v1459
        %1760 = vmatpush.msra.mxu0 %v1443
        %1761 = vmatpush.msra.mxu0 %v1427
        %1762 = vmatpush.msra.mxu0 %v1473
        %1763 = vmatpush.msra.mxu0 %v1457
        %1764 = vmatpush.msra.mxu0 %v1441
        %1765 = vmatpush.msra.mxu0 %v1425
        %1766 = vmatpush.msra.mxu0 %v1471
        %1767 = vmatpush.msra.mxu0 %v1455
        %1768 = vmatpush.msra.mxu0 %v1439
        %1769 = vmatpush.msra.mxu0 %v1423
        %1770 = vmatmul.f32.gmra.mxu0 %v1511
        %v1771 = vpop.f32.mrf.mxu0
        %v1772 = vadd.f32 %v1492, %v1771
        %1773 = vmatmul.f32.gmra.mxu0 %v1514
        %v1774 = vpop.f32.mrf.mxu0
        %v1775 = vadd.f32 %v1497, %v1774
        %1776 = vmatmul.f32.gmra.mxu0 %v1517
        %v1777 = vpop.f32.mrf.mxu0
        %v1778 = vadd.f32 %v1502, %v1777
        %1779 = vmatmul.f32.gmra.mxu0 %v1520
        %v1780 = vpop.f32.mrf.mxu0
        %v1781 = vadd.f32 %v1507, %v1780
        %1782 = vdwg.mxu0
        %1783 = vmatpush.msra.mxu0 0.0
        %1784 = vmatpush.msra.mxu0 0.0
        %1785 = vmatpush.msra.mxu0 0.0
        %1786 = vmatpush.msra.mxu0 0.0
        %1787 = vmatpush.msra.mxu0 %v1476
        %1788 = vmatpush.msra.mxu0 %v1460
        %1789 = vmatpush.msra.mxu0 %v1444
        %1790 = vmatpush.msra.mxu0 %v1428
        %1791 = vmatpush.msra.mxu0 %v1474
        %1792 = vmatpush.msra.mxu0 %v1458
        %1793 = vmatpush.msra.mxu0 %v1442
        %1794 = vmatpush.msra.mxu0 %v1426
        %1795 = vmatpush.msra.mxu0 %v1472
        %1796 = vmatpush.msra.mxu0 %v1456
        %1797 = vmatpush.msra.mxu0 %v1440
        %1798 = vmatpush.msra.mxu0 %v1424
        %1799 = vmatmul.f32.gmra.mxu0 %v1511
        %v1800 = vpop.f32.mrf.mxu0
        %v1801 = vadd.f32 %v1492, %v1800
        %1802 = vmatmul.f32.gmra.mxu0 %v1514
        %v1803 = vpop.f32.mrf.mxu0
        %v1804 = vadd.f32 %v1497, %v1803
        %1805 = vmatmul.f32.gmra.mxu0 %v1517
        %v1806 = vpop.f32.mrf.mxu0
        %v1807 = vadd.f32 %v1502, %v1806
        %1808 = vmatmul.f32.gmra.mxu0 %v1520
        %v1809 = vpop.f32.mrf.mxu0
        %v1810 = vadd.f32 %v1507, %v1809
        %1811 = vdwg.mxu0
        %1812 = vmatpush.msra.mxu0 0.0
        %1813 = vmatpush.msra.mxu0 0.0
        %1814 = vmatpush.msra.mxu0 0.0
        %1815 = vmatpush.msra.mxu0 0.0
        %1816 = vmatpush.msra.mxu0 %v1477
        %1817 = vmatpush.msra.mxu0 %v1461
        %1818 = vmatpush.msra.mxu0 %v1445
        %1819 = vmatpush.msra.mxu0 %v1429
        %1820 = vmatpush.msra.mxu0 %v1475
        %1821 = vmatpush.msra.mxu0 %v1459
        %1822 = vmatpush.msra.mxu0 %v1443
        %1823 = vmatpush.msra.mxu0 %v1427
        %1824 = vmatpush.msra.mxu0 %v1473
        %1825 = vmatpush.msra.mxu0 %v1457
        %1826 = vmatpush.msra.mxu0 %v1441
        %1827 = vmatpush.msra.mxu0 %v1425
        %1828 = vmatmul.f32.gmra.mxu0 %v1511
        %v1829 = vpop.f32.mrf.mxu0
        %v1830 = vadd.f32 %v1492, %v1829
        %1831 = vmatmul.f32.gmra.mxu0 %v1514
        %v1832 = vpop.f32.mrf.mxu0
        %v1833 = vadd.f32 %v1497, %v1832
        %1834 = vmatmul.f32.gmra.mxu0 %v1517
        %v1835 = vpop.f32.mrf.mxu0
        %v1836 = vadd.f32 %v1502, %v1835
        %1837 = vmatmul.f32.gmra.mxu0 %v1520
        %v1838 = vpop.f32.mrf.mxu0
        %v1839 = vadd.f32 %v1507, %v1838
        %1840 = vdwg.mxu0
        %1841 = vmatpush.msra.mxu0 0.0
        %1842 = vmatpush.msra.mxu0 0.0
        %1843 = vmatpush.msra.mxu0 0.0
        %1844 = vmatpush.msra.mxu0 0.0
        %1845 = vmatpush.msra.mxu0 %v1478
        %1846 = vmatpush.msra.mxu0 %v1462
        %1847 = vmatpush.msra.mxu0 %v1446
        %1848 = vmatpush.msra.mxu0 %v1430
        %1849 = vmatpush.msra.mxu0 %v1476
        %1850 = vmatpush.msra.mxu0 %v1460
        %1851 = vmatpush.msra.mxu0 %v1444
        %1852 = vmatpush.msra.mxu0 %v1428
        %1853 = vmatpush.msra.mxu0 %v1474
        %1854 = vmatpush.msra.mxu0 %v1458
        %1855 = vmatpush.msra.mxu0 %v1442
        %1856 = vmatpush.msra.mxu0 %v1426
        %1857 = vmatmul.f32.gmra.mxu0 %v1511
        %v1858 = vpop.f32.mrf.mxu0
        %v1859 = vadd.f32 %v1492, %v1858
        %1860 = vmatmul.f32.gmra.mxu0 %v1514
        %v1861 = vpop.f32.mrf.mxu0
        %v1862 = vadd.f32 %v1497, %v1861
        %1863 = vmatmul.f32.gmra.mxu0 %v1517
        %v1864 = vpop.f32.mrf.mxu0
        %v1865 = vadd.f32 %v1502, %v1864
        %1866 = vmatmul.f32.gmra.mxu0 %v1520
        %v1867 = vpop.f32.mrf.mxu0
        %v1868 = vadd.f32 %v1507, %v1867
        %1869 = vdwg.mxu0
        %1870 = vmatpush.msra.mxu0 0.0
        %1871 = vmatpush.msra.mxu0 0.0
        %1872 = vmatpush.msra.mxu0 0.0
        %1873 = vmatpush.msra.mxu0 0.0
        %1874 = vmatpush.msra.mxu0 %v1479
        %1875 = vmatpush.msra.mxu0 %v1463
        %1876 = vmatpush.msra.mxu0 %v1447
        %1877 = vmatpush.msra.mxu0 %v1431
        %1878 = vmatpush.msra.mxu0 %v1477
        %1879 = vmatpush.msra.mxu0 %v1461
        %1880 = vmatpush.msra.mxu0 %v1445
        %1881 = vmatpush.msra.mxu0 %v1429
        %1882 = vmatpush.msra.mxu0 %v1475
        %1883 = vmatpush.msra.mxu0 %v1459
        %1884 = vmatpush.msra.mxu0 %v1443
        %1885 = vmatpush.msra.mxu0 %v1427
        %1886 = vmatmul.f32.gmra.mxu0 %v1511
        %v1887 = vpop.f32.mrf.mxu0
        %v1888 = vadd.f32 %v1492, %v1887
        %1889 = vmatmul.f32.gmra.mxu0 %v1514
        %v1890 = vpop.f32.mrf.mxu0
        %v1891 = vadd.f32 %v1497, %v1890
        %1892 = vmatmul.f32.gmra.mxu0 %v1517
        %v1893 = vpop.f32.mrf.mxu0
        %v1894 = vadd.f32 %v1502, %v1893
        %1895 = vmatmul.f32.gmra.mxu0 %v1520
        %v1896 = vpop.f32.mrf.mxu0
        %v1897 = vadd.f32 %v1507, %v1896
        %1898 = vdwg.mxu0
        %1899 = vmatpush.msra.mxu0 0.0
        %1900 = vmatpush.msra.mxu0 0.0
        %1901 = vmatpush.msra.mxu0 0.0
        %1902 = vmatpush.msra.mxu0 0.0
        %1903 = vmatpush.msra.mxu0 %v1480
        %1904 = vmatpush.msra.mxu0 %v1464
        %1905 = vmatpush.msra.mxu0 %v1448
        %1906 = vmatpush.msra.mxu0 %v1432
        %1907 = vmatpush.msra.mxu0 %v1478
        %1908 = vmatpush.msra.mxu0 %v1462
        %1909 = vmatpush.msra.mxu0 %v1446
        %1910 = vmatpush.msra.mxu0 %v1430
        %1911 = vmatpush.msra.mxu0 %v1476
        %1912 = vmatpush.msra.mxu0 %v1460
        %1913 = vmatpush.msra.mxu0 %v1444
        %1914 = vmatpush.msra.mxu0 %v1428
        %1915 = vmatmul.f32.gmra.mxu0 %v1511
        %v1916 = vpop.f32.mrf.mxu0
        %v1917 = vadd.f32 %v1492, %v1916
        %1918 = vmatmul.f32.gmra.mxu0 %v1514
        %v1919 = vpop.f32.mrf.mxu0
        %v1920 = vadd.f32 %v1497, %v1919
        %1921 = vmatmul.f32.gmra.mxu0 %v1517
        %v1922 = vpop.f32.mrf.mxu0
        %v1923 = vadd.f32 %v1502, %v1922
        %1924 = vmatmul.f32.gmra.mxu0 %v1520
        %v1925 = vpop.f32.mrf.mxu0
        %v1926 = vadd.f32 %v1507, %v1925
        %1927 = vdwg.mxu0
        %1928 = vmatpush.msra.mxu0 0.0
        %1929 = vmatpush.msra.mxu0 0.0
        %1930 = vmatpush.msra.mxu0 0.0
        %1931 = vmatpush.msra.mxu0 0.0
        %1932 = vmatpush.msra.mxu0 %v1479
        %1933 = vmatpush.msra.mxu0 %v1463
        %1934 = vmatpush.msra.mxu0 %v1447
        %1935 = vmatpush.msra.mxu0 %v1431
        %1936 = vmatpush.msra.mxu0 %v1479
        %1937 = vmatpush.msra.mxu0 %v1463
        %1938 = vmatpush.msra.mxu0 %v1447
        %1939 = vmatpush.msra.mxu0 %v1431
        %1940 = vmatpush.msra.mxu0 %v1477
        %1941 = vmatpush.msra.mxu0 %v1461
        %1942 = vmatpush.msra.mxu0 %v1445
        %1943 = vmatpush.msra.mxu0 %v1429
        %1944 = vmatmul.f32.gmra.mxu0 %v1511
        %v1945 = vpop.f32.mrf.mxu0
        %v1946 = vadd.f32 %v1492, %v1945
        %1947 = vmatmul.f32.gmra.mxu0 %v1514
        %v1948 = vpop.f32.mrf.mxu0
        %v1949 = vadd.f32 %v1497, %v1948
        %1950 = vmatmul.f32.gmra.mxu0 %v1517
        %v1951 = vpop.f32.mrf.mxu0
        %v1952 = vadd.f32 %v1502, %v1951
        %1953 = vmatmul.f32.gmra.mxu0 %v1520
        %v1954 = vpop.f32.mrf.mxu0
        %v1955 = vadd.f32 %v1507, %v1954
        %1956 = vdwg.mxu0
        %1957 = vmatpush.msra.mxu0 0.0
        %1958 = vmatpush.msra.mxu0 0.0
        %1959 = vmatpush.msra.mxu0 0.0
        %1960 = vmatpush.msra.mxu0 0.0
        %1961 = vmatpush.msra.mxu0 %v1480
        %1962 = vmatpush.msra.mxu0 %v1464
        %1963 = vmatpush.msra.mxu0 %v1448
        %1964 = vmatpush.msra.mxu0 %v1432
        %1965 = vmatpush.msra.mxu0 %v1480
        %1966 = vmatpush.msra.mxu0 %v1464
        %1967 = vmatpush.msra.mxu0 %v1448
        %1968 = vmatpush.msra.mxu0 %v1432
        %1969 = vmatpush.msra.mxu0 %v1478
        %1970 = vmatpush.msra.mxu0 %v1462
        %1971 = vmatpush.msra.mxu0 %v1446
        %1972 = vmatpush.msra.mxu0 %v1430
        %1973 = vmatmul.f32.gmra.mxu0 %v1511
        %v1974 = vpop.f32.mrf.mxu0
        %v1975 = vadd.f32 %v1492, %v1974
        %1976 = vmatmul.f32.gmra.mxu0 %v1514
        %v1977 = vpop.f32.mrf.mxu0
        %v1978 = vadd.f32 %v1497, %v1977
        %1979 = vmatmul.f32.gmra.mxu0 %v1517
        %v1980 = vpop.f32.mrf.mxu0
        %v1981 = vadd.f32 %v1502, %v1980
        %1982 = vmatmul.f32.gmra.mxu0 %v1520
        %v1983 = vpop.f32.mrf.mxu0
        %v1984 = vadd.f32 %v1507, %v1983
        %1985 = vdwg.mxu0
        %v1986 = vadd.f32 %v1540, %v1569
        %v1987 = vadd.f32 %v1986, %v1598
        %v1988 = vadd.f32 %v1987, %v1627
        %v1989 = vadd.f32 %v1988, %v1656
        %v1990 = vadd.f32 %v1989, %v1685
        %v1991 = vadd.f32 %v1990, %v1714
        %v1992 = vadd.f32 %v1991, %v1743
        %v1993 = vadd.f32 %v1992, %v1772
        %v1994 = vadd.f32 %v1993, %v1801
        %v1995 = vadd.f32 %v1994, %v1830
        %v1996 = vadd.f32 %v1995, %v1859
        %v1997 = vadd.f32 %v1996, %v1888
        %v1998 = vadd.f32 %v1997, %v1917
        %v1999 = vadd.f32 %v1998, %v1946
        %v2000 = vadd.f32 %v1999, %v1975
        %2001 = vadd.xlane.f32.xlu0 %v2000
        %v2002 = vpop.xlane.xlu0 %2001
        %v2003 = vadd.f32 %v1543, %v1572
        %v2004 = vadd.f32 %v2003, %v1601
        %v2005 = vadd.f32 %v2004, %v1630
        %v2006 = vadd.f32 %v2005, %v1659
        %v2007 = vadd.f32 %v2006, %v1688
        %v2008 = vadd.f32 %v2007, %v1717
        %v2009 = vadd.f32 %v2008, %v1746
        %v2010 = vadd.f32 %v2009, %v1775
        %v2011 = vadd.f32 %v2010, %v1804
        %v2012 = vadd.f32 %v2011, %v1833
        %v2013 = vadd.f32 %v2012, %v1862
        %v2014 = vadd.f32 %v2013, %v1891
        %v2015 = vadd.f32 %v2014, %v1920
        %v2016 = vadd.f32 %v2015, %v1949
        %v2017 = vadd.f32 %v2016, %v1978
        %2018 = vadd.xlane.f32.xlu0 %v2017
        %v2019 = vpop.xlane.xlu0 %2018
        %v2020 = vadd.f32 %v1546, %v1575
        %v2021 = vadd.f32 %v2020, %v1604
        %v2022 = vadd.f32 %v2021, %v1633
        %v2023 = vadd.f32 %v2022, %v1662
        %v2024 = vadd.f32 %v2023, %v1691
        %v2025 = vadd.f32 %v2024, %v1720
        %v2026 = vadd.f32 %v2025, %v1749
        %v2027 = vadd.f32 %v2026, %v1778
        %v2028 = vadd.f32 %v2027, %v1807
        %v2029 = vadd.f32 %v2028, %v1836
        %v2030 = vadd.f32 %v2029, %v1865
        %v2031 = vadd.f32 %v2030, %v1894
        %v2032 = vadd.f32 %v2031, %v1923
        %v2033 = vadd.f32 %v2032, %v1952
        %v2034 = vadd.f32 %v2033, %v1981
        %2035 = vadd.xlane.f32.xlu0 %v2034
        %v2036 = vpop.xlane.xlu0 %2035
        %v2037 = vadd.f32 %v1549, %v1578
        %v2038 = vadd.f32 %v2037, %v1607
        %v2039 = vadd.f32 %v2038, %v1636
        %v2040 = vadd.f32 %v2039, %v1665
        %v2041 = vadd.f32 %v2040, %v1694
        %v2042 = vadd.f32 %v2041, %v1723
        %v2043 = vadd.f32 %v2042, %v1752
        %v2044 = vadd.f32 %v2043, %v1781
        %v2045 = vadd.f32 %v2044, %v1810
        %v2046 = vadd.f32 %v2045, %v1839
        %v2047 = vadd.f32 %v2046, %v1868
        %v2048 = vadd.f32 %v2047, %v1897
        %v2049 = vadd.f32 %v2048, %v1926
        %v2050 = vadd.f32 %v2049, %v1955
        %v2051 = vadd.f32 %v2050, %v1984
        %2052 = vadd.xlane.f32.xlu0 %v2051
        %v2053 = vpop.xlane.xlu0 %2052
        %2054 = vadd.xlane.f32.xlu0 %v1986
        %v2055 = vpop.xlane.xlu0 %2054
        %2056 = vadd.xlane.f32.xlu0 %v2003
        %v2057 = vpop.xlane.xlu0 %2056
        %2058 = vadd.xlane.f32.xlu0 %v2020
        %v2059 = vpop.xlane.xlu0 %2058
        %2060 = vadd.xlane.f32.xlu0 %v2037
        %v2061 = vpop.xlane.xlu0 %2060
        %v2062 = vadd.f32 %v2002, %v2055
        %v2063 = vadd.f32 %v2019, %v2057
        %v2064 = vadd.f32 %v2036, %v2059
        %v2065 = vadd.f32 %v2053, %v2061
        %v2066 = vadd.f32 %v1946, %v1975
        %2067 = vadd.xlane.f32.xlu0 %v2066
        %v2068 = vpop.xlane.xlu0 %2067
        %v2069 = vadd.f32 %v1949, %v1978
        %2070 = vadd.xlane.f32.xlu0 %v2069
        %v2071 = vpop.xlane.xlu0 %2070
        %v2072 = vadd.f32 %v1952, %v1981
        %2073 = vadd.xlane.f32.xlu0 %v2072
        %v2074 = vpop.xlane.xlu0 %2073
        %v2075 = vadd.f32 %v1955, %v1984
        %2076 = vadd.xlane.f32.xlu0 %v2075
        %v2077 = vpop.xlane.xlu0 %2076
        %v2078 = vadd.f32 %v2062, %v2068
        %v2079 = vadd.f32 %v2063, %v2071
        %v2080 = vadd.f32 %v2064, %v2074
        %v2081 = vadd.f32 %v2065, %v2077
        %v2082 = vmul.f32 %v1540, %v1540
        %v2083 = vmul.f32 %v1569, %v1569
        %v2084 = vmul.f32 %v1598, %v1598
        %v2085 = vmul.f32 %v1627, %v1627
        %v2086 = vmul.f32 %v1656, %v1656
        %v2087 = vmul.f32 %v1685, %v1685
        %v2088 = vmul.f32 %v1714, %v1714
        %v2089 = vmul.f32 %v1743, %v1743
        %v2090 = vmul.f32 %v1772, %v1772
        %v2091 = vmul.f32 %v1801, %v1801
        %v2092 = vmul.f32 %v1830, %v1830
        %v2093 = vmul.f32 %v1859, %v1859
        %v2094 = vmul.f32 %v1888, %v1888
        %v2095 = vmul.f32 %v1917, %v1917
        %v2096 = vmul.f32 %v1946, %v1946
        %v2097 = vmul.f32 %v1975, %v1975
        %v2098 = vmul.f32 %v1543, %v1543
        %v2099 = vmul.f32 %v1572, %v1572
        %v2100 = vmul.f32 %v1601, %v1601
        %v2101 = vmul.f32 %v1630, %v1630
        %v2102 = vmul.f32 %v1659, %v1659
        %v2103 = vmul.f32 %v1688, %v1688
        %v2104 = vmul.f32 %v1717, %v1717
        %v2105 = vmul.f32 %v1746, %v1746
        %v2106 = vmul.f32 %v1775, %v1775
        %v2107 = vmul.f32 %v1804, %v1804
        %v2108 = vmul.f32 %v1833, %v1833
        %v2109 = vmul.f32 %v1862, %v1862
        %v2110 = vmul.f32 %v1891, %v1891
        %v2111 = vmul.f32 %v1920, %v1920
        %v2112 = vmul.f32 %v1949, %v1949
        %v2113 = vmul.f32 %v1978, %v1978
        %v2114 = vmul.f32 %v1546, %v1546
        %v2115 = vmul.f32 %v1575, %v1575
        %v2116 = vmul.f32 %v1604, %v1604
        %v2117 = vmul.f32 %v1633, %v1633
        %v2118 = vmul.f32 %v1662, %v1662
        %v2119 = vmul.f32 %v1691, %v1691
        %v2120 = vmul.f32 %v1720, %v1720
        %v2121 = vmul.f32 %v1749, %v1749
        %v2122 = vmul.f32 %v1778, %v1778
        %v2123 = vmul.f32 %v1807, %v1807
        %v2124 = vmul.f32 %v1836, %v1836
        %v2125 = vmul.f32 %v1865, %v1865
        %v2126 = vmul.f32 %v1894, %v1894
        %v2127 = vmul.f32 %v1923, %v1923
        %v2128 = vmul.f32 %v1952, %v1952
        %v2129 = vmul.f32 %v1981, %v1981
        %v2130 = vmul.f32 %v1549, %v1549
        %v2131 = vmul.f32 %v1578, %v1578
        %v2132 = vmul.f32 %v1607, %v1607
        %v2133 = vmul.f32 %v1636, %v1636
        %v2134 = vmul.f32 %v1665, %v1665
        %v2135 = vmul.f32 %v1694, %v1694
        %v2136 = vmul.f32 %v1723, %v1723
        %v2137 = vmul.f32 %v1752, %v1752
        %v2138 = vmul.f32 %v1781, %v1781
        %v2139 = vmul.f32 %v1810, %v1810
        %v2140 = vmul.f32 %v1839, %v1839
        %v2141 = vmul.f32 %v1868, %v1868
        %v2142 = vmul.f32 %v1897, %v1897
        %v2143 = vmul.f32 %v1926, %v1926
        %v2144 = vmul.f32 %v1955, %v1955
        %v2145 = vmul.f32 %v1984, %v1984
        %v2146 = vadd.f32 %v2082, %v2083
        %v2147 = vadd.f32 %v2146, %v2084
        %v2148 = vadd.f32 %v2147, %v2085
        %v2149 = vadd.f32 %v2148, %v2086
        %v2150 = vadd.f32 %v2149, %v2087
        %v2151 = vadd.f32 %v2150, %v2088
        %v2152 = vadd.f32 %v2151, %v2089
        %v2153 = vadd.f32 %v2152, %v2090
        %v2154 = vadd.f32 %v2153, %v2091
        %v2155 = vadd.f32 %v2154, %v2092
        %v2156 = vadd.f32 %v2155, %v2093
        %v2157 = vadd.f32 %v2156, %v2094
        %v2158 = vadd.f32 %v2157, %v2095
        %v2159 = vadd.f32 %v2158, %v2096
        %v2160 = vadd.f32 %v2159, %v2097
        %2161 = vadd.xlane.f32.xlu0 %v2160
        %v2162 = vpop.xlane.xlu0 %2161
        %v2163 = vadd.f32 %v2098, %v2099
        %v2164 = vadd.f32 %v2163, %v2100
        %v2165 = vadd.f32 %v2164, %v2101
        %v2166 = vadd.f32 %v2165, %v2102
        %v2167 = vadd.f32 %v2166, %v2103
        %v2168 = vadd.f32 %v2167, %v2104
        %v2169 = vadd.f32 %v2168, %v2105
        %v2170 = vadd.f32 %v2169, %v2106
        %v2171 = vadd.f32 %v2170, %v2107
        %v2172 = vadd.f32 %v2171, %v2108
        %v2173 = vadd.f32 %v2172, %v2109
        %v2174 = vadd.f32 %v2173, %v2110
        %v2175 = vadd.f32 %v2174, %v2111
        %v2176 = vadd.f32 %v2175, %v2112
        %v2177 = vadd.f32 %v2176, %v2113
        %2178 = vadd.xlane.f32.xlu0 %v2177
        %v2179 = vpop.xlane.xlu0 %2178
        %v2180 = vadd.f32 %v2114, %v2115
        %v2181 = vadd.f32 %v2180, %v2116
        %v2182 = vadd.f32 %v2181, %v2117
        %v2183 = vadd.f32 %v2182, %v2118
        %v2184 = vadd.f32 %v2183, %v2119
        %v2185 = vadd.f32 %v2184, %v2120
        %v2186 = vadd.f32 %v2185, %v2121
        %v2187 = vadd.f32 %v2186, %v2122
        %v2188 = vadd.f32 %v2187, %v2123
        %v2189 = vadd.f32 %v2188, %v2124
        %v2190 = vadd.f32 %v2189, %v2125
        %v2191 = vadd.f32 %v2190, %v2126
        %v2192 = vadd.f32 %v2191, %v2127
        %v2193 = vadd.f32 %v2192, %v2128
        %v2194 = vadd.f32 %v2193, %v2129
        %2195 = vadd.xlane.f32.xlu0 %v2194
        %v2196 = vpop.xlane.xlu0 %2195
        %v2197 = vadd.f32 %v2130, %v2131
        %v2198 = vadd.f32 %v2197, %v2132
        %v2199 = vadd.f32 %v2198, %v2133
        %v2200 = vadd.f32 %v2199, %v2134
        %v2201 = vadd.f32 %v2200, %v2135
        %v2202 = vadd.f32 %v2201, %v2136
        %v2203 = vadd.f32 %v2202, %v2137
        %v2204 = vadd.f32 %v2203, %v2138
        %v2205 = vadd.f32 %v2204, %v2139
        %v2206 = vadd.f32 %v2205, %v2140
        %v2207 = vadd.f32 %v2206, %v2141
        %v2208 = vadd.f32 %v2207, %v2142
        %v2209 = vadd.f32 %v2208, %v2143
        %v2210 = vadd.f32 %v2209, %v2144
        %v2211 = vadd.f32 %v2210, %v2145
        %2212 = vadd.xlane.f32.xlu0 %v2211
        %v2213 = vpop.xlane.xlu0 %2212
        %2214 = vadd.xlane.f32.xlu0 %v2146
        %v2215 = vpop.xlane.xlu0 %2214
        %2216 = vadd.xlane.f32.xlu0 %v2163
        %v2217 = vpop.xlane.xlu0 %2216
        %2218 = vadd.xlane.f32.xlu0 %v2180
        %v2219 = vpop.xlane.xlu0 %2218
        %2220 = vadd.xlane.f32.xlu0 %v2197
        %v2221 = vpop.xlane.xlu0 %2220
        %v2222 = vadd.f32 %v2162, %v2215
        %v2223 = vadd.f32 %v2179, %v2217
        %v2224 = vadd.f32 %v2196, %v2219
        %v2225 = vadd.f32 %v2213, %v2221
        %v2226 = vadd.f32 %v2096, %v2097
        %2227 = vadd.xlane.f32.xlu0 %v2226
        %v2228 = vpop.xlane.xlu0 %2227
        %v2229 = vadd.f32 %v2112, %v2113
        %2230 = vadd.xlane.f32.xlu0 %v2229
        %v2231 = vpop.xlane.xlu0 %2230
        %v2232 = vadd.f32 %v2128, %v2129
        %2233 = vadd.xlane.f32.xlu0 %v2232
        %v2234 = vpop.xlane.xlu0 %2233
        %v2235 = vadd.f32 %v2144, %v2145
        %2236 = vadd.xlane.f32.xlu0 %v2235
        %v2237 = vpop.xlane.xlu0 %2236
        %v2238 = vadd.f32 %v2222, %v2228
        %v2239 = vadd.f32 %v2223, %v2231
        %v2240 = vadd.f32 %v2224, %v2234
        %v2241 = vadd.f32 %v2225, %v2237
        %v2242 = vmul.f32 %v2078, %v976
        %v2243 = vmul.f32 %v2079, %v976
        %v2244 = vmul.f32 %v2080, %v976
        %v2245 = vmul.f32 %v2081, %v976
        %v2246 = vmul.f32 %v2238, %v976
        %v2247 = vmul.f32 %v2239, %v976
        %v2248 = vmul.f32 %v2240, %v976
        %v2249 = vmul.f32 %v2241, %v976
        %v2250 = vmul.f32 %v2242, %v2242
        %v2251 = vmul.f32 %v2243, %v2243
        %v2252 = vmul.f32 %v2244, %v2244
        %v2253 = vmul.f32 %v2245, %v2245
        %v2254 = vsub.f32 %v2246, %v2250
        %v2255 = vsub.f32 %v2247, %v2251
        %v2256 = vsub.f32 %v2248, %v2252
        %v2257 = vsub.f32 %v2249, %v2253
        %v2258 = vadd.f32 %v2254, 1e-05
        %v2259 = vadd.f32 %v2255, 1e-05
        %v2260 = vadd.f32 %v2256, 1e-05
        %v2261 = vadd.f32 %v2257, 1e-05
        %v2262 = vrsqrt.pop %v2258
        %v2263 = vmul.f32 %v2262, %v2258
        %v2264 = vmul.f32 %v2263, %v2262
        %v2265 = vmul.f32 0.5, %v2264
        %v2266 = vsub.f32 1.5, %v2265
        %v2267 = vmul.f32 %v2262, %v2266
        %vm2268 = vweird.f32 %v2258
        %vm2269 = vweird.f32 %v2262
        %vm2270 = vmor %vm2268, %vm2269
        %v2271 = vsel %vm2270, %v2262, %v2267
        %v2272 = vrsqrt.pop %v2259
        %v2273 = vmul.f32 %v2272, %v2259
        %v2274 = vmul.f32 %v2273, %v2272
        %v2275 = vmul.f32 0.5, %v2274
        %v2276 = vsub.f32 1.5, %v2275
        %v2277 = vmul.f32 %v2272, %v2276
        %vm2278 = vweird.f32 %v2259
        %vm2279 = vweird.f32 %v2272
        %vm2280 = vmor %vm2278, %vm2279
        %v2281 = vsel %vm2280, %v2272, %v2277
        %v2282 = vrsqrt.pop %v2260
        %v2283 = vmul.f32 %v2282, %v2260
        %v2284 = vmul.f32 %v2283, %v2282
        %v2285 = vmul.f32 0.5, %v2284
        %v2286 = vsub.f32 1.5, %v2285
        %v2287 = vmul.f32 %v2282, %v2286
        %vm2288 = vweird.f32 %v2260
        %vm2289 = vweird.f32 %v2282
        %vm2290 = vmor %vm2288, %vm2289
        %v2291 = vsel %vm2290, %v2282, %v2287
        %v2292 = vrsqrt.pop %v2261
        %v2293 = vmul.f32 %v2292, %v2261
        %v2294 = vmul.f32 %v2293, %v2292
        %v2295 = vmul.f32 0.5, %v2294
        %v2296 = vsub.f32 1.5, %v2295
        %v2297 = vmul.f32 %v2292, %v2296
        %vm2298 = vweird.f32 %v2261
        %vm2299 = vweird.f32 %v2292
        %vm2300 = vmor %vm2298, %vm2299
        %v2301 = vsel %vm2300, %v2292, %v2297
        %v2302 = vld [vmem:[%s10] sm:$0xff]
        %v2303 = vld [vmem:[%s10 + $0x8] sm:$0xff]
        %v2304 = vld [vmem:[%s10 + $0x10] sm:$0xff]
        %v2305 = vld [vmem:[%s10 + $0x18] sm:$0xff]
        %v2306 = vmul.f32 %v2271, %v2302
        %v2307 = vmul.f32 %v2281, %v2303
        %v2308 = vmul.f32 %v2291, %v2304
        %v2309 = vmul.f32 %v2301, %v2305
        %v2310 = vld [vmem:[%s11] sm:$0xff]
        %v2311 = vld [vmem:[%s11 + $0x8] sm:$0xff]
        %v2312 = vld [vmem:[%s11 + $0x10] sm:$0xff]
        %v2313 = vld [vmem:[%s11 + $0x18] sm:$0xff]
        %v2314 = vmul.f32 %v2242, %v2306
        %v2315 = vmul.f32 %v2243, %v2307
        %v2316 = vmul.f32 %v2244, %v2308
        %v2317 = vmul.f32 %v2245, %v2309
        %v2318 = vsub.f32 %v2310, %v2314
        %v2319 = vsub.f32 %v2311, %v2315
        %v2320 = vsub.f32 %v2312, %v2316
        %v2321 = vsub.f32 %v2313, %v2317
        %2323 = vset.pattern.permute.xlu0 0
        %2324 = vperm.xlu0 %2323, %v2306
        %v2325 = vpop.permute.xlu0 %2324
        %2328 = vset.pattern.permute.xlu0 0
        %2329 = vperm.xlu0 %2328, %v2307
        %v2330 = vpop.permute.xlu0 %2329
        %2333 = vset.pattern.permute.xlu0 0
        %2334 = vperm.xlu0 %2333, %v2308
        %v2335 = vpop.permute.xlu0 %2334
        %2338 = vset.pattern.permute.xlu0 0
        %2339 = vperm.xlu0 %2338, %v2309
        %v2340 = vpop.permute.xlu0 %2339
        %v2342 = vmul.f32 %v1540, %v2325
        %v2343 = vmul.f32 %v1569, %v2325
        %v2344 = vmul.f32 %v1598, %v2325
        %v2345 = vmul.f32 %v1627, %v2325
        %v2346 = vmul.f32 %v1656, %v2325
        %v2347 = vmul.f32 %v1685, %v2325
        %v2348 = vmul.f32 %v1714, %v2325
        %v2349 = vmul.f32 %v1743, %v2325
        %v2350 = vmul.f32 %v1772, %v2325
        %v2351 = vmul.f32 %v1801, %v2325
        %v2352 = vmul.f32 %v1830, %v2325
        %v2353 = vmul.f32 %v1859, %v2325
        %v2354 = vmul.f32 %v1888, %v2325
        %v2355 = vmul.f32 %v1917, %v2325
        %v2356 = vmul.f32 %v1946, %v2325
        %v2357 = vmul.f32 %v1975, %v2325
        %v2358 = vmul.f32 %v1543, %v2330
        %v2359 = vmul.f32 %v1572, %v2330
        %v2360 = vmul.f32 %v1601, %v2330
        %v2361 = vmul.f32 %v1630, %v2330
        %v2362 = vmul.f32 %v1659, %v2330
        %v2363 = vmul.f32 %v1688, %v2330
        %v2364 = vmul.f32 %v1717, %v2330
        %v2365 = vmul.f32 %v1746, %v2330
        %v2366 = vmul.f32 %v1775, %v2330
        %v2367 = vmul.f32 %v1804, %v2330
        %v2368 = vmul.f32 %v1833, %v2330
        %v2369 = vmul.f32 %v1862, %v2330
        %v2370 = vmul.f32 %v1891, %v2330
        %v2371 = vmul.f32 %v1920, %v2330
        %v2372 = vmul.f32 %v1949, %v2330
        %v2373 = vmul.f32 %v1978, %v2330
        %v2374 = vmul.f32 %v1546, %v2335
        %v2375 = vmul.f32 %v1575, %v2335
        %v2376 = vmul.f32 %v1604, %v2335
        %v2377 = vmul.f32 %v1633, %v2335
        %v2378 = vmul.f32 %v1662, %v2335
        %v2379 = vmul.f32 %v1691, %v2335
        %v2380 = vmul.f32 %v1720, %v2335
        %v2381 = vmul.f32 %v1749, %v2335
        %v2382 = vmul.f32 %v1778, %v2335
        %v2383 = vmul.f32 %v1807, %v2335
        %v2384 = vmul.f32 %v1836, %v2335
        %v2385 = vmul.f32 %v1865, %v2335
        %v2386 = vmul.f32 %v1894, %v2335
        %v2387 = vmul.f32 %v1923, %v2335
        %v2388 = vmul.f32 %v1952, %v2335
        %v2389 = vmul.f32 %v1981, %v2335
        %v2390 = vmul.f32 %v1549, %v2340
        %v2391 = vmul.f32 %v1578, %v2340
        %v2392 = vmul.f32 %v1607, %v2340
        %v2393 = vmul.f32 %v1636, %v2340
        %v2394 = vmul.f32 %v1665, %v2340
        %v2395 = vmul.f32 %v1694, %v2340
        %v2396 = vmul.f32 %v1723, %v2340
        %v2397 = vmul.f32 %v1752, %v2340
        %v2398 = vmul.f32 %v1781, %v2340
        %v2399 = vmul.f32 %v1810, %v2340
        %v2400 = vmul.f32 %v1839, %v2340
        %v2401 = vmul.f32 %v1868, %v2340
        %v2402 = vmul.f32 %v1897, %v2340
        %v2403 = vmul.f32 %v1926, %v2340
        %v2404 = vmul.f32 %v1955, %v2340
        %v2405 = vmul.f32 %v1984, %v2340
        %2407 = vset.pattern.permute.xlu0 0
        %2408 = vperm.xlu0 %2407, %v2318
        %v2409 = vpop.permute.xlu0 %2408
        %2412 = vset.pattern.permute.xlu0 0
        %2413 = vperm.xlu0 %2412, %v2319
        %v2414 = vpop.permute.xlu0 %2413
        %2417 = vset.pattern.permute.xlu0 0
        %2418 = vperm.xlu0 %2417, %v2320
        %v2419 = vpop.permute.xlu0 %2418
        %2422 = vset.pattern.permute.xlu0 0
        %2423 = vperm.xlu0 %2422, %v2321
        %v2424 = vpop.permute.xlu0 %2423
        %v2426 = vadd.f32 %v2342, %v2409
        %v2427 = vadd.f32 %v2343, %v2409
        %v2428 = vadd.f32 %v2344, %v2409
        %v2429 = vadd.f32 %v2345, %v2409
        %v2430 = vadd.f32 %v2346, %v2409
        %v2431 = vadd.f32 %v2347, %v2409
        %v2432 = vadd.f32 %v2348, %v2409
        %v2433 = vadd.f32 %v2349, %v2409
        %v2434 = vadd.f32 %v2350, %v2409
        %v2435 = vadd.f32 %v2351, %v2409
        %v2436 = vadd.f32 %v2352, %v2409
        %v2437 = vadd.f32 %v2353, %v2409
        %v2438 = vadd.f32 %v2354, %v2409
        %v2439 = vadd.f32 %v2355, %v2409
        %v2440 = vadd.f32 %v2356, %v2409
        %v2441 = vadd.f32 %v2357, %v2409
        %v2442 = vadd.f32 %v2358, %v2414
        %v2443 = vadd.f32 %v2359, %v2414
        %v2444 = vadd.f32 %v2360, %v2414
        %v2445 = vadd.f32 %v2361, %v2414
        %v2446 = vadd.f32 %v2362, %v2414
        %v2447 = vadd.f32 %v2363, %v2414
        %v2448 = vadd.f32 %v2364, %v2414
        %v2449 = vadd.f32 %v2365, %v2414
        %v2450 = vadd.f32 %v2366, %v2414
        %v2451 = vadd.f32 %v2367, %v2414
        %v2452 = vadd.f32 %v2368, %v2414
        %v2453 = vadd.f32 %v2369, %v2414
        %v2454 = vadd.f32 %v2370, %v2414
        %v2455 = vadd.f32 %v2371, %v2414
        %v2456 = vadd.f32 %v2372, %v2414
        %v2457 = vadd.f32 %v2373, %v2414
        %v2458 = vadd.f32 %v2374, %v2419
        %v2459 = vadd.f32 %v2375, %v2419
        %v2460 = vadd.f32 %v2376, %v2419
        %v2461 = vadd.f32 %v2377, %v2419
        %v2462 = vadd.f32 %v2378, %v2419
        %v2463 = vadd.f32 %v2379, %v2419
        %v2464 = vadd.f32 %v2380, %v2419
        %v2465 = vadd.f32 %v2381, %v2419
        %v2466 = vadd.f32 %v2382, %v2419
        %v2467 = vadd.f32 %v2383, %v2419
        %v2468 = vadd.f32 %v2384, %v2419
        %v2469 = vadd.f32 %v2385, %v2419
        %v2470 = vadd.f32 %v2386, %v2419
        %v2471 = vadd.f32 %v2387, %v2419
        %v2472 = vadd.f32 %v2388, %v2419
        %v2473 = vadd.f32 %v2389, %v2419
        %v2474 = vadd.f32 %v2390, %v2424
        %v2475 = vadd.f32 %v2391, %v2424
        %v2476 = vadd.f32 %v2392, %v2424
        %v2477 = vadd.f32 %v2393, %v2424
        %v2478 = vadd.f32 %v2394, %v2424
        %v2479 = vadd.f32 %v2395, %v2424
        %v2480 = vadd.f32 %v2396, %v2424
        %v2481 = vadd.f32 %v2397, %v2424
        %v2482 = vadd.f32 %v2398, %v2424
        %v2483 = vadd.f32 %v2399, %v2424
        %v2484 = vadd.f32 %v2400, %v2424
        %v2485 = vadd.f32 %v2401, %v2424
        %v2486 = vadd.f32 %v2402, %v2424
        %v2487 = vadd.f32 %v2403, %v2424
        %v2488 = vadd.f32 %v2404, %v2424
        %v2489 = vadd.f32 %v2405, %v2424
        %v2490 = vmul.f32 %v2426, 0.5
        %v2491 = vmul.f32 %v2427, 0.5
        %v2492 = vmul.f32 %v2428, 0.5
        %v2493 = vmul.f32 %v2429, 0.5
        %v2494 = vmul.f32 %v2430, 0.5
        %v2495 = vmul.f32 %v2431, 0.5
        %v2496 = vmul.f32 %v2432, 0.5
        %v2497 = vmul.f32 %v2433, 0.5
        %v2498 = vmul.f32 %v2434, 0.5
        %v2499 = vmul.f32 %v2435, 0.5
        %v2500 = vmul.f32 %v2436, 0.5
        %v2501 = vmul.f32 %v2437, 0.5
        %v2502 = vmul.f32 %v2438, 0.5
        %v2503 = vmul.f32 %v2439, 0.5
        %v2504 = vmul.f32 %v2440, 0.5
        %v2505 = vmul.f32 %v2441, 0.5
        %v2506 = vmul.f32 %v2442, 0.5
        %v2507 = vmul.f32 %v2443, 0.5
        %v2508 = vmul.f32 %v2444, 0.5
        %v2509 = vmul.f32 %v2445, 0.5
        %v2510 = vmul.f32 %v2446, 0.5
        %v2511 = vmul.f32 %v2447, 0.5
        %v2512 = vmul.f32 %v2448, 0.5
        %v2513 = vmul.f32 %v2449, 0.5
        %v2514 = vmul.f32 %v2450, 0.5
        %v2515 = vmul.f32 %v2451, 0.5
        %v2516 = vmul.f32 %v2452, 0.5
        %v2517 = vmul.f32 %v2453, 0.5
        %v2518 = vmul.f32 %v2454, 0.5
        %v2519 = vmul.f32 %v2455, 0.5
        %v2520 = vmul.f32 %v2456, 0.5
        %v2521 = vmul.f32 %v2457, 0.5
        %v2522 = vmul.f32 %v2458, 0.5
        %v2523 = vmul.f32 %v2459, 0.5
        %v2524 = vmul.f32 %v2460, 0.5
        %v2525 = vmul.f32 %v2461, 0.5
        %v2526 = vmul.f32 %v2462, 0.5
        %v2527 = vmul.f32 %v2463, 0.5
        %v2528 = vmul.f32 %v2464, 0.5
        %v2529 = vmul.f32 %v2465, 0.5
        %v2530 = vmul.f32 %v2466, 0.5
        %v2531 = vmul.f32 %v2467, 0.5
        %v2532 = vmul.f32 %v2468, 0.5
        %v2533 = vmul.f32 %v2469, 0.5
        %v2534 = vmul.f32 %v2470, 0.5
        %v2535 = vmul.f32 %v2471, 0.5
        %v2536 = vmul.f32 %v2472, 0.5
        %v2537 = vmul.f32 %v2473, 0.5
        %v2538 = vmul.f32 %v2474, 0.5
        %v2539 = vmul.f32 %v2475, 0.5
        %v2540 = vmul.f32 %v2476, 0.5
        %v2541 = vmul.f32 %v2477, 0.5
        %v2542 = vmul.f32 %v2478, 0.5
        %v2543 = vmul.f32 %v2479, 0.5
        %v2544 = vmul.f32 %v2480, 0.5
        %v2545 = vmul.f32 %v2481, 0.5
        %v2546 = vmul.f32 %v2482, 0.5
        %v2547 = vmul.f32 %v2483, 0.5
        %v2548 = vmul.f32 %v2484, 0.5
        %v2549 = vmul.f32 %v2485, 0.5
        %v2550 = vmul.f32 %v2486, 0.5
        %v2551 = vmul.f32 %v2487, 0.5
        %v2552 = vmul.f32 %v2488, 0.5
        %v2553 = vmul.f32 %v2489, 0.5
        %v2554 = vtanh.pop %v2490
        %v2555 = vtanh.pop %v2491
        %v2556 = vtanh.pop %v2492
        %v2557 = vtanh.pop %v2493
        %v2558 = vtanh.pop %v2494
        %v2559 = vtanh.pop %v2495
        %v2560 = vtanh.pop %v2496
        %v2561 = vtanh.pop %v2497
        %v2562 = vtanh.pop %v2498
        %v2563 = vtanh.pop %v2499
        %v2564 = vtanh.pop %v2500
        %v2565 = vtanh.pop %v2501
        %v2566 = vtanh.pop %v2502
        %v2567 = vtanh.pop %v2503
        %v2568 = vtanh.pop %v2504
        %v2569 = vtanh.pop %v2505
        %v2570 = vtanh.pop %v2506
        %v2571 = vtanh.pop %v2507
        %v2572 = vtanh.pop %v2508
        %v2573 = vtanh.pop %v2509
        %v2574 = vtanh.pop %v2510
        %v2575 = vtanh.pop %v2511
        %v2576 = vtanh.pop %v2512
        %v2577 = vtanh.pop %v2513
        %v2578 = vtanh.pop %v2514
        %v2579 = vtanh.pop %v2515
        %v2580 = vtanh.pop %v2516
        %v2581 = vtanh.pop %v2517
        %v2582 = vtanh.pop %v2518
        %v2583 = vtanh.pop %v2519
        %v2584 = vtanh.pop %v2520
        %v2585 = vtanh.pop %v2521
        %v2586 = vtanh.pop %v2522
        %v2587 = vtanh.pop %v2523
        %v2588 = vtanh.pop %v2524
        %v2589 = vtanh.pop %v2525
        %v2590 = vtanh.pop %v2526
        %v2591 = vtanh.pop %v2527
        %v2592 = vtanh.pop %v2528
        %v2593 = vtanh.pop %v2529
        %v2594 = vtanh.pop %v2530
        %v2595 = vtanh.pop %v2531
        %v2596 = vtanh.pop %v2532
        %v2597 = vtanh.pop %v2533
        %v2598 = vtanh.pop %v2534
        %v2599 = vtanh.pop %v2535
        %v2600 = vtanh.pop %v2536
        %v2601 = vtanh.pop %v2537
        %v2602 = vtanh.pop %v2538
        %v2603 = vtanh.pop %v2539
        %v2604 = vtanh.pop %v2540
        %v2605 = vtanh.pop %v2541
        %v2606 = vtanh.pop %v2542
        %v2607 = vtanh.pop %v2543
        %v2608 = vtanh.pop %v2544
        %v2609 = vtanh.pop %v2545
        %v2610 = vtanh.pop %v2546
        %v2611 = vtanh.pop %v2547
        %v2612 = vtanh.pop %v2548
        %v2613 = vtanh.pop %v2549
        %v2614 = vtanh.pop %v2550
        %v2615 = vtanh.pop %v2551
        %v2616 = vtanh.pop %v2552
        %v2617 = vtanh.pop %v2553
        %v2618 = vadd.f32 %v2554, 1.0
        %v2619 = vadd.f32 %v2555, 1.0
        %v2620 = vadd.f32 %v2556, 1.0
        %v2621 = vadd.f32 %v2557, 1.0
        %v2622 = vadd.f32 %v2558, 1.0
        %v2623 = vadd.f32 %v2559, 1.0
        %v2624 = vadd.f32 %v2560, 1.0
        %v2625 = vadd.f32 %v2561, 1.0
        %v2626 = vadd.f32 %v2562, 1.0
        %v2627 = vadd.f32 %v2563, 1.0
        %v2628 = vadd.f32 %v2564, 1.0
        %v2629 = vadd.f32 %v2565, 1.0
        %v2630 = vadd.f32 %v2566, 1.0
        %v2631 = vadd.f32 %v2567, 1.0
        %v2632 = vadd.f32 %v2568, 1.0
        %v2633 = vadd.f32 %v2569, 1.0
        %v2634 = vadd.f32 %v2570, 1.0
        %v2635 = vadd.f32 %v2571, 1.0
        %v2636 = vadd.f32 %v2572, 1.0
        %v2637 = vadd.f32 %v2573, 1.0
        %v2638 = vadd.f32 %v2574, 1.0
        %v2639 = vadd.f32 %v2575, 1.0
        %v2640 = vadd.f32 %v2576, 1.0
        %v2641 = vadd.f32 %v2577, 1.0
        %v2642 = vadd.f32 %v2578, 1.0
        %v2643 = vadd.f32 %v2579, 1.0
        %v2644 = vadd.f32 %v2580, 1.0
        %v2645 = vadd.f32 %v2581, 1.0
        %v2646 = vadd.f32 %v2582, 1.0
        %v2647 = vadd.f32 %v2583, 1.0
        %v2648 = vadd.f32 %v2584, 1.0
        %v2649 = vadd.f32 %v2585, 1.0
        %v2650 = vadd.f32 %v2586, 1.0
        %v2651 = vadd.f32 %v2587, 1.0
        %v2652 = vadd.f32 %v2588, 1.0
        %v2653 = vadd.f32 %v2589, 1.0
        %v2654 = vadd.f32 %v2590, 1.0
        %v2655 = vadd.f32 %v2591, 1.0
        %v2656 = vadd.f32 %v2592, 1.0
        %v2657 = vadd.f32 %v2593, 1.0
        %v2658 = vadd.f32 %v2594, 1.0
        %v2659 = vadd.f32 %v2595, 1.0
        %v2660 = vadd.f32 %v2596, 1.0
        %v2661 = vadd.f32 %v2597, 1.0
        %v2662 = vadd.f32 %v2598, 1.0
        %v2663 = vadd.f32 %v2599, 1.0
        %v2664 = vadd.f32 %v2600, 1.0
        %v2665 = vadd.f32 %v2601, 1.0
        %v2666 = vadd.f32 %v2602, 1.0
        %v2667 = vadd.f32 %v2603, 1.0
        %v2668 = vadd.f32 %v2604, 1.0
        %v2669 = vadd.f32 %v2605, 1.0
        %v2670 = vadd.f32 %v2606, 1.0
        %v2671 = vadd.f32 %v2607, 1.0
        %v2672 = vadd.f32 %v2608, 1.0
        %v2673 = vadd.f32 %v2609, 1.0
        %v2674 = vadd.f32 %v2610, 1.0
        %v2675 = vadd.f32 %v2611, 1.0
        %v2676 = vadd.f32 %v2612, 1.0
        %v2677 = vadd.f32 %v2613, 1.0
        %v2678 = vadd.f32 %v2614, 1.0
        %v2679 = vadd.f32 %v2615, 1.0
        %v2680 = vadd.f32 %v2616, 1.0
        %v2681 = vadd.f32 %v2617, 1.0
        %v2682 = vmul.f32 %v2490, %v2618
        %v2683 = vmul.f32 %v2491, %v2619
        %v2684 = vmul.f32 %v2492, %v2620
        %v2685 = vmul.f32 %v2493, %v2621
        %v2686 = vmul.f32 %v2494, %v2622
        %v2687 = vmul.f32 %v2495, %v2623
        %v2688 = vmul.f32 %v2496, %v2624
        %v2689 = vmul.f32 %v2497, %v2625
        %v2690 = vmul.f32 %v2498, %v2626
        %v2691 = vmul.f32 %v2499, %v2627
        %v2692 = vmul.f32 %v2500, %v2628
        %v2693 = vmul.f32 %v2501, %v2629
        %v2694 = vmul.f32 %v2502, %v2630
        %v2695 = vmul.f32 %v2503, %v2631
        %v2696 = vmul.f32 %v2504, %v2632
        %v2697 = vmul.f32 %v2505, %v2633
        %v2698 = vmul.f32 %v2506, %v2634
        %v2699 = vmul.f32 %v2507, %v2635
        %v2700 = vmul.f32 %v2508, %v2636
        %v2701 = vmul.f32 %v2509, %v2637
        %v2702 = vmul.f32 %v2510, %v2638
        %v2703 = vmul.f32 %v2511, %v2639
        %v2704 = vmul.f32 %v2512, %v2640
        %v2705 = vmul.f32 %v2513, %v2641
        %v2706 = vmul.f32 %v2514, %v2642
        %v2707 = vmul.f32 %v2515, %v2643
        %v2708 = vmul.f32 %v2516, %v2644
        %v2709 = vmul.f32 %v2517, %v2645
        %v2710 = vmul.f32 %v2518, %v2646
        %v2711 = vmul.f32 %v2519, %v2647
        %v2712 = vmul.f32 %v2520, %v2648
        %v2713 = vmul.f32 %v2521, %v2649
        %v2714 = vmul.f32 %v2522, %v2650
        %v2715 = vmul.f32 %v2523, %v2651
        %v2716 = vmul.f32 %v2524, %v2652
        %v2717 = vmul.f32 %v2525, %v2653
        %v2718 = vmul.f32 %v2526, %v2654
        %v2719 = vmul.f32 %v2527, %v2655
        %v2720 = vmul.f32 %v2528, %v2656
        %v2721 = vmul.f32 %v2529, %v2657
        %v2722 = vmul.f32 %v2530, %v2658
        %v2723 = vmul.f32 %v2531, %v2659
        %v2724 = vmul.f32 %v2532, %v2660
        %v2725 = vmul.f32 %v2533, %v2661
        %v2726 = vmul.f32 %v2534, %v2662
        %v2727 = vmul.f32 %v2535, %v2663
        %v2728 = vmul.f32 %v2536, %v2664
        %v2729 = vmul.f32 %v2537, %v2665
        %v2730 = vmul.f32 %v2538, %v2666
        %v2731 = vmul.f32 %v2539, %v2667
        %v2732 = vmul.f32 %v2540, %v2668
        %v2733 = vmul.f32 %v2541, %v2669
        %v2734 = vmul.f32 %v2542, %v2670
        %v2735 = vmul.f32 %v2543, %v2671
        %v2736 = vmul.f32 %v2544, %v2672
        %v2737 = vmul.f32 %v2545, %v2673
        %v2738 = vmul.f32 %v2546, %v2674
        %v2739 = vmul.f32 %v2547, %v2675
        %v2740 = vmul.f32 %v2548, %v2676
        %v2741 = vmul.f32 %v2549, %v2677
        %v2742 = vmul.f32 %v2550, %v2678
        %v2743 = vmul.f32 %v2551, %v2679
        %v2744 = vmul.f32 %v2552, %v2680
        %v2745 = vmul.f32 %v2553, %v2681
        %v2746 = vld [vmem:[%s8] sm:$0xff]
        %v2747 = vld [vmem:[%s8 + $0x8] sm:$0xff]
        %v2748 = vld [vmem:[%s8 + $0x10] sm:$0xff]
        %v2749 = vld [vmem:[%s8 + $0x18] sm:$0xff]
        %v2750 = vld [vmem:[%s9] sm:$0xff]
        %v2751 = vld [vmem:[%s9 + $0x8] sm:$0xff]
        %v2752 = vld [vmem:[%s9 + $0x10] sm:$0xff]
        %v2753 = vld [vmem:[%s9 + $0x18] sm:$0xff]
        %2755 = vset.pattern.permute.xlu0 0
        %2756 = vperm.xlu0 %2755, %v2750
        %v2757 = vpop.permute.xlu0 %2756
        %2760 = vset.pattern.permute.xlu0 0
        %2761 = vperm.xlu0 %2760, %v2751
        %v2762 = vpop.permute.xlu0 %2761
        %2765 = vset.pattern.permute.xlu0 0
        %2766 = vperm.xlu0 %2765, %v2752
        %v2767 = vpop.permute.xlu0 %2766
        %2770 = vset.pattern.permute.xlu0 0
        %2771 = vperm.xlu0 %2770, %v2753
        %v2772 = vpop.permute.xlu0 %2771
        %v2775 = vsel %vm1509, %v2746, 0
        %v2778 = vsel %vm1509, %v2747, 0
        %v2781 = vsel %vm1509, %v2748, 0
        %v2784 = vsel %vm1509, %v2749, 0
        %2786 = vmatpush.msra.mxu0 0.0
        %2787 = vmatpush.msra.mxu0 0.0
        %2788 = vmatpush.msra.mxu0 0.0
        %2789 = vmatpush.msra.mxu0 0.0
        %2790 = vmatpush.msra.mxu0 %v2732
        %2791 = vmatpush.msra.mxu0 %v2716
        %2792 = vmatpush.msra.mxu0 %v2700
        %2793 = vmatpush.msra.mxu0 %v2684
        %2794 = vmatpush.msra.mxu0 %v2730
        %2795 = vmatpush.msra.mxu0 %v2714
        %2796 = vmatpush.msra.mxu0 %v2698
        %2797 = vmatpush.msra.mxu0 %v2682
        %2798 = vmatpush.msra.mxu0 %v2730
        %2799 = vmatpush.msra.mxu0 %v2714
        %2800 = vmatpush.msra.mxu0 %v2698
        %2801 = vmatpush.msra.mxu0 %v2682
        %2802 = vmatmul.f32.gmra.mxu0 %v2775
        %v2803 = vpop.f32.mrf.mxu0
        %v2804 = vadd.f32 %v2757, %v2803
        %2805 = vmatmul.f32.gmra.mxu0 %v2778
        %v2806 = vpop.f32.mrf.mxu0
        %v2807 = vadd.f32 %v2762, %v2806
        %2808 = vmatmul.f32.gmra.mxu0 %v2781
        %v2809 = vpop.f32.mrf.mxu0
        %v2810 = vadd.f32 %v2767, %v2809
        %2811 = vmatmul.f32.gmra.mxu0 %v2784
        %v2812 = vpop.f32.mrf.mxu0
        %v2813 = vadd.f32 %v2772, %v2812
        %2814 = vdwg.mxu0
        %2815 = vmatpush.msra.mxu0 0.0
        %2816 = vmatpush.msra.mxu0 0.0
        %2817 = vmatpush.msra.mxu0 0.0
        %2818 = vmatpush.msra.mxu0 0.0
        %2819 = vmatpush.msra.mxu0 %v2733
        %2820 = vmatpush.msra.mxu0 %v2717
        %2821 = vmatpush.msra.mxu0 %v2701
        %2822 = vmatpush.msra.mxu0 %v2685
        %2823 = vmatpush.msra.mxu0 %v2731
        %2824 = vmatpush.msra.mxu0 %v2715
        %2825 = vmatpush.msra.mxu0 %v2699
        %2826 = vmatpush.msra.mxu0 %v2683
        %2827 = vmatpush.msra.mxu0 %v2731
        %2828 = vmatpush.msra.mxu0 %v2715
        %2829 = vmatpush.msra.mxu0 %v2699
        %2830 = vmatpush.msra.mxu0 %v2683
        %2831 = vmatmul.f32.gmra.mxu0 %v2775
        %v2832 = vpop.f32.mrf.mxu0
        %v2833 = vadd.f32 %v2757, %v2832
        %2834 = vmatmul.f32.gmra.mxu0 %v2778
        %v2835 = vpop.f32.mrf.mxu0
        %v2836 = vadd.f32 %v2762, %v2835
        %2837 = vmatmul.f32.gmra.mxu0 %v2781
        %v2838 = vpop.f32.mrf.mxu0
        %v2839 = vadd.f32 %v2767, %v2838
        %2840 = vmatmul.f32.gmra.mxu0 %v2784
        %v2841 = vpop.f32.mrf.mxu0
        %v2842 = vadd.f32 %v2772, %v2841
        %2843 = vdwg.mxu0
        %2844 = vmatpush.msra.mxu0 0.0
        %2845 = vmatpush.msra.mxu0 0.0
        %2846 = vmatpush.msra.mxu0 0.0
        %2847 = vmatpush.msra.mxu0 0.0
        %2848 = vmatpush.msra.mxu0 %v2734
        %2849 = vmatpush.msra.mxu0 %v2718
        %2850 = vmatpush.msra.mxu0 %v2702
        %2851 = vmatpush.msra.mxu0 %v2686
        %2852 = vmatpush.msra.mxu0 %v2732
        %2853 = vmatpush.msra.mxu0 %v2716
        %2854 = vmatpush.msra.mxu0 %v2700
        %2855 = vmatpush.msra.mxu0 %v2684
        %2856 = vmatpush.msra.mxu0 %v2730
        %2857 = vmatpush.msra.mxu0 %v2714
        %2858 = vmatpush.msra.mxu0 %v2698
        %2859 = vmatpush.msra.mxu0 %v2682
        %2860 = vmatmul.f32.gmra.mxu0 %v2775
        %v2861 = vpop.f32.mrf.mxu0
        %v2862 = vadd.f32 %v2757, %v2861
        %2863 = vmatmul.f32.gmra.mxu0 %v2778
        %v2864 = vpop.f32.mrf.mxu0
        %v2865 = vadd.f32 %v2762, %v2864
        %2866 = vmatmul.f32.gmra.mxu0 %v2781
        %v2867 = vpop.f32.mrf.mxu0
        %v2868 = vadd.f32 %v2767, %v2867
        %2869 = vmatmul.f32.gmra.mxu0 %v2784
        %v2870 = vpop.f32.mrf.mxu0
        %v2871 = vadd.f32 %v2772, %v2870
        %2872 = vdwg.mxu0
        %2873 = vmatpush.msra.mxu0 0.0
        %2874 = vmatpush.msra.mxu0 0.0
        %2875 = vmatpush.msra.mxu0 0.0
        %2876 = vmatpush.msra.mxu0 0.0
        %2877 = vmatpush.msra.mxu0 %v2735
        %2878 = vmatpush.msra.mxu0 %v2719
        %2879 = vmatpush.msra.mxu0 %v2703
        %2880 = vmatpush.msra.mxu0 %v2687
        %2881 = vmatpush.msra.mxu0 %v2733
        %2882 = vmatpush.msra.mxu0 %v2717
        %2883 = vmatpush.msra.mxu0 %v2701
        %2884 = vmatpush.msra.mxu0 %v2685
        %2885 = vmatpush.msra.mxu0 %v2731
        %2886 = vmatpush.msra.mxu0 %v2715
        %2887 = vmatpush.msra.mxu0 %v2699
        %2888 = vmatpush.msra.mxu0 %v2683
        %2889 = vmatmul.f32.gmra.mxu0 %v2775
        %v2890 = vpop.f32.mrf.mxu0
        %v2891 = vadd.f32 %v2757, %v2890
        %2892 = vmatmul.f32.gmra.mxu0 %v2778
        %v2893 = vpop.f32.mrf.mxu0
        %v2894 = vadd.f32 %v2762, %v2893
        %2895 = vmatmul.f32.gmra.mxu0 %v2781
        %v2896 = vpop.f32.mrf.mxu0
        %v2897 = vadd.f32 %v2767, %v2896
        %2898 = vmatmul.f32.gmra.mxu0 %v2784
        %v2899 = vpop.f32.mrf.mxu0
        %v2900 = vadd.f32 %v2772, %v2899
        %2901 = vdwg.mxu0
        %2902 = vmatpush.msra.mxu0 0.0
        %2903 = vmatpush.msra.mxu0 0.0
        %2904 = vmatpush.msra.mxu0 0.0
        %2905 = vmatpush.msra.mxu0 0.0
        %2906 = vmatpush.msra.mxu0 %v2736
        %2907 = vmatpush.msra.mxu0 %v2720
        %2908 = vmatpush.msra.mxu0 %v2704
        %2909 = vmatpush.msra.mxu0 %v2688
        %2910 = vmatpush.msra.mxu0 %v2734
        %2911 = vmatpush.msra.mxu0 %v2718
        %2912 = vmatpush.msra.mxu0 %v2702
        %2913 = vmatpush.msra.mxu0 %v2686
        %2914 = vmatpush.msra.mxu0 %v2732
        %2915 = vmatpush.msra.mxu0 %v2716
        %2916 = vmatpush.msra.mxu0 %v2700
        %2917 = vmatpush.msra.mxu0 %v2684
        %2918 = vmatmul.f32.gmra.mxu0 %v2775
        %v2919 = vpop.f32.mrf.mxu0
        %v2920 = vadd.f32 %v2757, %v2919
        %2921 = vmatmul.f32.gmra.mxu0 %v2778
        %v2922 = vpop.f32.mrf.mxu0
        %v2923 = vadd.f32 %v2762, %v2922
        %2924 = vmatmul.f32.gmra.mxu0 %v2781
        %v2925 = vpop.f32.mrf.mxu0
        %v2926 = vadd.f32 %v2767, %v2925
        %2927 = vmatmul.f32.gmra.mxu0 %v2784
        %v2928 = vpop.f32.mrf.mxu0
        %v2929 = vadd.f32 %v2772, %v2928
        %2930 = vdwg.mxu0
        %2931 = vmatpush.msra.mxu0 0.0
        %2932 = vmatpush.msra.mxu0 0.0
        %2933 = vmatpush.msra.mxu0 0.0
        %2934 = vmatpush.msra.mxu0 0.0
        %2935 = vmatpush.msra.mxu0 %v2737
        %2936 = vmatpush.msra.mxu0 %v2721
        %2937 = vmatpush.msra.mxu0 %v2705
        %2938 = vmatpush.msra.mxu0 %v2689
        %2939 = vmatpush.msra.mxu0 %v2735
        %2940 = vmatpush.msra.mxu0 %v2719
        %2941 = vmatpush.msra.mxu0 %v2703
        %2942 = vmatpush.msra.mxu0 %v2687
        %2943 = vmatpush.msra.mxu0 %v2733
        %2944 = vmatpush.msra.mxu0 %v2717
        %2945 = vmatpush.msra.mxu0 %v2701
        %2946 = vmatpush.msra.mxu0 %v2685
        %2947 = vmatmul.f32.gmra.mxu0 %v2775
        %v2948 = vpop.f32.mrf.mxu0
        %v2949 = vadd.f32 %v2757, %v2948
        %2950 = vmatmul.f32.gmra.mxu0 %v2778
        %v2951 = vpop.f32.mrf.mxu0
        %v2952 = vadd.f32 %v2762, %v2951
        %2953 = vmatmul.f32.gmra.mxu0 %v2781
        %v2954 = vpop.f32.mrf.mxu0
        %v2955 = vadd.f32 %v2767, %v2954
        %2956 = vmatmul.f32.gmra.mxu0 %v2784
        %v2957 = vpop.f32.mrf.mxu0
        %v2958 = vadd.f32 %v2772, %v2957
        %2959 = vdwg.mxu0
        %2960 = vmatpush.msra.mxu0 0.0
        %2961 = vmatpush.msra.mxu0 0.0
        %2962 = vmatpush.msra.mxu0 0.0
        %2963 = vmatpush.msra.mxu0 0.0
        %2964 = vmatpush.msra.mxu0 %v2738
        %2965 = vmatpush.msra.mxu0 %v2722
        %2966 = vmatpush.msra.mxu0 %v2706
        %2967 = vmatpush.msra.mxu0 %v2690
        %2968 = vmatpush.msra.mxu0 %v2736
        %2969 = vmatpush.msra.mxu0 %v2720
        %2970 = vmatpush.msra.mxu0 %v2704
        %2971 = vmatpush.msra.mxu0 %v2688
        %2972 = vmatpush.msra.mxu0 %v2734
        %2973 = vmatpush.msra.mxu0 %v2718
        %2974 = vmatpush.msra.mxu0 %v2702
        %2975 = vmatpush.msra.mxu0 %v2686
        %2976 = vmatmul.f32.gmra.mxu0 %v2775
        %v2977 = vpop.f32.mrf.mxu0
        %v2978 = vadd.f32 %v2757, %v2977
        %2979 = vmatmul.f32.gmra.mxu0 %v2778
        %v2980 = vpop.f32.mrf.mxu0
        %v2981 = vadd.f32 %v2762, %v2980
        %2982 = vmatmul.f32.gmra.mxu0 %v2781
        %v2983 = vpop.f32.mrf.mxu0
        %v2984 = vadd.f32 %v2767, %v2983
        %2985 = vmatmul.f32.gmra.mxu0 %v2784
        %v2986 = vpop.f32.mrf.mxu0
        %v2987 = vadd.f32 %v2772, %v2986
        %2988 = vdwg.mxu0
        %2989 = vmatpush.msra.mxu0 0.0
        %2990 = vmatpush.msra.mxu0 0.0
        %2991 = vmatpush.msra.mxu0 0.0
        %2992 = vmatpush.msra.mxu0 0.0
        %2993 = vmatpush.msra.mxu0 %v2739
        %2994 = vmatpush.msra.mxu0 %v2723
        %2995 = vmatpush.msra.mxu0 %v2707
        %2996 = vmatpush.msra.mxu0 %v2691
        %2997 = vmatpush.msra.mxu0 %v2737
        %2998 = vmatpush.msra.mxu0 %v2721
        %2999 = vmatpush.msra.mxu0 %v2705
        %3000 = vmatpush.msra.mxu0 %v2689
        %3001 = vmatpush.msra.mxu0 %v2735
        %3002 = vmatpush.msra.mxu0 %v2719
        %3003 = vmatpush.msra.mxu0 %v2703
        %3004 = vmatpush.msra.mxu0 %v2687
        %3005 = vmatmul.f32.gmra.mxu0 %v2775
        %v3006 = vpop.f32.mrf.mxu0
        %v3007 = vadd.f32 %v2757, %v3006
        %3008 = vmatmul.f32.gmra.mxu0 %v2778
        %v3009 = vpop.f32.mrf.mxu0
        %v3010 = vadd.f32 %v2762, %v3009
        %3011 = vmatmul.f32.gmra.mxu0 %v2781
        %v3012 = vpop.f32.mrf.mxu0
        %v3013 = vadd.f32 %v2767, %v3012
        %3014 = vmatmul.f32.gmra.mxu0 %v2784
        %v3015 = vpop.f32.mrf.mxu0
        %v3016 = vadd.f32 %v2772, %v3015
        %3017 = vdwg.mxu0
        %3018 = vmatpush.msra.mxu0 0.0
        %3019 = vmatpush.msra.mxu0 0.0
        %3020 = vmatpush.msra.mxu0 0.0
        %3021 = vmatpush.msra.mxu0 0.0
        %3022 = vmatpush.msra.mxu0 %v2740
        %3023 = vmatpush.msra.mxu0 %v2724
        %3024 = vmatpush.msra.mxu0 %v2708
        %3025 = vmatpush.msra.mxu0 %v2692
        %3026 = vmatpush.msra.mxu0 %v2738
        %3027 = vmatpush.msra.mxu0 %v2722
        %3028 = vmatpush.msra.mxu0 %v2706
        %3029 = vmatpush.msra.mxu0 %v2690
        %3030 = vmatpush.msra.mxu0 %v2736
        %3031 = vmatpush.msra.mxu0 %v2720
        %3032 = vmatpush.msra.mxu0 %v2704
        %3033 = vmatpush.msra.mxu0 %v2688
        %3034 = vmatmul.f32.gmra.mxu0 %v2775
        %v3035 = vpop.f32.mrf.mxu0
        %v3036 = vadd.f32 %v2757, %v3035
        %3037 = vmatmul.f32.gmra.mxu0 %v2778
        %v3038 = vpop.f32.mrf.mxu0
        %v3039 = vadd.f32 %v2762, %v3038
        %3040 = vmatmul.f32.gmra.mxu0 %v2781
        %v3041 = vpop.f32.mrf.mxu0
        %v3042 = vadd.f32 %v2767, %v3041
        %3043 = vmatmul.f32.gmra.mxu0 %v2784
        %v3044 = vpop.f32.mrf.mxu0
        %v3045 = vadd.f32 %v2772, %v3044
        %3046 = vdwg.mxu0
        %3047 = vmatpush.msra.mxu0 0.0
        %3048 = vmatpush.msra.mxu0 0.0
        %3049 = vmatpush.msra.mxu0 0.0
        %3050 = vmatpush.msra.mxu0 0.0
        %3051 = vmatpush.msra.mxu0 %v2741
        %3052 = vmatpush.msra.mxu0 %v2725
        %3053 = vmatpush.msra.mxu0 %v2709
        %3054 = vmatpush.msra.mxu0 %v2693
        %3055 = vmatpush.msra.mxu0 %v2739
        %3056 = vmatpush.msra.mxu0 %v2723
        %3057 = vmatpush.msra.mxu0 %v2707
        %3058 = vmatpush.msra.mxu0 %v2691
        %3059 = vmatpush.msra.mxu0 %v2737
        %3060 = vmatpush.msra.mxu0 %v2721
        %3061 = vmatpush.msra.mxu0 %v2705
        %3062 = vmatpush.msra.mxu0 %v2689
        %3063 = vmatmul.f32.gmra.mxu0 %v2775
        %v3064 = vpop.f32.mrf.mxu0
        %v3065 = vadd.f32 %v2757, %v3064
        %3066 = vmatmul.f32.gmra.mxu0 %v2778
        %v3067 = vpop.f32.mrf.mxu0
        %v3068 = vadd.f32 %v2762, %v3067
        %3069 = vmatmul.f32.gmra.mxu0 %v2781
        %v3070 = vpop.f32.mrf.mxu0
        %v3071 = vadd.f32 %v2767, %v3070
        %3072 = vmatmul.f32.gmra.mxu0 %v2784
        %v3073 = vpop.f32.mrf.mxu0
        %v3074 = vadd.f32 %v2772, %v3073
        %3075 = vdwg.mxu0
        %3076 = vmatpush.msra.mxu0 0.0
        %3077 = vmatpush.msra.mxu0 0.0
        %3078 = vmatpush.msra.mxu0 0.0
        %3079 = vmatpush.msra.mxu0 0.0
        %3080 = vmatpush.msra.mxu0 %v2742
        %3081 = vmatpush.msra.mxu0 %v2726
        %3082 = vmatpush.msra.mxu0 %v2710
        %3083 = vmatpush.msra.mxu0 %v2694
        %3084 = vmatpush.msra.mxu0 %v2740
        %3085 = vmatpush.msra.mxu0 %v2724
        %3086 = vmatpush.msra.mxu0 %v2708
        %3087 = vmatpush.msra.mxu0 %v2692
        %3088 = vmatpush.msra.mxu0 %v2738
        %3089 = vmatpush.msra.mxu0 %v2722
        %3090 = vmatpush.msra.mxu0 %v2706
        %3091 = vmatpush.msra.mxu0 %v2690
        %3092 = vmatmul.f32.gmra.mxu0 %v2775
        %v3093 = vpop.f32.mrf.mxu0
        %v3094 = vadd.f32 %v2757, %v3093
        %3095 = vmatmul.f32.gmra.mxu0 %v2778
        %v3096 = vpop.f32.mrf.mxu0
        %v3097 = vadd.f32 %v2762, %v3096
        %3098 = vmatmul.f32.gmra.mxu0 %v2781
        %v3099 = vpop.f32.mrf.mxu0
        %v3100 = vadd.f32 %v2767, %v3099
        %3101 = vmatmul.f32.gmra.mxu0 %v2784
        %v3102 = vpop.f32.mrf.mxu0
        %v3103 = vadd.f32 %v2772, %v3102
        %3104 = vdwg.mxu0
        %3105 = vmatpush.msra.mxu0 0.0
        %3106 = vmatpush.msra.mxu0 0.0
        %3107 = vmatpush.msra.mxu0 0.0
        %3108 = vmatpush.msra.mxu0 0.0
        %3109 = vmatpush.msra.mxu0 %v2743
        %3110 = vmatpush.msra.mxu0 %v2727
        %3111 = vmatpush.msra.mxu0 %v2711
        %3112 = vmatpush.msra.mxu0 %v2695
        %3113 = vmatpush.msra.mxu0 %v2741
        %3114 = vmatpush.msra.mxu0 %v2725
        %3115 = vmatpush.msra.mxu0 %v2709
        %3116 = vmatpush.msra.mxu0 %v2693
        %3117 = vmatpush.msra.mxu0 %v2739
        %3118 = vmatpush.msra.mxu0 %v2723
        %3119 = vmatpush.msra.mxu0 %v2707
        %3120 = vmatpush.msra.mxu0 %v2691
        %3121 = vmatmul.f32.gmra.mxu0 %v2775
        %v3122 = vpop.f32.mrf.mxu0
        %v3123 = vadd.f32 %v2757, %v3122
        %3124 = vmatmul.f32.gmra.mxu0 %v2778
        %v3125 = vpop.f32.mrf.mxu0
        %v3126 = vadd.f32 %v2762, %v3125
        %3127 = vmatmul.f32.gmra.mxu0 %v2781
        %v3128 = vpop.f32.mrf.mxu0
        %v3129 = vadd.f32 %v2767, %v3128
        %3130 = vmatmul.f32.gmra.mxu0 %v2784
        %v3131 = vpop.f32.mrf.mxu0
        %v3132 = vadd.f32 %v2772, %v3131
        %3133 = vdwg.mxu0
        %3134 = vmatpush.msra.mxu0 0.0
        %3135 = vmatpush.msra.mxu0 0.0
        %3136 = vmatpush.msra.mxu0 0.0
        %3137 = vmatpush.msra.mxu0 0.0
        %3138 = vmatpush.msra.mxu0 %v2744
        %3139 = vmatpush.msra.mxu0 %v2728
        %3140 = vmatpush.msra.mxu0 %v2712
        %3141 = vmatpush.msra.mxu0 %v2696
        %3142 = vmatpush.msra.mxu0 %v2742
        %3143 = vmatpush.msra.mxu0 %v2726
        %3144 = vmatpush.msra.mxu0 %v2710
        %3145 = vmatpush.msra.mxu0 %v2694
        %3146 = vmatpush.msra.mxu0 %v2740
        %3147 = vmatpush.msra.mxu0 %v2724
        %3148 = vmatpush.msra.mxu0 %v2708
        %3149 = vmatpush.msra.mxu0 %v2692
        %3150 = vmatmul.f32.gmra.mxu0 %v2775
        %v3151 = vpop.f32.mrf.mxu0
        %v3152 = vadd.f32 %v2757, %v3151
        %3153 = vmatmul.f32.gmra.mxu0 %v2778
        %v3154 = vpop.f32.mrf.mxu0
        %v3155 = vadd.f32 %v2762, %v3154
        %3156 = vmatmul.f32.gmra.mxu0 %v2781
        %v3157 = vpop.f32.mrf.mxu0
        %v3158 = vadd.f32 %v2767, %v3157
        %3159 = vmatmul.f32.gmra.mxu0 %v2784
        %v3160 = vpop.f32.mrf.mxu0
        %v3161 = vadd.f32 %v2772, %v3160
        %3162 = vdwg.mxu0
        %3163 = vmatpush.msra.mxu0 0.0
        %3164 = vmatpush.msra.mxu0 0.0
        %3165 = vmatpush.msra.mxu0 0.0
        %3166 = vmatpush.msra.mxu0 0.0
        %3167 = vmatpush.msra.mxu0 %v2745
        %3168 = vmatpush.msra.mxu0 %v2729
        %3169 = vmatpush.msra.mxu0 %v2713
        %3170 = vmatpush.msra.mxu0 %v2697
        %3171 = vmatpush.msra.mxu0 %v2743
        %3172 = vmatpush.msra.mxu0 %v2727
        %3173 = vmatpush.msra.mxu0 %v2711
        %3174 = vmatpush.msra.mxu0 %v2695
        %3175 = vmatpush.msra.mxu0 %v2741
        %3176 = vmatpush.msra.mxu0 %v2725
        %3177 = vmatpush.msra.mxu0 %v2709
        %3178 = vmatpush.msra.mxu0 %v2693
        %3179 = vmatmul.f32.gmra.mxu0 %v2775
        %v3180 = vpop.f32.mrf.mxu0
        %v3181 = vadd.f32 %v2757, %v3180
        %3182 = vmatmul.f32.gmra.mxu0 %v2778
        %v3183 = vpop.f32.mrf.mxu0
        %v3184 = vadd.f32 %v2762, %v3183
        %3185 = vmatmul.f32.gmra.mxu0 %v2781
        %v3186 = vpop.f32.mrf.mxu0
        %v3187 = vadd.f32 %v2767, %v3186
        %3188 = vmatmul.f32.gmra.mxu0 %v2784
        %v3189 = vpop.f32.mrf.mxu0
        %v3190 = vadd.f32 %v2772, %v3189
        %3191 = vdwg.mxu0
        %3192 = vmatpush.msra.mxu0 0.0
        %3193 = vmatpush.msra.mxu0 0.0
        %3194 = vmatpush.msra.mxu0 0.0
        %3195 = vmatpush.msra.mxu0 0.0
        %3196 = vmatpush.msra.mxu0 %v2744
        %3197 = vmatpush.msra.mxu0 %v2728
        %3198 = vmatpush.msra.mxu0 %v2712
        %3199 = vmatpush.msra.mxu0 %v2696
        %3200 = vmatpush.msra.mxu0 %v2744
        %3201 = vmatpush.msra.mxu0 %v2728
        %3202 = vmatpush.msra.mxu0 %v2712
        %3203 = vmatpush.msra.mxu0 %v2696
        %3204 = vmatpush.msra.mxu0 %v2742
        %3205 = vmatpush.msra.mxu0 %v2726
        %3206 = vmatpush.msra.mxu0 %v2710
        %3207 = vmatpush.msra.mxu0 %v2694
        %3208 = vmatmul.f32.gmra.mxu0 %v2775
        %v3209 = vpop.f32.mrf.mxu0
        %v3210 = vadd.f32 %v2757, %v3209
        %3211 = vmatmul.f32.gmra.mxu0 %v2778
        %v3212 = vpop.f32.mrf.mxu0
        %v3213 = vadd.f32 %v2762, %v3212
        %3214 = vmatmul.f32.gmra.mxu0 %v2781
        %v3215 = vpop.f32.mrf.mxu0
        %v3216 = vadd.f32 %v2767, %v3215
        %3217 = vmatmul.f32.gmra.mxu0 %v2784
        %v3218 = vpop.f32.mrf.mxu0
        %v3219 = vadd.f32 %v2772, %v3218
        %3220 = vdwg.mxu0
        %3221 = vmatpush.msra.mxu0 0.0
        %3222 = vmatpush.msra.mxu0 0.0
        %3223 = vmatpush.msra.mxu0 0.0
        %3224 = vmatpush.msra.mxu0 0.0
        %3225 = vmatpush.msra.mxu0 %v2745
        %3226 = vmatpush.msra.mxu0 %v2729
        %3227 = vmatpush.msra.mxu0 %v2713
        %3228 = vmatpush.msra.mxu0 %v2697
        %3229 = vmatpush.msra.mxu0 %v2745
        %3230 = vmatpush.msra.mxu0 %v2729
        %3231 = vmatpush.msra.mxu0 %v2713
        %3232 = vmatpush.msra.mxu0 %v2697
        %3233 = vmatpush.msra.mxu0 %v2743
        %3234 = vmatpush.msra.mxu0 %v2727
        %3235 = vmatpush.msra.mxu0 %v2711
        %3236 = vmatpush.msra.mxu0 %v2695
        %3237 = vmatmul.f32.gmra.mxu0 %v2775
        %v3238 = vpop.f32.mrf.mxu0
        %v3239 = vadd.f32 %v2757, %v3238
        %3240 = vmatmul.f32.gmra.mxu0 %v2778
        %v3241 = vpop.f32.mrf.mxu0
        %v3242 = vadd.f32 %v2762, %v3241
        %3243 = vmatmul.f32.gmra.mxu0 %v2781
        %v3244 = vpop.f32.mrf.mxu0
        %v3245 = vadd.f32 %v2767, %v3244
        %3246 = vmatmul.f32.gmra.mxu0 %v2784
        %v3247 = vpop.f32.mrf.mxu0
        %v3248 = vadd.f32 %v2772, %v3247
        %3249 = vdwg.mxu0
        %v3250 = vadd.f32 %v2804, %v2833
        %v3251 = vadd.f32 %v3250, %v2862
        %v3252 = vadd.f32 %v3251, %v2891
        %v3253 = vadd.f32 %v3252, %v2920
        %v3254 = vadd.f32 %v3253, %v2949
        %v3255 = vadd.f32 %v3254, %v2978
        %v3256 = vadd.f32 %v3255, %v3007
        %v3257 = vadd.f32 %v3256, %v3036
        %v3258 = vadd.f32 %v3257, %v3065
        %v3259 = vadd.f32 %v3258, %v3094
        %v3260 = vadd.f32 %v3259, %v3123
        %v3261 = vadd.f32 %v3260, %v3152
        %v3262 = vadd.f32 %v3261, %v3181
        %v3263 = vadd.f32 %v3262, %v3210
        %v3264 = vadd.f32 %v3263, %v3239
        %3265 = vadd.xlane.f32.xlu0 %v3264
        %v3266 = vpop.xlane.xlu0 %3265
        %v3267 = vadd.f32 %v2807, %v2836
        %v3268 = vadd.f32 %v3267, %v2865
        %v3269 = vadd.f32 %v3268, %v2894
        %v3270 = vadd.f32 %v3269, %v2923
        %v3271 = vadd.f32 %v3270, %v2952
        %v3272 = vadd.f32 %v3271, %v2981
        %v3273 = vadd.f32 %v3272, %v3010
        %v3274 = vadd.f32 %v3273, %v3039
        %v3275 = vadd.f32 %v3274, %v3068
        %v3276 = vadd.f32 %v3275, %v3097
        %v3277 = vadd.f32 %v3276, %v3126
        %v3278 = vadd.f32 %v3277, %v3155
        %v3279 = vadd.f32 %v3278, %v3184
        %v3280 = vadd.f32 %v3279, %v3213
        %v3281 = vadd.f32 %v3280, %v3242
        %3282 = vadd.xlane.f32.xlu0 %v3281
        %v3283 = vpop.xlane.xlu0 %3282
        %v3284 = vadd.f32 %v2810, %v2839
        %v3285 = vadd.f32 %v3284, %v2868
        %v3286 = vadd.f32 %v3285, %v2897
        %v3287 = vadd.f32 %v3286, %v2926
        %v3288 = vadd.f32 %v3287, %v2955
        %v3289 = vadd.f32 %v3288, %v2984
        %v3290 = vadd.f32 %v3289, %v3013
        %v3291 = vadd.f32 %v3290, %v3042
        %v3292 = vadd.f32 %v3291, %v3071
        %v3293 = vadd.f32 %v3292, %v3100
        %v3294 = vadd.f32 %v3293, %v3129
        %v3295 = vadd.f32 %v3294, %v3158
        %v3296 = vadd.f32 %v3295, %v3187
        %v3297 = vadd.f32 %v3296, %v3216
        %v3298 = vadd.f32 %v3297, %v3245
        %3299 = vadd.xlane.f32.xlu0 %v3298
        %v3300 = vpop.xlane.xlu0 %3299
        %v3301 = vadd.f32 %v2813, %v2842
        %v3302 = vadd.f32 %v3301, %v2871
        %v3303 = vadd.f32 %v3302, %v2900
        %v3304 = vadd.f32 %v3303, %v2929
        %v3305 = vadd.f32 %v3304, %v2958
        %v3306 = vadd.f32 %v3305, %v2987
        %v3307 = vadd.f32 %v3306, %v3016
        %v3308 = vadd.f32 %v3307, %v3045
        %v3309 = vadd.f32 %v3308, %v3074
        %v3310 = vadd.f32 %v3309, %v3103
        %v3311 = vadd.f32 %v3310, %v3132
        %v3312 = vadd.f32 %v3311, %v3161
        %v3313 = vadd.f32 %v3312, %v3190
        %v3314 = vadd.f32 %v3313, %v3219
        %v3315 = vadd.f32 %v3314, %v3248
        %3316 = vadd.xlane.f32.xlu0 %v3315
        %v3317 = vpop.xlane.xlu0 %3316
        %3318 = vadd.xlane.f32.xlu0 %v3250
        %v3319 = vpop.xlane.xlu0 %3318
        %3320 = vadd.xlane.f32.xlu0 %v3267
        %v3321 = vpop.xlane.xlu0 %3320
        %3322 = vadd.xlane.f32.xlu0 %v3284
        %v3323 = vpop.xlane.xlu0 %3322
        %3324 = vadd.xlane.f32.xlu0 %v3301
        %v3325 = vpop.xlane.xlu0 %3324
        %v3326 = vadd.f32 %v3266, %v3319
        %v3327 = vadd.f32 %v3283, %v3321
        %v3328 = vadd.f32 %v3300, %v3323
        %v3329 = vadd.f32 %v3317, %v3325
        %v3330 = vadd.f32 %v3210, %v3239
        %3331 = vadd.xlane.f32.xlu0 %v3330
        %v3332 = vpop.xlane.xlu0 %3331
        %v3333 = vadd.f32 %v3213, %v3242
        %3334 = vadd.xlane.f32.xlu0 %v3333
        %v3335 = vpop.xlane.xlu0 %3334
        %v3336 = vadd.f32 %v3216, %v3245
        %3337 = vadd.xlane.f32.xlu0 %v3336
        %v3338 = vpop.xlane.xlu0 %3337
        %v3339 = vadd.f32 %v3219, %v3248
        %3340 = vadd.xlane.f32.xlu0 %v3339
        %v3341 = vpop.xlane.xlu0 %3340
        %v3342 = vadd.f32 %v3326, %v3332
        %v3343 = vadd.f32 %v3327, %v3335
        %v3344 = vadd.f32 %v3328, %v3338
        %v3345 = vadd.f32 %v3329, %v3341
        %v3346 = vmul.f32 %v2804, %v2804
        %v3347 = vmul.f32 %v2833, %v2833
        %v3348 = vmul.f32 %v2862, %v2862
        %v3349 = vmul.f32 %v2891, %v2891
        %v3350 = vmul.f32 %v2920, %v2920
        %v3351 = vmul.f32 %v2949, %v2949
        %v3352 = vmul.f32 %v2978, %v2978
        %v3353 = vmul.f32 %v3007, %v3007
        %v3354 = vmul.f32 %v3036, %v3036
        %v3355 = vmul.f32 %v3065, %v3065
        %v3356 = vmul.f32 %v3094, %v3094
        %v3357 = vmul.f32 %v3123, %v3123
        %v3358 = vmul.f32 %v3152, %v3152
        %v3359 = vmul.f32 %v3181, %v3181
        %v3360 = vmul.f32 %v3210, %v3210
        %v3361 = vmul.f32 %v3239, %v3239
        %v3362 = vmul.f32 %v2807, %v2807
        %v3363 = vmul.f32 %v2836, %v2836
        %v3364 = vmul.f32 %v2865, %v2865
        %v3365 = vmul.f32 %v2894, %v2894
        %v3366 = vmul.f32 %v2923, %v2923
        %v3367 = vmul.f32 %v2952, %v2952
        %v3368 = vmul.f32 %v2981, %v2981
        %v3369 = vmul.f32 %v3010, %v3010
        %v3370 = vmul.f32 %v3039, %v3039
        %v3371 = vmul.f32 %v3068, %v3068
        %v3372 = vmul.f32 %v3097, %v3097
        %v3373 = vmul.f32 %v3126, %v3126
        %v3374 = vmul.f32 %v3155, %v3155
        %v3375 = vmul.f32 %v3184, %v3184
        %v3376 = vmul.f32 %v3213, %v3213
        %v3377 = vmul.f32 %v3242, %v3242
        %v3378 = vmul.f32 %v2810, %v2810
        %v3379 = vmul.f32 %v2839, %v2839
        %v3380 = vmul.f32 %v2868, %v2868
        %v3381 = vmul.f32 %v2897, %v2897
        %v3382 = vmul.f32 %v2926, %v2926
        %v3383 = vmul.f32 %v2955, %v2955
        %v3384 = vmul.f32 %v2984, %v2984
        %v3385 = vmul.f32 %v3013, %v3013
        %v3386 = vmul.f32 %v3042, %v3042
        %v3387 = vmul.f32 %v3071, %v3071
        %v3388 = vmul.f32 %v3100, %v3100
        %v3389 = vmul.f32 %v3129, %v3129
        %v3390 = vmul.f32 %v3158, %v3158
        %v3391 = vmul.f32 %v3187, %v3187
        %v3392 = vmul.f32 %v3216, %v3216
        %v3393 = vmul.f32 %v3245, %v3245
        %v3394 = vmul.f32 %v2813, %v2813
        %v3395 = vmul.f32 %v2842, %v2842
        %v3396 = vmul.f32 %v2871, %v2871
        %v3397 = vmul.f32 %v2900, %v2900
        %v3398 = vmul.f32 %v2929, %v2929
        %v3399 = vmul.f32 %v2958, %v2958
        %v3400 = vmul.f32 %v2987, %v2987
        %v3401 = vmul.f32 %v3016, %v3016
        %v3402 = vmul.f32 %v3045, %v3045
        %v3403 = vmul.f32 %v3074, %v3074
        %v3404 = vmul.f32 %v3103, %v3103
        %v3405 = vmul.f32 %v3132, %v3132
        %v3406 = vmul.f32 %v3161, %v3161
        %v3407 = vmul.f32 %v3190, %v3190
        %v3408 = vmul.f32 %v3219, %v3219
        %v3409 = vmul.f32 %v3248, %v3248
        %v3410 = vadd.f32 %v3346, %v3347
        %v3411 = vadd.f32 %v3410, %v3348
        %v3412 = vadd.f32 %v3411, %v3349
        %v3413 = vadd.f32 %v3412, %v3350
        %v3414 = vadd.f32 %v3413, %v3351
        %v3415 = vadd.f32 %v3414, %v3352
        %v3416 = vadd.f32 %v3415, %v3353
        %v3417 = vadd.f32 %v3416, %v3354
        %v3418 = vadd.f32 %v3417, %v3355
        %v3419 = vadd.f32 %v3418, %v3356
        %v3420 = vadd.f32 %v3419, %v3357
        %v3421 = vadd.f32 %v3420, %v3358
        %v3422 = vadd.f32 %v3421, %v3359
        %v3423 = vadd.f32 %v3422, %v3360
        %v3424 = vadd.f32 %v3423, %v3361
        %3425 = vadd.xlane.f32.xlu0 %v3424
        %v3426 = vpop.xlane.xlu0 %3425
        %v3427 = vadd.f32 %v3362, %v3363
        %v3428 = vadd.f32 %v3427, %v3364
        %v3429 = vadd.f32 %v3428, %v3365
        %v3430 = vadd.f32 %v3429, %v3366
        %v3431 = vadd.f32 %v3430, %v3367
        %v3432 = vadd.f32 %v3431, %v3368
        %v3433 = vadd.f32 %v3432, %v3369
        %v3434 = vadd.f32 %v3433, %v3370
        %v3435 = vadd.f32 %v3434, %v3371
        %v3436 = vadd.f32 %v3435, %v3372
        %v3437 = vadd.f32 %v3436, %v3373
        %v3438 = vadd.f32 %v3437, %v3374
        %v3439 = vadd.f32 %v3438, %v3375
        %v3440 = vadd.f32 %v3439, %v3376
        %v3441 = vadd.f32 %v3440, %v3377
        %3442 = vadd.xlane.f32.xlu0 %v3441
        %v3443 = vpop.xlane.xlu0 %3442
        %v3444 = vadd.f32 %v3378, %v3379
        %v3445 = vadd.f32 %v3444, %v3380
        %v3446 = vadd.f32 %v3445, %v3381
        %v3447 = vadd.f32 %v3446, %v3382
        %v3448 = vadd.f32 %v3447, %v3383
        %v3449 = vadd.f32 %v3448, %v3384
        %v3450 = vadd.f32 %v3449, %v3385
        %v3451 = vadd.f32 %v3450, %v3386
        %v3452 = vadd.f32 %v3451, %v3387
        %v3453 = vadd.f32 %v3452, %v3388
        %v3454 = vadd.f32 %v3453, %v3389
        %v3455 = vadd.f32 %v3454, %v3390
        %v3456 = vadd.f32 %v3455, %v3391
        %v3457 = vadd.f32 %v3456, %v3392
        %v3458 = vadd.f32 %v3457, %v3393
        %3459 = vadd.xlane.f32.xlu0 %v3458
        %v3460 = vpop.xlane.xlu0 %3459
        %v3461 = vadd.f32 %v3394, %v3395
        %v3462 = vadd.f32 %v3461, %v3396
        %v3463 = vadd.f32 %v3462, %v3397
        %v3464 = vadd.f32 %v3463, %v3398
        %v3465 = vadd.f32 %v3464, %v3399
        %v3466 = vadd.f32 %v3465, %v3400
        %v3467 = vadd.f32 %v3466, %v3401
        %v3468 = vadd.f32 %v3467, %v3402
        %v3469 = vadd.f32 %v3468, %v3403
        %v3470 = vadd.f32 %v3469, %v3404
        %v3471 = vadd.f32 %v3470, %v3405
        %v3472 = vadd.f32 %v3471, %v3406
        %v3473 = vadd.f32 %v3472, %v3407
        %v3474 = vadd.f32 %v3473, %v3408
        %v3475 = vadd.f32 %v3474, %v3409
        %3476 = vadd.xlane.f32.xlu0 %v3475
        %v3477 = vpop.xlane.xlu0 %3476
        %3478 = vadd.xlane.f32.xlu0 %v3410
        %v3479 = vpop.xlane.xlu0 %3478
        %3480 = vadd.xlane.f32.xlu0 %v3427
        %v3481 = vpop.xlane.xlu0 %3480
        %3482 = vadd.xlane.f32.xlu0 %v3444
        %v3483 = vpop.xlane.xlu0 %3482
        %3484 = vadd.xlane.f32.xlu0 %v3461
        %v3485 = vpop.xlane.xlu0 %3484
        %v3486 = vadd.f32 %v3426, %v3479
        %v3487 = vadd.f32 %v3443, %v3481
        %v3488 = vadd.f32 %v3460, %v3483
        %v3489 = vadd.f32 %v3477, %v3485
        %v3490 = vadd.f32 %v3360, %v3361
        %3491 = vadd.xlane.f32.xlu0 %v3490
        %v3492 = vpop.xlane.xlu0 %3491
        %v3493 = vadd.f32 %v3376, %v3377
        %3494 = vadd.xlane.f32.xlu0 %v3493
        %v3495 = vpop.xlane.xlu0 %3494
        %v3496 = vadd.f32 %v3392, %v3393
        %3497 = vadd.xlane.f32.xlu0 %v3496
        %v3498 = vpop.xlane.xlu0 %3497
        %v3499 = vadd.f32 %v3408, %v3409
        %3500 = vadd.xlane.f32.xlu0 %v3499
        %v3501 = vpop.xlane.xlu0 %3500
        %v3502 = vadd.f32 %v3486, %v3492
        %v3503 = vadd.f32 %v3487, %v3495
        %v3504 = vadd.f32 %v3488, %v3498
        %v3505 = vadd.f32 %v3489, %v3501
        %v3506 = vmul.f32 %v3342, %v976
        %v3507 = vmul.f32 %v3343, %v976
        %v3508 = vmul.f32 %v3344, %v976
        %v3509 = vmul.f32 %v3345, %v976
        %v3510 = vmul.f32 %v3502, %v976
        %v3511 = vmul.f32 %v3503, %v976
        %v3512 = vmul.f32 %v3504, %v976
        %v3513 = vmul.f32 %v3505, %v976
        %v3514 = vmul.f32 %v3506, %v3506
        %v3515 = vmul.f32 %v3507, %v3507
        %v3516 = vmul.f32 %v3508, %v3508
        %v3517 = vmul.f32 %v3509, %v3509
        %v3518 = vsub.f32 %v3510, %v3514
        %v3519 = vsub.f32 %v3511, %v3515
        %v3520 = vsub.f32 %v3512, %v3516
        %v3521 = vsub.f32 %v3513, %v3517
        %v3522 = vadd.f32 %v3518, 1e-05
        %v3523 = vadd.f32 %v3519, 1e-05
        %v3524 = vadd.f32 %v3520, 1e-05
        %v3525 = vadd.f32 %v3521, 1e-05
        %v3526 = vrsqrt.pop %v3522
        %v3527 = vmul.f32 %v3526, %v3522
        %v3528 = vmul.f32 %v3527, %v3526
        %v3529 = vmul.f32 0.5, %v3528
        %v3530 = vsub.f32 1.5, %v3529
        %v3531 = vmul.f32 %v3526, %v3530
        %vm3532 = vweird.f32 %v3522
        %vm3533 = vweird.f32 %v3526
        %vm3534 = vmor %vm3532, %vm3533
        %v3535 = vsel %vm3534, %v3526, %v3531
        %v3536 = vrsqrt.pop %v3523
        %v3537 = vmul.f32 %v3536, %v3523
        %v3538 = vmul.f32 %v3537, %v3536
        %v3539 = vmul.f32 0.5, %v3538
        %v3540 = vsub.f32 1.5, %v3539
        %v3541 = vmul.f32 %v3536, %v3540
        %vm3542 = vweird.f32 %v3523
        %vm3543 = vweird.f32 %v3536
        %vm3544 = vmor %vm3542, %vm3543
        %v3545 = vsel %vm3544, %v3536, %v3541
        %v3546 = vrsqrt.pop %v3524
        %v3547 = vmul.f32 %v3546, %v3524
        %v3548 = vmul.f32 %v3547, %v3546
        %v3549 = vmul.f32 0.5, %v3548
        %v3550 = vsub.f32 1.5, %v3549
        %v3551 = vmul.f32 %v3546, %v3550
        %vm3552 = vweird.f32 %v3524
        %vm3553 = vweird.f32 %v3546
        %vm3554 = vmor %vm3552, %vm3553
        %v3555 = vsel %vm3554, %v3546, %v3551
        %v3556 = vrsqrt.pop %v3525
        %v3557 = vmul.f32 %v3556, %v3525
        %v3558 = vmul.f32 %v3557, %v3556
        %v3559 = vmul.f32 0.5, %v3558
        %v3560 = vsub.f32 1.5, %v3559
        %v3561 = vmul.f32 %v3556, %v3560
        %vm3562 = vweird.f32 %v3525
        %vm3563 = vweird.f32 %v3556
        %vm3564 = vmor %vm3562, %vm3563
        %v3565 = vsel %vm3564, %v3556, %v3561
        %v3566 = vld [vmem:[%s14] sm:$0xff]
        %v3567 = vld [vmem:[%s14 + $0x8] sm:$0xff]
        %v3568 = vld [vmem:[%s14 + $0x10] sm:$0xff]
        %v3569 = vld [vmem:[%s14 + $0x18] sm:$0xff]
        %v3570 = vmul.f32 %v3535, %v3566
        %v3571 = vmul.f32 %v3545, %v3567
        %v3572 = vmul.f32 %v3555, %v3568
        %v3573 = vmul.f32 %v3565, %v3569
        %v3574 = vld [vmem:[%s15] sm:$0xff]
        %v3575 = vld [vmem:[%s15 + $0x8] sm:$0xff]
        %v3576 = vld [vmem:[%s15 + $0x10] sm:$0xff]
        %v3577 = vld [vmem:[%s15 + $0x18] sm:$0xff]
        %v3578 = vmul.f32 %v3506, %v3570
        %v3579 = vmul.f32 %v3507, %v3571
        %v3580 = vmul.f32 %v3508, %v3572
        %v3581 = vmul.f32 %v3509, %v3573
        %v3582 = vsub.f32 %v3574, %v3578
        %v3583 = vsub.f32 %v3575, %v3579
        %v3584 = vsub.f32 %v3576, %v3580
        %v3585 = vsub.f32 %v3577, %v3581
        %3587 = vset.pattern.permute.xlu0 0
        %3588 = vperm.xlu0 %3587, %v3570
        %v3589 = vpop.permute.xlu0 %3588
        %3592 = vset.pattern.permute.xlu0 0
        %3593 = vperm.xlu0 %3592, %v3571
        %v3594 = vpop.permute.xlu0 %3593
        %3597 = vset.pattern.permute.xlu0 0
        %3598 = vperm.xlu0 %3597, %v3572
        %v3599 = vpop.permute.xlu0 %3598
        %3602 = vset.pattern.permute.xlu0 0
        %3603 = vperm.xlu0 %3602, %v3573
        %v3604 = vpop.permute.xlu0 %3603
        %v3606 = vmul.f32 %v2804, %v3589
        %v3607 = vmul.f32 %v2833, %v3589
        %v3608 = vmul.f32 %v2862, %v3589
        %v3609 = vmul.f32 %v2891, %v3589
        %v3610 = vmul.f32 %v2920, %v3589
        %v3611 = vmul.f32 %v2949, %v3589
        %v3612 = vmul.f32 %v2978, %v3589
        %v3613 = vmul.f32 %v3007, %v3589
        %v3614 = vmul.f32 %v3036, %v3589
        %v3615 = vmul.f32 %v3065, %v3589
        %v3616 = vmul.f32 %v3094, %v3589
        %v3617 = vmul.f32 %v3123, %v3589
        %v3618 = vmul.f32 %v3152, %v3589
        %v3619 = vmul.f32 %v3181, %v3589
        %v3620 = vmul.f32 %v3210, %v3589
        %v3621 = vmul.f32 %v3239, %v3589
        %v3622 = vmul.f32 %v2807, %v3594
        %v3623 = vmul.f32 %v2836, %v3594
        %v3624 = vmul.f32 %v2865, %v3594
        %v3625 = vmul.f32 %v2894, %v3594
        %v3626 = vmul.f32 %v2923, %v3594
        %v3627 = vmul.f32 %v2952, %v3594
        %v3628 = vmul.f32 %v2981, %v3594
        %v3629 = vmul.f32 %v3010, %v3594
        %v3630 = vmul.f32 %v3039, %v3594
        %v3631 = vmul.f32 %v3068, %v3594
        %v3632 = vmul.f32 %v3097, %v3594
        %v3633 = vmul.f32 %v3126, %v3594
        %v3634 = vmul.f32 %v3155, %v3594
        %v3635 = vmul.f32 %v3184, %v3594
        %v3636 = vmul.f32 %v3213, %v3594
        %v3637 = vmul.f32 %v3242, %v3594
        %v3638 = vmul.f32 %v2810, %v3599
        %v3639 = vmul.f32 %v2839, %v3599
        %v3640 = vmul.f32 %v2868, %v3599
        %v3641 = vmul.f32 %v2897, %v3599
        %v3642 = vmul.f32 %v2926, %v3599
        %v3643 = vmul.f32 %v2955, %v3599
        %v3644 = vmul.f32 %v2984, %v3599
        %v3645 = vmul.f32 %v3013, %v3599
        %v3646 = vmul.f32 %v3042, %v3599
        %v3647 = vmul.f32 %v3071, %v3599
        %v3648 = vmul.f32 %v3100, %v3599
        %v3649 = vmul.f32 %v3129, %v3599
        %v3650 = vmul.f32 %v3158, %v3599
        %v3651 = vmul.f32 %v3187, %v3599
        %v3652 = vmul.f32 %v3216, %v3599
        %v3653 = vmul.f32 %v3245, %v3599
        %v3654 = vmul.f32 %v2813, %v3604
        %v3655 = vmul.f32 %v2842, %v3604
        %v3656 = vmul.f32 %v2871, %v3604
        %v3657 = vmul.f32 %v2900, %v3604
        %v3658 = vmul.f32 %v2929, %v3604
        %v3659 = vmul.f32 %v2958, %v3604
        %v3660 = vmul.f32 %v2987, %v3604
        %v3661 = vmul.f32 %v3016, %v3604
        %v3662 = vmul.f32 %v3045, %v3604
        %v3663 = vmul.f32 %v3074, %v3604
        %v3664 = vmul.f32 %v3103, %v3604
        %v3665 = vmul.f32 %v3132, %v3604
        %v3666 = vmul.f32 %v3161, %v3604
        %v3667 = vmul.f32 %v3190, %v3604
        %v3668 = vmul.f32 %v3219, %v3604
        %v3669 = vmul.f32 %v3248, %v3604
        %3671 = vset.pattern.permute.xlu0 0
        %3672 = vperm.xlu0 %3671, %v3582
        %v3673 = vpop.permute.xlu0 %3672
        %3676 = vset.pattern.permute.xlu0 0
        %3677 = vperm.xlu0 %3676, %v3583
        %v3678 = vpop.permute.xlu0 %3677
        %3681 = vset.pattern.permute.xlu0 0
        %3682 = vperm.xlu0 %3681, %v3584
        %v3683 = vpop.permute.xlu0 %3682
        %3686 = vset.pattern.permute.xlu0 0
        %3687 = vperm.xlu0 %3686, %v3585
        %v3688 = vpop.permute.xlu0 %3687
        %v3690 = vadd.f32 %v3606, %v3673
        %v3691 = vadd.f32 %v3607, %v3673
        %v3692 = vadd.f32 %v3608, %v3673
        %v3693 = vadd.f32 %v3609, %v3673
        %v3694 = vadd.f32 %v3610, %v3673
        %v3695 = vadd.f32 %v3611, %v3673
        %v3696 = vadd.f32 %v3612, %v3673
        %v3697 = vadd.f32 %v3613, %v3673
        %v3698 = vadd.f32 %v3614, %v3673
        %v3699 = vadd.f32 %v3615, %v3673
        %v3700 = vadd.f32 %v3616, %v3673
        %v3701 = vadd.f32 %v3617, %v3673
        %v3702 = vadd.f32 %v3618, %v3673
        %v3703 = vadd.f32 %v3619, %v3673
        %v3704 = vadd.f32 %v3620, %v3673
        %v3705 = vadd.f32 %v3621, %v3673
        %v3706 = vadd.f32 %v3622, %v3678
        %v3707 = vadd.f32 %v3623, %v3678
        %v3708 = vadd.f32 %v3624, %v3678
        %v3709 = vadd.f32 %v3625, %v3678
        %v3710 = vadd.f32 %v3626, %v3678
        %v3711 = vadd.f32 %v3627, %v3678
        %v3712 = vadd.f32 %v3628, %v3678
        %v3713 = vadd.f32 %v3629, %v3678
        %v3714 = vadd.f32 %v3630, %v3678
        %v3715 = vadd.f32 %v3631, %v3678
        %v3716 = vadd.f32 %v3632, %v3678
        %v3717 = vadd.f32 %v3633, %v3678
        %v3718 = vadd.f32 %v3634, %v3678
        %v3719 = vadd.f32 %v3635, %v3678
        %v3720 = vadd.f32 %v3636, %v3678
        %v3721 = vadd.f32 %v3637, %v3678
        %v3722 = vadd.f32 %v3638, %v3683
        %v3723 = vadd.f32 %v3639, %v3683
        %v3724 = vadd.f32 %v3640, %v3683
        %v3725 = vadd.f32 %v3641, %v3683
        %v3726 = vadd.f32 %v3642, %v3683
        %v3727 = vadd.f32 %v3643, %v3683
        %v3728 = vadd.f32 %v3644, %v3683
        %v3729 = vadd.f32 %v3645, %v3683
        %v3730 = vadd.f32 %v3646, %v3683
        %v3731 = vadd.f32 %v3647, %v3683
        %v3732 = vadd.f32 %v3648, %v3683
        %v3733 = vadd.f32 %v3649, %v3683
        %v3734 = vadd.f32 %v3650, %v3683
        %v3735 = vadd.f32 %v3651, %v3683
        %v3736 = vadd.f32 %v3652, %v3683
        %v3737 = vadd.f32 %v3653, %v3683
        %v3738 = vadd.f32 %v3654, %v3688
        %v3739 = vadd.f32 %v3655, %v3688
        %v3740 = vadd.f32 %v3656, %v3688
        %v3741 = vadd.f32 %v3657, %v3688
        %v3742 = vadd.f32 %v3658, %v3688
        %v3743 = vadd.f32 %v3659, %v3688
        %v3744 = vadd.f32 %v3660, %v3688
        %v3745 = vadd.f32 %v3661, %v3688
        %v3746 = vadd.f32 %v3662, %v3688
        %v3747 = vadd.f32 %v3663, %v3688
        %v3748 = vadd.f32 %v3664, %v3688
        %v3749 = vadd.f32 %v3665, %v3688
        %v3750 = vadd.f32 %v3666, %v3688
        %v3751 = vadd.f32 %v3667, %v3688
        %v3752 = vadd.f32 %v3668, %v3688
        %v3753 = vadd.f32 %v3669, %v3688
        %v3754 = vmul.f32 %v3690, 0.5
        %v3755 = vmul.f32 %v3691, 0.5
        %v3756 = vmul.f32 %v3692, 0.5
        %v3757 = vmul.f32 %v3693, 0.5
        %v3758 = vmul.f32 %v3694, 0.5
        %v3759 = vmul.f32 %v3695, 0.5
        %v3760 = vmul.f32 %v3696, 0.5
        %v3761 = vmul.f32 %v3697, 0.5
        %v3762 = vmul.f32 %v3698, 0.5
        %v3763 = vmul.f32 %v3699, 0.5
        %v3764 = vmul.f32 %v3700, 0.5
        %v3765 = vmul.f32 %v3701, 0.5
        %v3766 = vmul.f32 %v3702, 0.5
        %v3767 = vmul.f32 %v3703, 0.5
        %v3768 = vmul.f32 %v3704, 0.5
        %v3769 = vmul.f32 %v3705, 0.5
        %v3770 = vmul.f32 %v3706, 0.5
        %v3771 = vmul.f32 %v3707, 0.5
        %v3772 = vmul.f32 %v3708, 0.5
        %v3773 = vmul.f32 %v3709, 0.5
        %v3774 = vmul.f32 %v3710, 0.5
        %v3775 = vmul.f32 %v3711, 0.5
        %v3776 = vmul.f32 %v3712, 0.5
        %v3777 = vmul.f32 %v3713, 0.5
        %v3778 = vmul.f32 %v3714, 0.5
        %v3779 = vmul.f32 %v3715, 0.5
        %v3780 = vmul.f32 %v3716, 0.5
        %v3781 = vmul.f32 %v3717, 0.5
        %v3782 = vmul.f32 %v3718, 0.5
        %v3783 = vmul.f32 %v3719, 0.5
        %v3784 = vmul.f32 %v3720, 0.5
        %v3785 = vmul.f32 %v3721, 0.5
        %v3786 = vmul.f32 %v3722, 0.5
        %v3787 = vmul.f32 %v3723, 0.5
        %v3788 = vmul.f32 %v3724, 0.5
        %v3789 = vmul.f32 %v3725, 0.5
        %v3790 = vmul.f32 %v3726, 0.5
        %v3791 = vmul.f32 %v3727, 0.5
        %v3792 = vmul.f32 %v3728, 0.5
        %v3793 = vmul.f32 %v3729, 0.5
        %v3794 = vmul.f32 %v3730, 0.5
        %v3795 = vmul.f32 %v3731, 0.5
        %v3796 = vmul.f32 %v3732, 0.5
        %v3797 = vmul.f32 %v3733, 0.5
        %v3798 = vmul.f32 %v3734, 0.5
        %v3799 = vmul.f32 %v3735, 0.5
        %v3800 = vmul.f32 %v3736, 0.5
        %v3801 = vmul.f32 %v3737, 0.5
        %v3802 = vmul.f32 %v3738, 0.5
        %v3803 = vmul.f32 %v3739, 0.5
        %v3804 = vmul.f32 %v3740, 0.5
        %v3805 = vmul.f32 %v3741, 0.5
        %v3806 = vmul.f32 %v3742, 0.5
        %v3807 = vmul.f32 %v3743, 0.5
        %v3808 = vmul.f32 %v3744, 0.5
        %v3809 = vmul.f32 %v3745, 0.5
        %v3810 = vmul.f32 %v3746, 0.5
        %v3811 = vmul.f32 %v3747, 0.5
        %v3812 = vmul.f32 %v3748, 0.5
        %v3813 = vmul.f32 %v3749, 0.5
        %v3814 = vmul.f32 %v3750, 0.5
        %v3815 = vmul.f32 %v3751, 0.5
        %v3816 = vmul.f32 %v3752, 0.5
        %v3817 = vmul.f32 %v3753, 0.5
        %v3818 = vtanh.pop %v3754
        %v3819 = vtanh.pop %v3755
        %v3820 = vtanh.pop %v3756
        %v3821 = vtanh.pop %v3757
        %v3822 = vtanh.pop %v3758
        %v3823 = vtanh.pop %v3759
        %v3824 = vtanh.pop %v3760
        %v3825 = vtanh.pop %v3761
        %v3826 = vtanh.pop %v3762
        %v3827 = vtanh.pop %v3763
        %v3828 = vtanh.pop %v3764
        %v3829 = vtanh.pop %v3765
        %v3830 = vtanh.pop %v3766
        %v3831 = vtanh.pop %v3767
        %v3832 = vtanh.pop %v3768
        %v3833 = vtanh.pop %v3769
        %v3834 = vtanh.pop %v3770
        %v3835 = vtanh.pop %v3771
        %v3836 = vtanh.pop %v3772
        %v3837 = vtanh.pop %v3773
        %v3838 = vtanh.pop %v3774
        %v3839 = vtanh.pop %v3775
        %v3840 = vtanh.pop %v3776
        %v3841 = vtanh.pop %v3777
        %v3842 = vtanh.pop %v3778
        %v3843 = vtanh.pop %v3779
        %v3844 = vtanh.pop %v3780
        %v3845 = vtanh.pop %v3781
        %v3846 = vtanh.pop %v3782
        %v3847 = vtanh.pop %v3783
        %v3848 = vtanh.pop %v3784
        %v3849 = vtanh.pop %v3785
        %v3850 = vtanh.pop %v3786
        %v3851 = vtanh.pop %v3787
        %v3852 = vtanh.pop %v3788
        %v3853 = vtanh.pop %v3789
        %v3854 = vtanh.pop %v3790
        %v3855 = vtanh.pop %v3791
        %v3856 = vtanh.pop %v3792
        %v3857 = vtanh.pop %v3793
        %v3858 = vtanh.pop %v3794
        %v3859 = vtanh.pop %v3795
        %v3860 = vtanh.pop %v3796
        %v3861 = vtanh.pop %v3797
        %v3862 = vtanh.pop %v3798
        %v3863 = vtanh.pop %v3799
        %v3864 = vtanh.pop %v3800
        %v3865 = vtanh.pop %v3801
        %v3866 = vtanh.pop %v3802
        %v3867 = vtanh.pop %v3803
        %v3868 = vtanh.pop %v3804
        %v3869 = vtanh.pop %v3805
        %v3870 = vtanh.pop %v3806
        %v3871 = vtanh.pop %v3807
        %v3872 = vtanh.pop %v3808
        %v3873 = vtanh.pop %v3809
        %v3874 = vtanh.pop %v3810
        %v3875 = vtanh.pop %v3811
        %v3876 = vtanh.pop %v3812
        %v3877 = vtanh.pop %v3813
        %v3878 = vtanh.pop %v3814
        %v3879 = vtanh.pop %v3815
        %v3880 = vtanh.pop %v3816
        %v3881 = vtanh.pop %v3817
        %v3882 = vadd.f32 %v3818, 1.0
        %v3883 = vadd.f32 %v3819, 1.0
        %v3884 = vadd.f32 %v3820, 1.0
        %v3885 = vadd.f32 %v3821, 1.0
        %v3886 = vadd.f32 %v3822, 1.0
        %v3887 = vadd.f32 %v3823, 1.0
        %v3888 = vadd.f32 %v3824, 1.0
        %v3889 = vadd.f32 %v3825, 1.0
        %v3890 = vadd.f32 %v3826, 1.0
        %v3891 = vadd.f32 %v3827, 1.0
        %v3892 = vadd.f32 %v3828, 1.0
        %v3893 = vadd.f32 %v3829, 1.0
        %v3894 = vadd.f32 %v3830, 1.0
        %v3895 = vadd.f32 %v3831, 1.0
        %v3896 = vadd.f32 %v3832, 1.0
        %v3897 = vadd.f32 %v3833, 1.0
        %v3898 = vadd.f32 %v3834, 1.0
        %v3899 = vadd.f32 %v3835, 1.0
        %v3900 = vadd.f32 %v3836, 1.0
        %v3901 = vadd.f32 %v3837, 1.0
        %v3902 = vadd.f32 %v3838, 1.0
        %v3903 = vadd.f32 %v3839, 1.0
        %v3904 = vadd.f32 %v3840, 1.0
        %v3905 = vadd.f32 %v3841, 1.0
        %v3906 = vadd.f32 %v3842, 1.0
        %v3907 = vadd.f32 %v3843, 1.0
        %v3908 = vadd.f32 %v3844, 1.0
        %v3909 = vadd.f32 %v3845, 1.0
        %v3910 = vadd.f32 %v3846, 1.0
        %v3911 = vadd.f32 %v3847, 1.0
        %v3912 = vadd.f32 %v3848, 1.0
        %v3913 = vadd.f32 %v3849, 1.0
        %v3914 = vadd.f32 %v3850, 1.0
        %v3915 = vadd.f32 %v3851, 1.0
        %v3916 = vadd.f32 %v3852, 1.0
        %v3917 = vadd.f32 %v3853, 1.0
        %v3918 = vadd.f32 %v3854, 1.0
        %v3919 = vadd.f32 %v3855, 1.0
        %v3920 = vadd.f32 %v3856, 1.0
        %v3921 = vadd.f32 %v3857, 1.0
        %v3922 = vadd.f32 %v3858, 1.0
        %v3923 = vadd.f32 %v3859, 1.0
        %v3924 = vadd.f32 %v3860, 1.0
        %v3925 = vadd.f32 %v3861, 1.0
        %v3926 = vadd.f32 %v3862, 1.0
        %v3927 = vadd.f32 %v3863, 1.0
        %v3928 = vadd.f32 %v3864, 1.0
        %v3929 = vadd.f32 %v3865, 1.0
        %v3930 = vadd.f32 %v3866, 1.0
        %v3931 = vadd.f32 %v3867, 1.0
        %v3932 = vadd.f32 %v3868, 1.0
        %v3933 = vadd.f32 %v3869, 1.0
        %v3934 = vadd.f32 %v3870, 1.0
        %v3935 = vadd.f32 %v3871, 1.0
        %v3936 = vadd.f32 %v3872, 1.0
        %v3937 = vadd.f32 %v3873, 1.0
        %v3938 = vadd.f32 %v3874, 1.0
        %v3939 = vadd.f32 %v3875, 1.0
        %v3940 = vadd.f32 %v3876, 1.0
        %v3941 = vadd.f32 %v3877, 1.0
        %v3942 = vadd.f32 %v3878, 1.0
        %v3943 = vadd.f32 %v3879, 1.0
        %v3944 = vadd.f32 %v3880, 1.0
        %v3945 = vadd.f32 %v3881, 1.0
        %v3946 = vmul.f32 %v3754, %v3882
        %v3947 = vmul.f32 %v3755, %v3883
        %v3948 = vmul.f32 %v3756, %v3884
        %v3949 = vmul.f32 %v3757, %v3885
        %v3950 = vmul.f32 %v3758, %v3886
        %v3951 = vmul.f32 %v3759, %v3887
        %v3952 = vmul.f32 %v3760, %v3888
        %v3953 = vmul.f32 %v3761, %v3889
        %v3954 = vmul.f32 %v3762, %v3890
        %v3955 = vmul.f32 %v3763, %v3891
        %v3956 = vmul.f32 %v3764, %v3892
        %v3957 = vmul.f32 %v3765, %v3893
        %v3958 = vmul.f32 %v3766, %v3894
        %v3959 = vmul.f32 %v3767, %v3895
        %v3960 = vmul.f32 %v3768, %v3896
        %v3961 = vmul.f32 %v3769, %v3897
        %v3962 = vmul.f32 %v3770, %v3898
        %v3963 = vmul.f32 %v3771, %v3899
        %v3964 = vmul.f32 %v3772, %v3900
        %v3965 = vmul.f32 %v3773, %v3901
        %v3966 = vmul.f32 %v3774, %v3902
        %v3967 = vmul.f32 %v3775, %v3903
        %v3968 = vmul.f32 %v3776, %v3904
        %v3969 = vmul.f32 %v3777, %v3905
        %v3970 = vmul.f32 %v3778, %v3906
        %v3971 = vmul.f32 %v3779, %v3907
        %v3972 = vmul.f32 %v3780, %v3908
        %v3973 = vmul.f32 %v3781, %v3909
        %v3974 = vmul.f32 %v3782, %v3910
        %v3975 = vmul.f32 %v3783, %v3911
        %v3976 = vmul.f32 %v3784, %v3912
        %v3977 = vmul.f32 %v3785, %v3913
        %v3978 = vmul.f32 %v3786, %v3914
        %v3979 = vmul.f32 %v3787, %v3915
        %v3980 = vmul.f32 %v3788, %v3916
        %v3981 = vmul.f32 %v3789, %v3917
        %v3982 = vmul.f32 %v3790, %v3918
        %v3983 = vmul.f32 %v3791, %v3919
        %v3984 = vmul.f32 %v3792, %v3920
        %v3985 = vmul.f32 %v3793, %v3921
        %v3986 = vmul.f32 %v3794, %v3922
        %v3987 = vmul.f32 %v3795, %v3923
        %v3988 = vmul.f32 %v3796, %v3924
        %v3989 = vmul.f32 %v3797, %v3925
        %v3990 = vmul.f32 %v3798, %v3926
        %v3991 = vmul.f32 %v3799, %v3927
        %v3992 = vmul.f32 %v3800, %v3928
        %v3993 = vmul.f32 %v3801, %v3929
        %v3994 = vmul.f32 %v3802, %v3930
        %v3995 = vmul.f32 %v3803, %v3931
        %v3996 = vmul.f32 %v3804, %v3932
        %v3997 = vmul.f32 %v3805, %v3933
        %v3998 = vmul.f32 %v3806, %v3934
        %v3999 = vmul.f32 %v3807, %v3935
        %v4000 = vmul.f32 %v3808, %v3936
        %v4001 = vmul.f32 %v3809, %v3937
        %v4002 = vmul.f32 %v3810, %v3938
        %v4003 = vmul.f32 %v3811, %v3939
        %v4004 = vmul.f32 %v3812, %v3940
        %v4005 = vmul.f32 %v3813, %v3941
        %v4006 = vmul.f32 %v3814, %v3942
        %v4007 = vmul.f32 %v3815, %v3943
        %v4008 = vmul.f32 %v3816, %v3944
        %v4009 = vmul.f32 %v3817, %v3945
        %v4010 = vld [vmem:[%s12] sm:$0xff]
        %v4011 = vld [vmem:[%s12 + $0x8] sm:$0xff]
        %v4012 = vld [vmem:[%s12 + $0x10] sm:$0xff]
        %v4013 = vld [vmem:[%s12 + $0x18] sm:$0xff]
        %v4014 = vld [vmem:[%s13] sm:$0xff]
        %v4015 = vld [vmem:[%s13 + $0x8] sm:$0xff]
        %v4016 = vld [vmem:[%s13 + $0x10] sm:$0xff]
        %v4017 = vld [vmem:[%s13 + $0x18] sm:$0xff]
        %4019 = vset.pattern.permute.xlu0 0
        %4020 = vperm.xlu0 %4019, %v4014
        %v4021 = vpop.permute.xlu0 %4020
        %4024 = vset.pattern.permute.xlu0 0
        %4025 = vperm.xlu0 %4024, %v4015
        %v4026 = vpop.permute.xlu0 %4025
        %4029 = vset.pattern.permute.xlu0 0
        %4030 = vperm.xlu0 %4029, %v4016
        %v4031 = vpop.permute.xlu0 %4030
        %4034 = vset.pattern.permute.xlu0 0
        %4035 = vperm.xlu0 %4034, %v4017
        %v4036 = vpop.permute.xlu0 %4035
        %v4039 = vsel %vm1509, %v4010, 0
        %v4042 = vsel %vm1509, %v4011, 0
        %v4045 = vsel %vm1509, %v4012, 0
        %v4048 = vsel %vm1509, %v4013, 0
        %4050 = vmatpush.msra.mxu0 0.0
        %4051 = vmatpush.msra.mxu0 0.0
        %4052 = vmatpush.msra.mxu0 0.0
        %4053 = vmatpush.msra.mxu0 0.0
        %4054 = vmatpush.msra.mxu0 %v3996
        %4055 = vmatpush.msra.mxu0 %v3980
        %4056 = vmatpush.msra.mxu0 %v3964
        %4057 = vmatpush.msra.mxu0 %v3948
        %4058 = vmatpush.msra.mxu0 %v3994
        %4059 = vmatpush.msra.mxu0 %v3978
        %4060 = vmatpush.msra.mxu0 %v3962
        %4061 = vmatpush.msra.mxu0 %v3946
        %4062 = vmatpush.msra.mxu0 %v3994
        %4063 = vmatpush.msra.mxu0 %v3978
        %4064 = vmatpush.msra.mxu0 %v3962
        %4065 = vmatpush.msra.mxu0 %v3946
        %4066 = vmatmul.f32.gmra.mxu0 %v4039
        %v4067 = vpop.f32.mrf.mxu0
        %v4068 = vadd.f32 %v4021, %v4067
        %4069 = vmatmul.f32.gmra.mxu0 %v4042
        %v4070 = vpop.f32.mrf.mxu0
        %v4071 = vadd.f32 %v4026, %v4070
        %4072 = vmatmul.f32.gmra.mxu0 %v4045
        %v4073 = vpop.f32.mrf.mxu0
        %v4074 = vadd.f32 %v4031, %v4073
        %4075 = vmatmul.f32.gmra.mxu0 %v4048
        %v4076 = vpop.f32.mrf.mxu0
        %v4077 = vadd.f32 %v4036, %v4076
        %4078 = vdwg.mxu0
        %4079 = vmatpush.msra.mxu0 0.0
        %4080 = vmatpush.msra.mxu0 0.0
        %4081 = vmatpush.msra.mxu0 0.0
        %4082 = vmatpush.msra.mxu0 0.0
        %4083 = vmatpush.msra.mxu0 %v3997
        %4084 = vmatpush.msra.mxu0 %v3981
        %4085 = vmatpush.msra.mxu0 %v3965
        %4086 = vmatpush.msra.mxu0 %v3949
        %4087 = vmatpush.msra.mxu0 %v3995
        %4088 = vmatpush.msra.mxu0 %v3979
        %4089 = vmatpush.msra.mxu0 %v3963
        %4090 = vmatpush.msra.mxu0 %v3947
        %4091 = vmatpush.msra.mxu0 %v3995
        %4092 = vmatpush.msra.mxu0 %v3979
        %4093 = vmatpush.msra.mxu0 %v3963
        %4094 = vmatpush.msra.mxu0 %v3947
        %4095 = vmatmul.f32.gmra.mxu0 %v4039
        %v4096 = vpop.f32.mrf.mxu0
        %v4097 = vadd.f32 %v4021, %v4096
        %4098 = vmatmul.f32.gmra.mxu0 %v4042
        %v4099 = vpop.f32.mrf.mxu0
        %v4100 = vadd.f32 %v4026, %v4099
        %4101 = vmatmul.f32.gmra.mxu0 %v4045
        %v4102 = vpop.f32.mrf.mxu0
        %v4103 = vadd.f32 %v4031, %v4102
        %4104 = vmatmul.f32.gmra.mxu0 %v4048
        %v4105 = vpop.f32.mrf.mxu0
        %v4106 = vadd.f32 %v4036, %v4105
        %4107 = vdwg.mxu0
        %4108 = vmatpush.msra.mxu0 0.0
        %4109 = vmatpush.msra.mxu0 0.0
        %4110 = vmatpush.msra.mxu0 0.0
        %4111 = vmatpush.msra.mxu0 0.0
        %4112 = vmatpush.msra.mxu0 %v3998
        %4113 = vmatpush.msra.mxu0 %v3982
        %4114 = vmatpush.msra.mxu0 %v3966
        %4115 = vmatpush.msra.mxu0 %v3950
        %4116 = vmatpush.msra.mxu0 %v3996
        %4117 = vmatpush.msra.mxu0 %v3980
        %4118 = vmatpush.msra.mxu0 %v3964
        %4119 = vmatpush.msra.mxu0 %v3948
        %4120 = vmatpush.msra.mxu0 %v3994
        %4121 = vmatpush.msra.mxu0 %v3978
        %4122 = vmatpush.msra.mxu0 %v3962
        %4123 = vmatpush.msra.mxu0 %v3946
        %4124 = vmatmul.f32.gmra.mxu0 %v4039
        %v4125 = vpop.f32.mrf.mxu0
        %v4126 = vadd.f32 %v4021, %v4125
        %4127 = vmatmul.f32.gmra.mxu0 %v4042
        %v4128 = vpop.f32.mrf.mxu0
        %v4129 = vadd.f32 %v4026, %v4128
        %4130 = vmatmul.f32.gmra.mxu0 %v4045
        %v4131 = vpop.f32.mrf.mxu0
        %v4132 = vadd.f32 %v4031, %v4131
        %4133 = vmatmul.f32.gmra.mxu0 %v4048
        %v4134 = vpop.f32.mrf.mxu0
        %v4135 = vadd.f32 %v4036, %v4134
        %4136 = vdwg.mxu0
        %4137 = vmatpush.msra.mxu0 0.0
        %4138 = vmatpush.msra.mxu0 0.0
        %4139 = vmatpush.msra.mxu0 0.0
        %4140 = vmatpush.msra.mxu0 0.0
        %4141 = vmatpush.msra.mxu0 %v3999
        %4142 = vmatpush.msra.mxu0 %v3983
        %4143 = vmatpush.msra.mxu0 %v3967
        %4144 = vmatpush.msra.mxu0 %v3951
        %4145 = vmatpush.msra.mxu0 %v3997
        %4146 = vmatpush.msra.mxu0 %v3981
        %4147 = vmatpush.msra.mxu0 %v3965
        %4148 = vmatpush.msra.mxu0 %v3949
        %4149 = vmatpush.msra.mxu0 %v3995
        %4150 = vmatpush.msra.mxu0 %v3979
        %4151 = vmatpush.msra.mxu0 %v3963
        %4152 = vmatpush.msra.mxu0 %v3947
        %4153 = vmatmul.f32.gmra.mxu0 %v4039
        %v4154 = vpop.f32.mrf.mxu0
        %v4155 = vadd.f32 %v4021, %v4154
        %4156 = vmatmul.f32.gmra.mxu0 %v4042
        %v4157 = vpop.f32.mrf.mxu0
        %v4158 = vadd.f32 %v4026, %v4157
        %4159 = vmatmul.f32.gmra.mxu0 %v4045
        %v4160 = vpop.f32.mrf.mxu0
        %v4161 = vadd.f32 %v4031, %v4160
        %4162 = vmatmul.f32.gmra.mxu0 %v4048
        %v4163 = vpop.f32.mrf.mxu0
        %v4164 = vadd.f32 %v4036, %v4163
        %4165 = vdwg.mxu0
        %4166 = vmatpush.msra.mxu0 0.0
        %4167 = vmatpush.msra.mxu0 0.0
        %4168 = vmatpush.msra.mxu0 0.0
        %4169 = vmatpush.msra.mxu0 0.0
        %4170 = vmatpush.msra.mxu0 %v4000
        %4171 = vmatpush.msra.mxu0 %v3984
        %4172 = vmatpush.msra.mxu0 %v3968
        %4173 = vmatpush.msra.mxu0 %v3952
        %4174 = vmatpush.msra.mxu0 %v3998
        %4175 = vmatpush.msra.mxu0 %v3982
        %4176 = vmatpush.msra.mxu0 %v3966
        %4177 = vmatpush.msra.mxu0 %v3950
        %4178 = vmatpush.msra.mxu0 %v3996
        %4179 = vmatpush.msra.mxu0 %v3980
        %4180 = vmatpush.msra.mxu0 %v3964
        %4181 = vmatpush.msra.mxu0 %v3948
        %4182 = vmatmul.f32.gmra.mxu0 %v4039
        %v4183 = vpop.f32.mrf.mxu0
        %v4184 = vadd.f32 %v4021, %v4183
        %4185 = vmatmul.f32.gmra.mxu0 %v4042
        %v4186 = vpop.f32.mrf.mxu0
        %v4187 = vadd.f32 %v4026, %v4186
        %4188 = vmatmul.f32.gmra.mxu0 %v4045
        %v4189 = vpop.f32.mrf.mxu0
        %v4190 = vadd.f32 %v4031, %v4189
        %4191 = vmatmul.f32.gmra.mxu0 %v4048
        %v4192 = vpop.f32.mrf.mxu0
        %v4193 = vadd.f32 %v4036, %v4192
        %4194 = vdwg.mxu0
        %4195 = vmatpush.msra.mxu0 0.0
        %4196 = vmatpush.msra.mxu0 0.0
        %4197 = vmatpush.msra.mxu0 0.0
        %4198 = vmatpush.msra.mxu0 0.0
        %4199 = vmatpush.msra.mxu0 %v4001
        %4200 = vmatpush.msra.mxu0 %v3985
        %4201 = vmatpush.msra.mxu0 %v3969
        %4202 = vmatpush.msra.mxu0 %v3953
        %4203 = vmatpush.msra.mxu0 %v3999
        %4204 = vmatpush.msra.mxu0 %v3983
        %4205 = vmatpush.msra.mxu0 %v3967
        %4206 = vmatpush.msra.mxu0 %v3951
        %4207 = vmatpush.msra.mxu0 %v3997
        %4208 = vmatpush.msra.mxu0 %v3981
        %4209 = vmatpush.msra.mxu0 %v3965
        %4210 = vmatpush.msra.mxu0 %v3949
        %4211 = vmatmul.f32.gmra.mxu0 %v4039
        %v4212 = vpop.f32.mrf.mxu0
        %v4213 = vadd.f32 %v4021, %v4212
        %4214 = vmatmul.f32.gmra.mxu0 %v4042
        %v4215 = vpop.f32.mrf.mxu0
        %v4216 = vadd.f32 %v4026, %v4215
        %4217 = vmatmul.f32.gmra.mxu0 %v4045
        %v4218 = vpop.f32.mrf.mxu0
        %v4219 = vadd.f32 %v4031, %v4218
        %4220 = vmatmul.f32.gmra.mxu0 %v4048
        %v4221 = vpop.f32.mrf.mxu0
        %v4222 = vadd.f32 %v4036, %v4221
        %4223 = vdwg.mxu0
        %4224 = vmatpush.msra.mxu0 0.0
        %4225 = vmatpush.msra.mxu0 0.0
        %4226 = vmatpush.msra.mxu0 0.0
        %4227 = vmatpush.msra.mxu0 0.0
        %4228 = vmatpush.msra.mxu0 %v4002
        %4229 = vmatpush.msra.mxu0 %v3986
        %4230 = vmatpush.msra.mxu0 %v3970
        %4231 = vmatpush.msra.mxu0 %v3954
        %4232 = vmatpush.msra.mxu0 %v4000
        %4233 = vmatpush.msra.mxu0 %v3984
        %4234 = vmatpush.msra.mxu0 %v3968
        %4235 = vmatpush.msra.mxu0 %v3952
        %4236 = vmatpush.msra.mxu0 %v3998
        %4237 = vmatpush.msra.mxu0 %v3982
        %4238 = vmatpush.msra.mxu0 %v3966
        %4239 = vmatpush.msra.mxu0 %v3950
        %4240 = vmatmul.f32.gmra.mxu0 %v4039
        %v4241 = vpop.f32.mrf.mxu0
        %v4242 = vadd.f32 %v4021, %v4241
        %4243 = vmatmul.f32.gmra.mxu0 %v4042
        %v4244 = vpop.f32.mrf.mxu0
        %v4245 = vadd.f32 %v4026, %v4244
        %4246 = vmatmul.f32.gmra.mxu0 %v4045
        %v4247 = vpop.f32.mrf.mxu0
        %v4248 = vadd.f32 %v4031, %v4247
        %4249 = vmatmul.f32.gmra.mxu0 %v4048
        %v4250 = vpop.f32.mrf.mxu0
        %v4251 = vadd.f32 %v4036, %v4250
        %4252 = vdwg.mxu0
        %4253 = vmatpush.msra.mxu0 0.0
        %4254 = vmatpush.msra.mxu0 0.0
        %4255 = vmatpush.msra.mxu0 0.0
        %4256 = vmatpush.msra.mxu0 0.0
        %4257 = vmatpush.msra.mxu0 %v4003
        %4258 = vmatpush.msra.mxu0 %v3987
        %4259 = vmatpush.msra.mxu0 %v3971
        %4260 = vmatpush.msra.mxu0 %v3955
        %4261 = vmatpush.msra.mxu0 %v4001
        %4262 = vmatpush.msra.mxu0 %v3985
        %4263 = vmatpush.msra.mxu0 %v3969
        %4264 = vmatpush.msra.mxu0 %v3953
        %4265 = vmatpush.msra.mxu0 %v3999
        %4266 = vmatpush.msra.mxu0 %v3983
        %4267 = vmatpush.msra.mxu0 %v3967
        %4268 = vmatpush.msra.mxu0 %v3951
        %4269 = vmatmul.f32.gmra.mxu0 %v4039
        %v4270 = vpop.f32.mrf.mxu0
        %v4271 = vadd.f32 %v4021, %v4270
        %4272 = vmatmul.f32.gmra.mxu0 %v4042
        %v4273 = vpop.f32.mrf.mxu0
        %v4274 = vadd.f32 %v4026, %v4273
        %4275 = vmatmul.f32.gmra.mxu0 %v4045
        %v4276 = vpop.f32.mrf.mxu0
        %v4277 = vadd.f32 %v4031, %v4276
        %4278 = vmatmul.f32.gmra.mxu0 %v4048
        %v4279 = vpop.f32.mrf.mxu0
        %v4280 = vadd.f32 %v4036, %v4279
        %4281 = vdwg.mxu0
        %4282 = vmatpush.msra.mxu0 0.0
        %4283 = vmatpush.msra.mxu0 0.0
        %4284 = vmatpush.msra.mxu0 0.0
        %4285 = vmatpush.msra.mxu0 0.0
        %4286 = vmatpush.msra.mxu0 %v4004
        %4287 = vmatpush.msra.mxu0 %v3988
        %4288 = vmatpush.msra.mxu0 %v3972
        %4289 = vmatpush.msra.mxu0 %v3956
        %4290 = vmatpush.msra.mxu0 %v4002
        %4291 = vmatpush.msra.mxu0 %v3986
        %4292 = vmatpush.msra.mxu0 %v3970
        %4293 = vmatpush.msra.mxu0 %v3954
        %4294 = vmatpush.msra.mxu0 %v4000
        %4295 = vmatpush.msra.mxu0 %v3984
        %4296 = vmatpush.msra.mxu0 %v3968
        %4297 = vmatpush.msra.mxu0 %v3952
        %4298 = vmatmul.f32.gmra.mxu0 %v4039
        %v4299 = vpop.f32.mrf.mxu0
        %v4300 = vadd.f32 %v4021, %v4299
        %4301 = vmatmul.f32.gmra.mxu0 %v4042
        %v4302 = vpop.f32.mrf.mxu0
        %v4303 = vadd.f32 %v4026, %v4302
        %4304 = vmatmul.f32.gmra.mxu0 %v4045
        %v4305 = vpop.f32.mrf.mxu0
        %v4306 = vadd.f32 %v4031, %v4305
        %4307 = vmatmul.f32.gmra.mxu0 %v4048
        %v4308 = vpop.f32.mrf.mxu0
        %v4309 = vadd.f32 %v4036, %v4308
        %4310 = vdwg.mxu0
        %4311 = vmatpush.msra.mxu0 0.0
        %4312 = vmatpush.msra.mxu0 0.0
        %4313 = vmatpush.msra.mxu0 0.0
        %4314 = vmatpush.msra.mxu0 0.0
        %4315 = vmatpush.msra.mxu0 %v4005
        %4316 = vmatpush.msra.mxu0 %v3989
        %4317 = vmatpush.msra.mxu0 %v3973
        %4318 = vmatpush.msra.mxu0 %v3957
        %4319 = vmatpush.msra.mxu0 %v4003
        %4320 = vmatpush.msra.mxu0 %v3987
        %4321 = vmatpush.msra.mxu0 %v3971
        %4322 = vmatpush.msra.mxu0 %v3955
        %4323 = vmatpush.msra.mxu0 %v4001
        %4324 = vmatpush.msra.mxu0 %v3985
        %4325 = vmatpush.msra.mxu0 %v3969
        %4326 = vmatpush.msra.mxu0 %v3953
        %4327 = vmatmul.f32.gmra.mxu0 %v4039
        %v4328 = vpop.f32.mrf.mxu0
        %v4329 = vadd.f32 %v4021, %v4328
        %4330 = vmatmul.f32.gmra.mxu0 %v4042
        %v4331 = vpop.f32.mrf.mxu0
        %v4332 = vadd.f32 %v4026, %v4331
        %4333 = vmatmul.f32.gmra.mxu0 %v4045
        %v4334 = vpop.f32.mrf.mxu0
        %v4335 = vadd.f32 %v4031, %v4334
        %4336 = vmatmul.f32.gmra.mxu0 %v4048
        %v4337 = vpop.f32.mrf.mxu0
        %v4338 = vadd.f32 %v4036, %v4337
        %4339 = vdwg.mxu0
        %4340 = vmatpush.msra.mxu0 0.0
        %4341 = vmatpush.msra.mxu0 0.0
        %4342 = vmatpush.msra.mxu0 0.0
        %4343 = vmatpush.msra.mxu0 0.0
        %4344 = vmatpush.msra.mxu0 %v4006
        %4345 = vmatpush.msra.mxu0 %v3990
        %4346 = vmatpush.msra.mxu0 %v3974
        %4347 = vmatpush.msra.mxu0 %v3958
        %4348 = vmatpush.msra.mxu0 %v4004
        %4349 = vmatpush.msra.mxu0 %v3988
        %4350 = vmatpush.msra.mxu0 %v3972
        %4351 = vmatpush.msra.mxu0 %v3956
        %4352 = vmatpush.msra.mxu0 %v4002
        %4353 = vmatpush.msra.mxu0 %v3986
        %4354 = vmatpush.msra.mxu0 %v3970
        %4355 = vmatpush.msra.mxu0 %v3954
        %4356 = vmatmul.f32.gmra.mxu0 %v4039
        %v4357 = vpop.f32.mrf.mxu0
        %v4358 = vadd.f32 %v4021, %v4357
        %4359 = vmatmul.f32.gmra.mxu0 %v4042
        %v4360 = vpop.f32.mrf.mxu0
        %v4361 = vadd.f32 %v4026, %v4360
        %4362 = vmatmul.f32.gmra.mxu0 %v4045
        %v4363 = vpop.f32.mrf.mxu0
        %v4364 = vadd.f32 %v4031, %v4363
        %4365 = vmatmul.f32.gmra.mxu0 %v4048
        %v4366 = vpop.f32.mrf.mxu0
        %v4367 = vadd.f32 %v4036, %v4366
        %4368 = vdwg.mxu0
        %4369 = vmatpush.msra.mxu0 0.0
        %4370 = vmatpush.msra.mxu0 0.0
        %4371 = vmatpush.msra.mxu0 0.0
        %4372 = vmatpush.msra.mxu0 0.0
        %4373 = vmatpush.msra.mxu0 %v4007
        %4374 = vmatpush.msra.mxu0 %v3991
        %4375 = vmatpush.msra.mxu0 %v3975
        %4376 = vmatpush.msra.mxu0 %v3959
        %4377 = vmatpush.msra.mxu0 %v4005
        %4378 = vmatpush.msra.mxu0 %v3989
        %4379 = vmatpush.msra.mxu0 %v3973
        %4380 = vmatpush.msra.mxu0 %v3957
        %4381 = vmatpush.msra.mxu0 %v4003
        %4382 = vmatpush.msra.mxu0 %v3987
        %4383 = vmatpush.msra.mxu0 %v3971
        %4384 = vmatpush.msra.mxu0 %v3955
        %4385 = vmatmul.f32.gmra.mxu0 %v4039
        %v4386 = vpop.f32.mrf.mxu0
        %v4387 = vadd.f32 %v4021, %v4386
        %4388 = vmatmul.f32.gmra.mxu0 %v4042
        %v4389 = vpop.f32.mrf.mxu0
        %v4390 = vadd.f32 %v4026, %v4389
        %4391 = vmatmul.f32.gmra.mxu0 %v4045
        %v4392 = vpop.f32.mrf.mxu0
        %v4393 = vadd.f32 %v4031, %v4392
        %4394 = vmatmul.f32.gmra.mxu0 %v4048
        %v4395 = vpop.f32.mrf.mxu0
        %v4396 = vadd.f32 %v4036, %v4395
        %4397 = vdwg.mxu0
        %4398 = vmatpush.msra.mxu0 0.0
        %4399 = vmatpush.msra.mxu0 0.0
        %4400 = vmatpush.msra.mxu0 0.0
        %4401 = vmatpush.msra.mxu0 0.0
        %4402 = vmatpush.msra.mxu0 %v4008
        %4403 = vmatpush.msra.mxu0 %v3992
        %4404 = vmatpush.msra.mxu0 %v3976
        %4405 = vmatpush.msra.mxu0 %v3960
        %4406 = vmatpush.msra.mxu0 %v4006
        %4407 = vmatpush.msra.mxu0 %v3990
        %4408 = vmatpush.msra.mxu0 %v3974
        %4409 = vmatpush.msra.mxu0 %v3958
        %4410 = vmatpush.msra.mxu0 %v4004
        %4411 = vmatpush.msra.mxu0 %v3988
        %4412 = vmatpush.msra.mxu0 %v3972
        %4413 = vmatpush.msra.mxu0 %v3956
        %4414 = vmatmul.f32.gmra.mxu0 %v4039
        %v4415 = vpop.f32.mrf.mxu0
        %v4416 = vadd.f32 %v4021, %v4415
        %4417 = vmatmul.f32.gmra.mxu0 %v4042
        %v4418 = vpop.f32.mrf.mxu0
        %v4419 = vadd.f32 %v4026, %v4418
        %4420 = vmatmul.f32.gmra.mxu0 %v4045
        %v4421 = vpop.f32.mrf.mxu0
        %v4422 = vadd.f32 %v4031, %v4421
        %4423 = vmatmul.f32.gmra.mxu0 %v4048
        %v4424 = vpop.f32.mrf.mxu0
        %v4425 = vadd.f32 %v4036, %v4424
        %4426 = vdwg.mxu0
        %4427 = vmatpush.msra.mxu0 0.0
        %4428 = vmatpush.msra.mxu0 0.0
        %4429 = vmatpush.msra.mxu0 0.0
        %4430 = vmatpush.msra.mxu0 0.0
        %4431 = vmatpush.msra.mxu0 %v4009
        %4432 = vmatpush.msra.mxu0 %v3993
        %4433 = vmatpush.msra.mxu0 %v3977
        %4434 = vmatpush.msra.mxu0 %v3961
        %4435 = vmatpush.msra.mxu0 %v4007
        %4436 = vmatpush.msra.mxu0 %v3991
        %4437 = vmatpush.msra.mxu0 %v3975
        %4438 = vmatpush.msra.mxu0 %v3959
        %4439 = vmatpush.msra.mxu0 %v4005
        %4440 = vmatpush.msra.mxu0 %v3989
        %4441 = vmatpush.msra.mxu0 %v3973
        %4442 = vmatpush.msra.mxu0 %v3957
        %4443 = vmatmul.f32.gmra.mxu0 %v4039
        %v4444 = vpop.f32.mrf.mxu0
        %v4445 = vadd.f32 %v4021, %v4444
        %4446 = vmatmul.f32.gmra.mxu0 %v4042
        %v4447 = vpop.f32.mrf.mxu0
        %v4448 = vadd.f32 %v4026, %v4447
        %4449 = vmatmul.f32.gmra.mxu0 %v4045
        %v4450 = vpop.f32.mrf.mxu0
        %v4451 = vadd.f32 %v4031, %v4450
        %4452 = vmatmul.f32.gmra.mxu0 %v4048
        %v4453 = vpop.f32.mrf.mxu0
        %v4454 = vadd.f32 %v4036, %v4453
        %4455 = vdwg.mxu0
        %4456 = vmatpush.msra.mxu0 0.0
        %4457 = vmatpush.msra.mxu0 0.0
        %4458 = vmatpush.msra.mxu0 0.0
        %4459 = vmatpush.msra.mxu0 0.0
        %4460 = vmatpush.msra.mxu0 %v4008
        %4461 = vmatpush.msra.mxu0 %v3992
        %4462 = vmatpush.msra.mxu0 %v3976
        %4463 = vmatpush.msra.mxu0 %v3960
        %4464 = vmatpush.msra.mxu0 %v4008
        %4465 = vmatpush.msra.mxu0 %v3992
        %4466 = vmatpush.msra.mxu0 %v3976
        %4467 = vmatpush.msra.mxu0 %v3960
        %4468 = vmatpush.msra.mxu0 %v4006
        %4469 = vmatpush.msra.mxu0 %v3990
        %4470 = vmatpush.msra.mxu0 %v3974
        %4471 = vmatpush.msra.mxu0 %v3958
        %4472 = vmatmul.f32.gmra.mxu0 %v4039
        %v4473 = vpop.f32.mrf.mxu0
        %v4474 = vadd.f32 %v4021, %v4473
        %4475 = vmatmul.f32.gmra.mxu0 %v4042
        %v4476 = vpop.f32.mrf.mxu0
        %v4477 = vadd.f32 %v4026, %v4476
        %4478 = vmatmul.f32.gmra.mxu0 %v4045
        %v4479 = vpop.f32.mrf.mxu0
        %v4480 = vadd.f32 %v4031, %v4479
        %4481 = vmatmul.f32.gmra.mxu0 %v4048
        %v4482 = vpop.f32.mrf.mxu0
        %v4483 = vadd.f32 %v4036, %v4482
        %4484 = vdwg.mxu0
        %4485 = vmatpush.msra.mxu0 0.0
        %4486 = vmatpush.msra.mxu0 0.0
        %4487 = vmatpush.msra.mxu0 0.0
        %4488 = vmatpush.msra.mxu0 0.0
        %4489 = vmatpush.msra.mxu0 %v4009
        %4490 = vmatpush.msra.mxu0 %v3993
        %4491 = vmatpush.msra.mxu0 %v3977
        %4492 = vmatpush.msra.mxu0 %v3961
        %4493 = vmatpush.msra.mxu0 %v4009
        %4494 = vmatpush.msra.mxu0 %v3993
        %4495 = vmatpush.msra.mxu0 %v3977
        %4496 = vmatpush.msra.mxu0 %v3961
        %4497 = vmatpush.msra.mxu0 %v4007
        %4498 = vmatpush.msra.mxu0 %v3991
        %4499 = vmatpush.msra.mxu0 %v3975
        %4500 = vmatpush.msra.mxu0 %v3959
        %4501 = vmatmul.f32.gmra.mxu0 %v4039
        %v4502 = vpop.f32.mrf.mxu0
        %v4503 = vadd.f32 %v4021, %v4502
        %4504 = vmatmul.f32.gmra.mxu0 %v4042
        %v4505 = vpop.f32.mrf.mxu0
        %v4506 = vadd.f32 %v4026, %v4505
        %4507 = vmatmul.f32.gmra.mxu0 %v4045
        %v4508 = vpop.f32.mrf.mxu0
        %v4509 = vadd.f32 %v4031, %v4508
        %4510 = vmatmul.f32.gmra.mxu0 %v4048
        %v4511 = vpop.f32.mrf.mxu0
        %v4512 = vadd.f32 %v4036, %v4511
        %4513 = vdwg.mxu0
        %v4514 = vadd.f32 %v4068, %v4097
        %v4515 = vadd.f32 %v4514, %v4126
        %v4516 = vadd.f32 %v4515, %v4155
        %v4517 = vadd.f32 %v4516, %v4184
        %v4518 = vadd.f32 %v4517, %v4213
        %v4519 = vadd.f32 %v4518, %v4242
        %v4520 = vadd.f32 %v4519, %v4271
        %v4521 = vadd.f32 %v4520, %v4300
        %v4522 = vadd.f32 %v4521, %v4329
        %v4523 = vadd.f32 %v4522, %v4358
        %v4524 = vadd.f32 %v4523, %v4387
        %v4525 = vadd.f32 %v4524, %v4416
        %v4526 = vadd.f32 %v4525, %v4445
        %v4527 = vadd.f32 %v4526, %v4474
        %v4528 = vadd.f32 %v4527, %v4503
        %4529 = vadd.xlane.f32.xlu0 %v4528
        %v4530 = vpop.xlane.xlu0 %4529
        %v4531 = vadd.f32 %v4071, %v4100
        %v4532 = vadd.f32 %v4531, %v4129
        %v4533 = vadd.f32 %v4532, %v4158
        %v4534 = vadd.f32 %v4533, %v4187
        %v4535 = vadd.f32 %v4534, %v4216
        %v4536 = vadd.f32 %v4535, %v4245
        %v4537 = vadd.f32 %v4536, %v4274
        %v4538 = vadd.f32 %v4537, %v4303
        %v4539 = vadd.f32 %v4538, %v4332
        %v4540 = vadd.f32 %v4539, %v4361
        %v4541 = vadd.f32 %v4540, %v4390
        %v4542 = vadd.f32 %v4541, %v4419
        %v4543 = vadd.f32 %v4542, %v4448
        %v4544 = vadd.f32 %v4543, %v4477
        %v4545 = vadd.f32 %v4544, %v4506
        %4546 = vadd.xlane.f32.xlu0 %v4545
        %v4547 = vpop.xlane.xlu0 %4546
        %v4548 = vadd.f32 %v4074, %v4103
        %v4549 = vadd.f32 %v4548, %v4132
        %v4550 = vadd.f32 %v4549, %v4161
        %v4551 = vadd.f32 %v4550, %v4190
        %v4552 = vadd.f32 %v4551, %v4219
        %v4553 = vadd.f32 %v4552, %v4248
        %v4554 = vadd.f32 %v4553, %v4277
        %v4555 = vadd.f32 %v4554, %v4306
        %v4556 = vadd.f32 %v4555, %v4335
        %v4557 = vadd.f32 %v4556, %v4364
        %v4558 = vadd.f32 %v4557, %v4393
        %v4559 = vadd.f32 %v4558, %v4422
        %v4560 = vadd.f32 %v4559, %v4451
        %v4561 = vadd.f32 %v4560, %v4480
        %v4562 = vadd.f32 %v4561, %v4509
        %4563 = vadd.xlane.f32.xlu0 %v4562
        %v4564 = vpop.xlane.xlu0 %4563
        %v4565 = vadd.f32 %v4077, %v4106
        %v4566 = vadd.f32 %v4565, %v4135
        %v4567 = vadd.f32 %v4566, %v4164
        %v4568 = vadd.f32 %v4567, %v4193
        %v4569 = vadd.f32 %v4568, %v4222
        %v4570 = vadd.f32 %v4569, %v4251
        %v4571 = vadd.f32 %v4570, %v4280
        %v4572 = vadd.f32 %v4571, %v4309
        %v4573 = vadd.f32 %v4572, %v4338
        %v4574 = vadd.f32 %v4573, %v4367
        %v4575 = vadd.f32 %v4574, %v4396
        %v4576 = vadd.f32 %v4575, %v4425
        %v4577 = vadd.f32 %v4576, %v4454
        %v4578 = vadd.f32 %v4577, %v4483
        %v4579 = vadd.f32 %v4578, %v4512
        %4580 = vadd.xlane.f32.xlu0 %v4579
        %v4581 = vpop.xlane.xlu0 %4580
        %4582 = vadd.xlane.f32.xlu0 %v4514
        %v4583 = vpop.xlane.xlu0 %4582
        %4584 = vadd.xlane.f32.xlu0 %v4531
        %v4585 = vpop.xlane.xlu0 %4584
        %4586 = vadd.xlane.f32.xlu0 %v4548
        %v4587 = vpop.xlane.xlu0 %4586
        %4588 = vadd.xlane.f32.xlu0 %v4565
        %v4589 = vpop.xlane.xlu0 %4588
        %v4590 = vadd.f32 %v4530, %v4583
        %v4591 = vadd.f32 %v4547, %v4585
        %v4592 = vadd.f32 %v4564, %v4587
        %v4593 = vadd.f32 %v4581, %v4589
        %v4594 = vadd.f32 %v4474, %v4503
        %4595 = vadd.xlane.f32.xlu0 %v4594
        %v4596 = vpop.xlane.xlu0 %4595
        %v4597 = vadd.f32 %v4477, %v4506
        %4598 = vadd.xlane.f32.xlu0 %v4597
        %v4599 = vpop.xlane.xlu0 %4598
        %v4600 = vadd.f32 %v4480, %v4509
        %4601 = vadd.xlane.f32.xlu0 %v4600
        %v4602 = vpop.xlane.xlu0 %4601
        %v4603 = vadd.f32 %v4483, %v4512
        %4604 = vadd.xlane.f32.xlu0 %v4603
        %v4605 = vpop.xlane.xlu0 %4604
        %v4606 = vadd.f32 %v4590, %v4596
        %v4607 = vadd.f32 %v4591, %v4599
        %v4608 = vadd.f32 %v4592, %v4602
        %v4609 = vadd.f32 %v4593, %v4605
        %v4610 = vmul.f32 %v4068, %v4068
        %v4611 = vmul.f32 %v4097, %v4097
        %v4612 = vmul.f32 %v4126, %v4126
        %v4613 = vmul.f32 %v4155, %v4155
        %v4614 = vmul.f32 %v4184, %v4184
        %v4615 = vmul.f32 %v4213, %v4213
        %v4616 = vmul.f32 %v4242, %v4242
        %v4617 = vmul.f32 %v4271, %v4271
        %v4618 = vmul.f32 %v4300, %v4300
        %v4619 = vmul.f32 %v4329, %v4329
        %v4620 = vmul.f32 %v4358, %v4358
        %v4621 = vmul.f32 %v4387, %v4387
        %v4622 = vmul.f32 %v4416, %v4416
        %v4623 = vmul.f32 %v4445, %v4445
        %v4624 = vmul.f32 %v4474, %v4474
        %v4625 = vmul.f32 %v4503, %v4503
        %v4626 = vmul.f32 %v4071, %v4071
        %v4627 = vmul.f32 %v4100, %v4100
        %v4628 = vmul.f32 %v4129, %v4129
        %v4629 = vmul.f32 %v4158, %v4158
        %v4630 = vmul.f32 %v4187, %v4187
        %v4631 = vmul.f32 %v4216, %v4216
        %v4632 = vmul.f32 %v4245, %v4245
        %v4633 = vmul.f32 %v4274, %v4274
        %v4634 = vmul.f32 %v4303, %v4303
        %v4635 = vmul.f32 %v4332, %v4332
        %v4636 = vmul.f32 %v4361, %v4361
        %v4637 = vmul.f32 %v4390, %v4390
        %v4638 = vmul.f32 %v4419, %v4419
        %v4639 = vmul.f32 %v4448, %v4448
        %v4640 = vmul.f32 %v4477, %v4477
        %v4641 = vmul.f32 %v4506, %v4506
        %v4642 = vmul.f32 %v4074, %v4074
        %v4643 = vmul.f32 %v4103, %v4103
        %v4644 = vmul.f32 %v4132, %v4132
        %v4645 = vmul.f32 %v4161, %v4161
        %v4646 = vmul.f32 %v4190, %v4190
        %v4647 = vmul.f32 %v4219, %v4219
        %v4648 = vmul.f32 %v4248, %v4248
        %v4649 = vmul.f32 %v4277, %v4277
        %v4650 = vmul.f32 %v4306, %v4306
        %v4651 = vmul.f32 %v4335, %v4335
        %v4652 = vmul.f32 %v4364, %v4364
        %v4653 = vmul.f32 %v4393, %v4393
        %v4654 = vmul.f32 %v4422, %v4422
        %v4655 = vmul.f32 %v4451, %v4451
        %v4656 = vmul.f32 %v4480, %v4480
        %v4657 = vmul.f32 %v4509, %v4509
        %v4658 = vmul.f32 %v4077, %v4077
        %v4659 = vmul.f32 %v4106, %v4106
        %v4660 = vmul.f32 %v4135, %v4135
        %v4661 = vmul.f32 %v4164, %v4164
        %v4662 = vmul.f32 %v4193, %v4193
        %v4663 = vmul.f32 %v4222, %v4222
        %v4664 = vmul.f32 %v4251, %v4251
        %v4665 = vmul.f32 %v4280, %v4280
        %v4666 = vmul.f32 %v4309, %v4309
        %v4667 = vmul.f32 %v4338, %v4338
        %v4668 = vmul.f32 %v4367, %v4367
        %v4669 = vmul.f32 %v4396, %v4396
        %v4670 = vmul.f32 %v4425, %v4425
        %v4671 = vmul.f32 %v4454, %v4454
        %v4672 = vmul.f32 %v4483, %v4483
        %v4673 = vmul.f32 %v4512, %v4512
        %v4674 = vadd.f32 %v4610, %v4611
        %v4675 = vadd.f32 %v4674, %v4612
        %v4676 = vadd.f32 %v4675, %v4613
        %v4677 = vadd.f32 %v4676, %v4614
        %v4678 = vadd.f32 %v4677, %v4615
        %v4679 = vadd.f32 %v4678, %v4616
        %v4680 = vadd.f32 %v4679, %v4617
        %v4681 = vadd.f32 %v4680, %v4618
        %v4682 = vadd.f32 %v4681, %v4619
        %v4683 = vadd.f32 %v4682, %v4620
        %v4684 = vadd.f32 %v4683, %v4621
        %v4685 = vadd.f32 %v4684, %v4622
        %v4686 = vadd.f32 %v4685, %v4623
        %v4687 = vadd.f32 %v4686, %v4624
        %v4688 = vadd.f32 %v4687, %v4625
        %4689 = vadd.xlane.f32.xlu0 %v4688
        %v4690 = vpop.xlane.xlu0 %4689
        %v4691 = vadd.f32 %v4626, %v4627
        %v4692 = vadd.f32 %v4691, %v4628
        %v4693 = vadd.f32 %v4692, %v4629
        %v4694 = vadd.f32 %v4693, %v4630
        %v4695 = vadd.f32 %v4694, %v4631
        %v4696 = vadd.f32 %v4695, %v4632
        %v4697 = vadd.f32 %v4696, %v4633
        %v4698 = vadd.f32 %v4697, %v4634
        %v4699 = vadd.f32 %v4698, %v4635
        %v4700 = vadd.f32 %v4699, %v4636
        %v4701 = vadd.f32 %v4700, %v4637
        %v4702 = vadd.f32 %v4701, %v4638
        %v4703 = vadd.f32 %v4702, %v4639
        %v4704 = vadd.f32 %v4703, %v4640
        %v4705 = vadd.f32 %v4704, %v4641
        %4706 = vadd.xlane.f32.xlu0 %v4705
        %v4707 = vpop.xlane.xlu0 %4706
        %v4708 = vadd.f32 %v4642, %v4643
        %v4709 = vadd.f32 %v4708, %v4644
        %v4710 = vadd.f32 %v4709, %v4645
        %v4711 = vadd.f32 %v4710, %v4646
        %v4712 = vadd.f32 %v4711, %v4647
        %v4713 = vadd.f32 %v4712, %v4648
        %v4714 = vadd.f32 %v4713, %v4649
        %v4715 = vadd.f32 %v4714, %v4650
        %v4716 = vadd.f32 %v4715, %v4651
        %v4717 = vadd.f32 %v4716, %v4652
        %v4718 = vadd.f32 %v4717, %v4653
        %v4719 = vadd.f32 %v4718, %v4654
        %v4720 = vadd.f32 %v4719, %v4655
        %v4721 = vadd.f32 %v4720, %v4656
        %v4722 = vadd.f32 %v4721, %v4657
        %4723 = vadd.xlane.f32.xlu0 %v4722
        %v4724 = vpop.xlane.xlu0 %4723
        %v4725 = vadd.f32 %v4658, %v4659
        %v4726 = vadd.f32 %v4725, %v4660
        %v4727 = vadd.f32 %v4726, %v4661
        %v4728 = vadd.f32 %v4727, %v4662
        %v4729 = vadd.f32 %v4728, %v4663
        %v4730 = vadd.f32 %v4729, %v4664
        %v4731 = vadd.f32 %v4730, %v4665
        %v4732 = vadd.f32 %v4731, %v4666
        %v4733 = vadd.f32 %v4732, %v4667
        %v4734 = vadd.f32 %v4733, %v4668
        %v4735 = vadd.f32 %v4734, %v4669
        %v4736 = vadd.f32 %v4735, %v4670
        %v4737 = vadd.f32 %v4736, %v4671
        %v4738 = vadd.f32 %v4737, %v4672
        %v4739 = vadd.f32 %v4738, %v4673
        %4740 = vadd.xlane.f32.xlu0 %v4739
        %v4741 = vpop.xlane.xlu0 %4740
        %4742 = vadd.xlane.f32.xlu0 %v4674
        %v4743 = vpop.xlane.xlu0 %4742
        %4744 = vadd.xlane.f32.xlu0 %v4691
        %v4745 = vpop.xlane.xlu0 %4744
        %4746 = vadd.xlane.f32.xlu0 %v4708
        %v4747 = vpop.xlane.xlu0 %4746
        %4748 = vadd.xlane.f32.xlu0 %v4725
        %v4749 = vpop.xlane.xlu0 %4748
        %v4750 = vadd.f32 %v4690, %v4743
        %v4751 = vadd.f32 %v4707, %v4745
        %v4752 = vadd.f32 %v4724, %v4747
        %v4753 = vadd.f32 %v4741, %v4749
        %v4754 = vadd.f32 %v4624, %v4625
        %4755 = vadd.xlane.f32.xlu0 %v4754
        %v4756 = vpop.xlane.xlu0 %4755
        %v4757 = vadd.f32 %v4640, %v4641
        %4758 = vadd.xlane.f32.xlu0 %v4757
        %v4759 = vpop.xlane.xlu0 %4758
        %v4760 = vadd.f32 %v4656, %v4657
        %4761 = vadd.xlane.f32.xlu0 %v4760
        %v4762 = vpop.xlane.xlu0 %4761
        %v4763 = vadd.f32 %v4672, %v4673
        %4764 = vadd.xlane.f32.xlu0 %v4763
        %v4765 = vpop.xlane.xlu0 %4764
        %v4766 = vadd.f32 %v4750, %v4756
        %v4767 = vadd.f32 %v4751, %v4759
        %v4768 = vadd.f32 %v4752, %v4762
        %v4769 = vadd.f32 %v4753, %v4765
        %v4770 = vmul.f32 %v4606, %v976
        %v4771 = vmul.f32 %v4607, %v976
        %v4772 = vmul.f32 %v4608, %v976
        %v4773 = vmul.f32 %v4609, %v976
        %v4774 = vmul.f32 %v4766, %v976
        %v4775 = vmul.f32 %v4767, %v976
        %v4776 = vmul.f32 %v4768, %v976
        %v4777 = vmul.f32 %v4769, %v976
        %v4778 = vmul.f32 %v4770, %v4770
        %v4779 = vmul.f32 %v4771, %v4771
        %v4780 = vmul.f32 %v4772, %v4772
        %v4781 = vmul.f32 %v4773, %v4773
        %v4782 = vsub.f32 %v4774, %v4778
        %v4783 = vsub.f32 %v4775, %v4779
        %v4784 = vsub.f32 %v4776, %v4780
        %v4785 = vsub.f32 %v4777, %v4781
        %v4786 = vadd.f32 %v4782, 1e-05
        %v4787 = vadd.f32 %v4783, 1e-05
        %v4788 = vadd.f32 %v4784, 1e-05
        %v4789 = vadd.f32 %v4785, 1e-05
        %v4790 = vrsqrt.pop %v4786
        %v4791 = vmul.f32 %v4790, %v4786
        %v4792 = vmul.f32 %v4791, %v4790
        %v4793 = vmul.f32 0.5, %v4792
        %v4794 = vsub.f32 1.5, %v4793
        %v4795 = vmul.f32 %v4790, %v4794
        %vm4796 = vweird.f32 %v4786
        %vm4797 = vweird.f32 %v4790
        %vm4798 = vmor %vm4796, %vm4797
        %v4799 = vsel %vm4798, %v4790, %v4795
        %v4800 = vrsqrt.pop %v4787
        %v4801 = vmul.f32 %v4800, %v4787
        %v4802 = vmul.f32 %v4801, %v4800
        %v4803 = vmul.f32 0.5, %v4802
        %v4804 = vsub.f32 1.5, %v4803
        %v4805 = vmul.f32 %v4800, %v4804
        %vm4806 = vweird.f32 %v4787
        %vm4807 = vweird.f32 %v4800
        %vm4808 = vmor %vm4806, %vm4807
        %v4809 = vsel %vm4808, %v4800, %v4805
        %v4810 = vrsqrt.pop %v4788
        %v4811 = vmul.f32 %v4810, %v4788
        %v4812 = vmul.f32 %v4811, %v4810
        %v4813 = vmul.f32 0.5, %v4812
        %v4814 = vsub.f32 1.5, %v4813
        %v4815 = vmul.f32 %v4810, %v4814
        %vm4816 = vweird.f32 %v4788
        %vm4817 = vweird.f32 %v4810
        %vm4818 = vmor %vm4816, %vm4817
        %v4819 = vsel %vm4818, %v4810, %v4815
        %v4820 = vrsqrt.pop %v4789
        %v4821 = vmul.f32 %v4820, %v4789
        %v4822 = vmul.f32 %v4821, %v4820
        %v4823 = vmul.f32 0.5, %v4822
        %v4824 = vsub.f32 1.5, %v4823
        %v4825 = vmul.f32 %v4820, %v4824
        %vm4826 = vweird.f32 %v4789
        %vm4827 = vweird.f32 %v4820
        %vm4828 = vmor %vm4826, %vm4827
        %v4829 = vsel %vm4828, %v4820, %v4825
        %v4830 = vld [vmem:[%s18] sm:$0xff]
        %v4831 = vld [vmem:[%s18 + $0x8] sm:$0xff]
        %v4832 = vld [vmem:[%s18 + $0x10] sm:$0xff]
        %v4833 = vld [vmem:[%s18 + $0x18] sm:$0xff]
        %v4834 = vmul.f32 %v4799, %v4830
        %v4835 = vmul.f32 %v4809, %v4831
        %v4836 = vmul.f32 %v4819, %v4832
        %v4837 = vmul.f32 %v4829, %v4833
        %v4838 = vld [vmem:[%s19] sm:$0xff]
        %v4839 = vld [vmem:[%s19 + $0x8] sm:$0xff]
        %v4840 = vld [vmem:[%s19 + $0x10] sm:$0xff]
        %v4841 = vld [vmem:[%s19 + $0x18] sm:$0xff]
        %v4842 = vmul.f32 %v4770, %v4834
        %v4843 = vmul.f32 %v4771, %v4835
        %v4844 = vmul.f32 %v4772, %v4836
        %v4845 = vmul.f32 %v4773, %v4837
        %v4846 = vsub.f32 %v4838, %v4842
        %v4847 = vsub.f32 %v4839, %v4843
        %v4848 = vsub.f32 %v4840, %v4844
        %v4849 = vsub.f32 %v4841, %v4845
        %4851 = vset.pattern.permute.xlu0 0
        %4852 = vperm.xlu0 %4851, %v4834
        %v4853 = vpop.permute.xlu0 %4852
        %4856 = vset.pattern.permute.xlu0 0
        %4857 = vperm.xlu0 %4856, %v4835
        %v4858 = vpop.permute.xlu0 %4857
        %4861 = vset.pattern.permute.xlu0 0
        %4862 = vperm.xlu0 %4861, %v4836
        %v4863 = vpop.permute.xlu0 %4862
        %4866 = vset.pattern.permute.xlu0 0
        %4867 = vperm.xlu0 %4866, %v4837
        %v4868 = vpop.permute.xlu0 %4867
        %v4870 = vmul.f32 %v4068, %v4853
        %v4871 = vmul.f32 %v4097, %v4853
        %v4872 = vmul.f32 %v4126, %v4853
        %v4873 = vmul.f32 %v4155, %v4853
        %v4874 = vmul.f32 %v4184, %v4853
        %v4875 = vmul.f32 %v4213, %v4853
        %v4876 = vmul.f32 %v4242, %v4853
        %v4877 = vmul.f32 %v4271, %v4853
        %v4878 = vmul.f32 %v4300, %v4853
        %v4879 = vmul.f32 %v4329, %v4853
        %v4880 = vmul.f32 %v4358, %v4853
        %v4881 = vmul.f32 %v4387, %v4853
        %v4882 = vmul.f32 %v4416, %v4853
        %v4883 = vmul.f32 %v4445, %v4853
        %v4884 = vmul.f32 %v4474, %v4853
        %v4885 = vmul.f32 %v4503, %v4853
        %v4886 = vmul.f32 %v4071, %v4858
        %v4887 = vmul.f32 %v4100, %v4858
        %v4888 = vmul.f32 %v4129, %v4858
        %v4889 = vmul.f32 %v4158, %v4858
        %v4890 = vmul.f32 %v4187, %v4858
        %v4891 = vmul.f32 %v4216, %v4858
        %v4892 = vmul.f32 %v4245, %v4858
        %v4893 = vmul.f32 %v4274, %v4858
        %v4894 = vmul.f32 %v4303, %v4858
        %v4895 = vmul.f32 %v4332, %v4858
        %v4896 = vmul.f32 %v4361, %v4858
        %v4897 = vmul.f32 %v4390, %v4858
        %v4898 = vmul.f32 %v4419, %v4858
        %v4899 = vmul.f32 %v4448, %v4858
        %v4900 = vmul.f32 %v4477, %v4858
        %v4901 = vmul.f32 %v4506, %v4858
        %v4902 = vmul.f32 %v4074, %v4863
        %v4903 = vmul.f32 %v4103, %v4863
        %v4904 = vmul.f32 %v4132, %v4863
        %v4905 = vmul.f32 %v4161, %v4863
        %v4906 = vmul.f32 %v4190, %v4863
        %v4907 = vmul.f32 %v4219, %v4863
        %v4908 = vmul.f32 %v4248, %v4863
        %v4909 = vmul.f32 %v4277, %v4863
        %v4910 = vmul.f32 %v4306, %v4863
        %v4911 = vmul.f32 %v4335, %v4863
        %v4912 = vmul.f32 %v4364, %v4863
        %v4913 = vmul.f32 %v4393, %v4863
        %v4914 = vmul.f32 %v4422, %v4863
        %v4915 = vmul.f32 %v4451, %v4863
        %v4916 = vmul.f32 %v4480, %v4863
        %v4917 = vmul.f32 %v4509, %v4863
        %v4918 = vmul.f32 %v4077, %v4868
        %v4919 = vmul.f32 %v4106, %v4868
        %v4920 = vmul.f32 %v4135, %v4868
        %v4921 = vmul.f32 %v4164, %v4868
        %v4922 = vmul.f32 %v4193, %v4868
        %v4923 = vmul.f32 %v4222, %v4868
        %v4924 = vmul.f32 %v4251, %v4868
        %v4925 = vmul.f32 %v4280, %v4868
        %v4926 = vmul.f32 %v4309, %v4868
        %v4927 = vmul.f32 %v4338, %v4868
        %v4928 = vmul.f32 %v4367, %v4868
        %v4929 = vmul.f32 %v4396, %v4868
        %v4930 = vmul.f32 %v4425, %v4868
        %v4931 = vmul.f32 %v4454, %v4868
        %v4932 = vmul.f32 %v4483, %v4868
        %v4933 = vmul.f32 %v4512, %v4868
        %4935 = vset.pattern.permute.xlu0 0
        %4936 = vperm.xlu0 %4935, %v4846
        %v4937 = vpop.permute.xlu0 %4936
        %4940 = vset.pattern.permute.xlu0 0
        %4941 = vperm.xlu0 %4940, %v4847
        %v4942 = vpop.permute.xlu0 %4941
        %4945 = vset.pattern.permute.xlu0 0
        %4946 = vperm.xlu0 %4945, %v4848
        %v4947 = vpop.permute.xlu0 %4946
        %4950 = vset.pattern.permute.xlu0 0
        %4951 = vperm.xlu0 %4950, %v4849
        %v4952 = vpop.permute.xlu0 %4951
        %v4954 = vadd.f32 %v4870, %v4937
        %v4955 = vadd.f32 %v4871, %v4937
        %v4956 = vadd.f32 %v4872, %v4937
        %v4957 = vadd.f32 %v4873, %v4937
        %v4958 = vadd.f32 %v4874, %v4937
        %v4959 = vadd.f32 %v4875, %v4937
        %v4960 = vadd.f32 %v4876, %v4937
        %v4961 = vadd.f32 %v4877, %v4937
        %v4962 = vadd.f32 %v4878, %v4937
        %v4963 = vadd.f32 %v4879, %v4937
        %v4964 = vadd.f32 %v4880, %v4937
        %v4965 = vadd.f32 %v4881, %v4937
        %v4966 = vadd.f32 %v4882, %v4937
        %v4967 = vadd.f32 %v4883, %v4937
        %v4968 = vadd.f32 %v4884, %v4937
        %v4969 = vadd.f32 %v4885, %v4937
        %v4970 = vadd.f32 %v4886, %v4942
        %v4971 = vadd.f32 %v4887, %v4942
        %v4972 = vadd.f32 %v4888, %v4942
        %v4973 = vadd.f32 %v4889, %v4942
        %v4974 = vadd.f32 %v4890, %v4942
        %v4975 = vadd.f32 %v4891, %v4942
        %v4976 = vadd.f32 %v4892, %v4942
        %v4977 = vadd.f32 %v4893, %v4942
        %v4978 = vadd.f32 %v4894, %v4942
        %v4979 = vadd.f32 %v4895, %v4942
        %v4980 = vadd.f32 %v4896, %v4942
        %v4981 = vadd.f32 %v4897, %v4942
        %v4982 = vadd.f32 %v4898, %v4942
        %v4983 = vadd.f32 %v4899, %v4942
        %v4984 = vadd.f32 %v4900, %v4942
        %v4985 = vadd.f32 %v4901, %v4942
        %v4986 = vadd.f32 %v4902, %v4947
        %v4987 = vadd.f32 %v4903, %v4947
        %v4988 = vadd.f32 %v4904, %v4947
        %v4989 = vadd.f32 %v4905, %v4947
        %v4990 = vadd.f32 %v4906, %v4947
        %v4991 = vadd.f32 %v4907, %v4947
        %v4992 = vadd.f32 %v4908, %v4947
        %v4993 = vadd.f32 %v4909, %v4947
        %v4994 = vadd.f32 %v4910, %v4947
        %v4995 = vadd.f32 %v4911, %v4947
        %v4996 = vadd.f32 %v4912, %v4947
        %v4997 = vadd.f32 %v4913, %v4947
        %v4998 = vadd.f32 %v4914, %v4947
        %v4999 = vadd.f32 %v4915, %v4947
        %v5000 = vadd.f32 %v4916, %v4947
        %v5001 = vadd.f32 %v4917, %v4947
        %v5002 = vadd.f32 %v4918, %v4952
        %v5003 = vadd.f32 %v4919, %v4952
        %v5004 = vadd.f32 %v4920, %v4952
        %v5005 = vadd.f32 %v4921, %v4952
        %v5006 = vadd.f32 %v4922, %v4952
        %v5007 = vadd.f32 %v4923, %v4952
        %v5008 = vadd.f32 %v4924, %v4952
        %v5009 = vadd.f32 %v4925, %v4952
        %v5010 = vadd.f32 %v4926, %v4952
        %v5011 = vadd.f32 %v4927, %v4952
        %v5012 = vadd.f32 %v4928, %v4952
        %v5013 = vadd.f32 %v4929, %v4952
        %v5014 = vadd.f32 %v4930, %v4952
        %v5015 = vadd.f32 %v4931, %v4952
        %v5016 = vadd.f32 %v4932, %v4952
        %v5017 = vadd.f32 %v4933, %v4952
        %v5018 = vmul.f32 %v4954, 0.5
        %v5019 = vmul.f32 %v4955, 0.5
        %v5020 = vmul.f32 %v4956, 0.5
        %v5021 = vmul.f32 %v4957, 0.5
        %v5022 = vmul.f32 %v4958, 0.5
        %v5023 = vmul.f32 %v4959, 0.5
        %v5024 = vmul.f32 %v4960, 0.5
        %v5025 = vmul.f32 %v4961, 0.5
        %v5026 = vmul.f32 %v4962, 0.5
        %v5027 = vmul.f32 %v4963, 0.5
        %v5028 = vmul.f32 %v4964, 0.5
        %v5029 = vmul.f32 %v4965, 0.5
        %v5030 = vmul.f32 %v4966, 0.5
        %v5031 = vmul.f32 %v4967, 0.5
        %v5032 = vmul.f32 %v4968, 0.5
        %v5033 = vmul.f32 %v4969, 0.5
        %v5034 = vmul.f32 %v4970, 0.5
        %v5035 = vmul.f32 %v4971, 0.5
        %v5036 = vmul.f32 %v4972, 0.5
        %v5037 = vmul.f32 %v4973, 0.5
        %v5038 = vmul.f32 %v4974, 0.5
        %v5039 = vmul.f32 %v4975, 0.5
        %v5040 = vmul.f32 %v4976, 0.5
        %v5041 = vmul.f32 %v4977, 0.5
        %v5042 = vmul.f32 %v4978, 0.5
        %v5043 = vmul.f32 %v4979, 0.5
        %v5044 = vmul.f32 %v4980, 0.5
        %v5045 = vmul.f32 %v4981, 0.5
        %v5046 = vmul.f32 %v4982, 0.5
        %v5047 = vmul.f32 %v4983, 0.5
        %v5048 = vmul.f32 %v4984, 0.5
        %v5049 = vmul.f32 %v4985, 0.5
        %v5050 = vmul.f32 %v4986, 0.5
        %v5051 = vmul.f32 %v4987, 0.5
        %v5052 = vmul.f32 %v4988, 0.5
        %v5053 = vmul.f32 %v4989, 0.5
        %v5054 = vmul.f32 %v4990, 0.5
        %v5055 = vmul.f32 %v4991, 0.5
        %v5056 = vmul.f32 %v4992, 0.5
        %v5057 = vmul.f32 %v4993, 0.5
        %v5058 = vmul.f32 %v4994, 0.5
        %v5059 = vmul.f32 %v4995, 0.5
        %v5060 = vmul.f32 %v4996, 0.5
        %v5061 = vmul.f32 %v4997, 0.5
        %v5062 = vmul.f32 %v4998, 0.5
        %v5063 = vmul.f32 %v4999, 0.5
        %v5064 = vmul.f32 %v5000, 0.5
        %v5065 = vmul.f32 %v5001, 0.5
        %v5066 = vmul.f32 %v5002, 0.5
        %v5067 = vmul.f32 %v5003, 0.5
        %v5068 = vmul.f32 %v5004, 0.5
        %v5069 = vmul.f32 %v5005, 0.5
        %v5070 = vmul.f32 %v5006, 0.5
        %v5071 = vmul.f32 %v5007, 0.5
        %v5072 = vmul.f32 %v5008, 0.5
        %v5073 = vmul.f32 %v5009, 0.5
        %v5074 = vmul.f32 %v5010, 0.5
        %v5075 = vmul.f32 %v5011, 0.5
        %v5076 = vmul.f32 %v5012, 0.5
        %v5077 = vmul.f32 %v5013, 0.5
        %v5078 = vmul.f32 %v5014, 0.5
        %v5079 = vmul.f32 %v5015, 0.5
        %v5080 = vmul.f32 %v5016, 0.5
        %v5081 = vmul.f32 %v5017, 0.5
        %v5082 = vtanh.pop %v5018
        %v5083 = vtanh.pop %v5019
        %v5084 = vtanh.pop %v5020
        %v5085 = vtanh.pop %v5021
        %v5086 = vtanh.pop %v5022
        %v5087 = vtanh.pop %v5023
        %v5088 = vtanh.pop %v5024
        %v5089 = vtanh.pop %v5025
        %v5090 = vtanh.pop %v5026
        %v5091 = vtanh.pop %v5027
        %v5092 = vtanh.pop %v5028
        %v5093 = vtanh.pop %v5029
        %v5094 = vtanh.pop %v5030
        %v5095 = vtanh.pop %v5031
        %v5096 = vtanh.pop %v5032
        %v5097 = vtanh.pop %v5033
        %v5098 = vtanh.pop %v5034
        %v5099 = vtanh.pop %v5035
        %v5100 = vtanh.pop %v5036
        %v5101 = vtanh.pop %v5037
        %v5102 = vtanh.pop %v5038
        %v5103 = vtanh.pop %v5039
        %v5104 = vtanh.pop %v5040
        %v5105 = vtanh.pop %v5041
        %v5106 = vtanh.pop %v5042
        %v5107 = vtanh.pop %v5043
        %v5108 = vtanh.pop %v5044
        %v5109 = vtanh.pop %v5045
        %v5110 = vtanh.pop %v5046
        %v5111 = vtanh.pop %v5047
        %v5112 = vtanh.pop %v5048
        %v5113 = vtanh.pop %v5049
        %v5114 = vtanh.pop %v5050
        %v5115 = vtanh.pop %v5051
        %v5116 = vtanh.pop %v5052
        %v5117 = vtanh.pop %v5053
        %v5118 = vtanh.pop %v5054
        %v5119 = vtanh.pop %v5055
        %v5120 = vtanh.pop %v5056
        %v5121 = vtanh.pop %v5057
        %v5122 = vtanh.pop %v5058
        %v5123 = vtanh.pop %v5059
        %v5124 = vtanh.pop %v5060
        %v5125 = vtanh.pop %v5061
        %v5126 = vtanh.pop %v5062
        %v5127 = vtanh.pop %v5063
        %v5128 = vtanh.pop %v5064
        %v5129 = vtanh.pop %v5065
        %v5130 = vtanh.pop %v5066
        %v5131 = vtanh.pop %v5067
        %v5132 = vtanh.pop %v5068
        %v5133 = vtanh.pop %v5069
        %v5134 = vtanh.pop %v5070
        %v5135 = vtanh.pop %v5071
        %v5136 = vtanh.pop %v5072
        %v5137 = vtanh.pop %v5073
        %v5138 = vtanh.pop %v5074
        %v5139 = vtanh.pop %v5075
        %v5140 = vtanh.pop %v5076
        %v5141 = vtanh.pop %v5077
        %v5142 = vtanh.pop %v5078
        %v5143 = vtanh.pop %v5079
        %v5144 = vtanh.pop %v5080
        %v5145 = vtanh.pop %v5081
        %v5146 = vadd.f32 %v5082, 1.0
        %v5147 = vadd.f32 %v5083, 1.0
        %v5148 = vadd.f32 %v5084, 1.0
        %v5149 = vadd.f32 %v5085, 1.0
        %v5150 = vadd.f32 %v5086, 1.0
        %v5151 = vadd.f32 %v5087, 1.0
        %v5152 = vadd.f32 %v5088, 1.0
        %v5153 = vadd.f32 %v5089, 1.0
        %v5154 = vadd.f32 %v5090, 1.0
        %v5155 = vadd.f32 %v5091, 1.0
        %v5156 = vadd.f32 %v5092, 1.0
        %v5157 = vadd.f32 %v5093, 1.0
        %v5158 = vadd.f32 %v5094, 1.0
        %v5159 = vadd.f32 %v5095, 1.0
        %v5160 = vadd.f32 %v5096, 1.0
        %v5161 = vadd.f32 %v5097, 1.0
        %v5162 = vadd.f32 %v5098, 1.0
        %v5163 = vadd.f32 %v5099, 1.0
        %v5164 = vadd.f32 %v5100, 1.0
        %v5165 = vadd.f32 %v5101, 1.0
        %v5166 = vadd.f32 %v5102, 1.0
        %v5167 = vadd.f32 %v5103, 1.0
        %v5168 = vadd.f32 %v5104, 1.0
        %v5169 = vadd.f32 %v5105, 1.0
        %v5170 = vadd.f32 %v5106, 1.0
        %v5171 = vadd.f32 %v5107, 1.0
        %v5172 = vadd.f32 %v5108, 1.0
        %v5173 = vadd.f32 %v5109, 1.0
        %v5174 = vadd.f32 %v5110, 1.0
        %v5175 = vadd.f32 %v5111, 1.0
        %v5176 = vadd.f32 %v5112, 1.0
        %v5177 = vadd.f32 %v5113, 1.0
        %v5178 = vadd.f32 %v5114, 1.0
        %v5179 = vadd.f32 %v5115, 1.0
        %v5180 = vadd.f32 %v5116, 1.0
        %v5181 = vadd.f32 %v5117, 1.0
        %v5182 = vadd.f32 %v5118, 1.0
        %v5183 = vadd.f32 %v5119, 1.0
        %v5184 = vadd.f32 %v5120, 1.0
        %v5185 = vadd.f32 %v5121, 1.0
        %v5186 = vadd.f32 %v5122, 1.0
        %v5187 = vadd.f32 %v5123, 1.0
        %v5188 = vadd.f32 %v5124, 1.0
        %v5189 = vadd.f32 %v5125, 1.0
        %v5190 = vadd.f32 %v5126, 1.0
        %v5191 = vadd.f32 %v5127, 1.0
        %v5192 = vadd.f32 %v5128, 1.0
        %v5193 = vadd.f32 %v5129, 1.0
        %v5194 = vadd.f32 %v5130, 1.0
        %v5195 = vadd.f32 %v5131, 1.0
        %v5196 = vadd.f32 %v5132, 1.0
        %v5197 = vadd.f32 %v5133, 1.0
        %v5198 = vadd.f32 %v5134, 1.0
        %v5199 = vadd.f32 %v5135, 1.0
        %v5200 = vadd.f32 %v5136, 1.0
        %v5201 = vadd.f32 %v5137, 1.0
        %v5202 = vadd.f32 %v5138, 1.0
        %v5203 = vadd.f32 %v5139, 1.0
        %v5204 = vadd.f32 %v5140, 1.0
        %v5205 = vadd.f32 %v5141, 1.0
        %v5206 = vadd.f32 %v5142, 1.0
        %v5207 = vadd.f32 %v5143, 1.0
        %v5208 = vadd.f32 %v5144, 1.0
        %v5209 = vadd.f32 %v5145, 1.0
        %v5210 = vmul.f32 %v5018, %v5146
        %v5211 = vmul.f32 %v5019, %v5147
        %v5212 = vmul.f32 %v5020, %v5148
        %v5213 = vmul.f32 %v5021, %v5149
        %v5214 = vmul.f32 %v5022, %v5150
        %v5215 = vmul.f32 %v5023, %v5151
        %v5216 = vmul.f32 %v5024, %v5152
        %v5217 = vmul.f32 %v5025, %v5153
        %v5218 = vmul.f32 %v5026, %v5154
        %v5219 = vmul.f32 %v5027, %v5155
        %v5220 = vmul.f32 %v5028, %v5156
        %v5221 = vmul.f32 %v5029, %v5157
        %v5222 = vmul.f32 %v5030, %v5158
        %v5223 = vmul.f32 %v5031, %v5159
        %v5224 = vmul.f32 %v5032, %v5160
        %v5225 = vmul.f32 %v5033, %v5161
        %v5226 = vmul.f32 %v5034, %v5162
        %v5227 = vmul.f32 %v5035, %v5163
        %v5228 = vmul.f32 %v5036, %v5164
        %v5229 = vmul.f32 %v5037, %v5165
        %v5230 = vmul.f32 %v5038, %v5166
        %v5231 = vmul.f32 %v5039, %v5167
        %v5232 = vmul.f32 %v5040, %v5168
        %v5233 = vmul.f32 %v5041, %v5169
        %v5234 = vmul.f32 %v5042, %v5170
        %v5235 = vmul.f32 %v5043, %v5171
        %v5236 = vmul.f32 %v5044, %v5172
        %v5237 = vmul.f32 %v5045, %v5173
        %v5238 = vmul.f32 %v5046, %v5174
        %v5239 = vmul.f32 %v5047, %v5175
        %v5240 = vmul.f32 %v5048, %v5176
        %v5241 = vmul.f32 %v5049, %v5177
        %v5242 = vmul.f32 %v5050, %v5178
        %v5243 = vmul.f32 %v5051, %v5179
        %v5244 = vmul.f32 %v5052, %v5180
        %v5245 = vmul.f32 %v5053, %v5181
        %v5246 = vmul.f32 %v5054, %v5182
        %v5247 = vmul.f32 %v5055, %v5183
        %v5248 = vmul.f32 %v5056, %v5184
        %v5249 = vmul.f32 %v5057, %v5185
        %v5250 = vmul.f32 %v5058, %v5186
        %v5251 = vmul.f32 %v5059, %v5187
        %v5252 = vmul.f32 %v5060, %v5188
        %v5253 = vmul.f32 %v5061, %v5189
        %v5254 = vmul.f32 %v5062, %v5190
        %v5255 = vmul.f32 %v5063, %v5191
        %v5256 = vmul.f32 %v5064, %v5192
        %v5257 = vmul.f32 %v5065, %v5193
        %v5258 = vmul.f32 %v5066, %v5194
        %v5259 = vmul.f32 %v5067, %v5195
        %v5260 = vmul.f32 %v5068, %v5196
        %v5261 = vmul.f32 %v5069, %v5197
        %v5262 = vmul.f32 %v5070, %v5198
        %v5263 = vmul.f32 %v5071, %v5199
        %v5264 = vmul.f32 %v5072, %v5200
        %v5265 = vmul.f32 %v5073, %v5201
        %v5266 = vmul.f32 %v5074, %v5202
        %v5267 = vmul.f32 %v5075, %v5203
        %v5268 = vmul.f32 %v5076, %v5204
        %v5269 = vmul.f32 %v5077, %v5205
        %v5270 = vmul.f32 %v5078, %v5206
        %v5271 = vmul.f32 %v5079, %v5207
        %v5272 = vmul.f32 %v5080, %v5208
        %v5273 = vmul.f32 %v5081, %v5209
        %v5274 = vld [vmem:[%s16] sm:$0xff]
        %v5275 = vld [vmem:[%s16 + $0x8] sm:$0xff]
        %v5276 = vld [vmem:[%s16 + $0x10] sm:$0xff]
        %v5277 = vld [vmem:[%s16 + $0x18] sm:$0xff]
        %v5278 = vld [vmem:[%s17] sm:$0xff]
        %v5279 = vld [vmem:[%s17 + $0x8] sm:$0xff]
        %v5280 = vld [vmem:[%s17 + $0x10] sm:$0xff]
        %v5281 = vld [vmem:[%s17 + $0x18] sm:$0xff]
        %5283 = vset.pattern.permute.xlu0 0
        %5284 = vperm.xlu0 %5283, %v5278
        %v5285 = vpop.permute.xlu0 %5284
        %5288 = vset.pattern.permute.xlu0 0
        %5289 = vperm.xlu0 %5288, %v5279
        %v5290 = vpop.permute.xlu0 %5289
        %5293 = vset.pattern.permute.xlu0 0
        %5294 = vperm.xlu0 %5293, %v5280
        %v5295 = vpop.permute.xlu0 %5294
        %5298 = vset.pattern.permute.xlu0 0
        %5299 = vperm.xlu0 %5298, %v5281
        %v5300 = vpop.permute.xlu0 %5299
        %v5303 = vsel %vm1509, %v5274, 0
        %v5306 = vsel %vm1509, %v5275, 0
        %v5309 = vsel %vm1509, %v5276, 0
        %v5312 = vsel %vm1509, %v5277, 0
        %5314 = vmatpush.msra.mxu0 0.0
        %5315 = vmatpush.msra.mxu0 0.0
        %5316 = vmatpush.msra.mxu0 0.0
        %5317 = vmatpush.msra.mxu0 0.0
        %5318 = vmatpush.msra.mxu0 %v5260
        %5319 = vmatpush.msra.mxu0 %v5244
        %5320 = vmatpush.msra.mxu0 %v5228
        %5321 = vmatpush.msra.mxu0 %v5212
        %5322 = vmatpush.msra.mxu0 %v5258
        %5323 = vmatpush.msra.mxu0 %v5242
        %5324 = vmatpush.msra.mxu0 %v5226
        %5325 = vmatpush.msra.mxu0 %v5210
        %5326 = vmatpush.msra.mxu0 %v5258
        %5327 = vmatpush.msra.mxu0 %v5242
        %5328 = vmatpush.msra.mxu0 %v5226
        %5329 = vmatpush.msra.mxu0 %v5210
        %5330 = vmatmul.f32.gmra.mxu0 %v5303
        %v5331 = vpop.f32.mrf.mxu0
        %v5332 = vadd.f32 %v5285, %v5331
        %5333 = vmatmul.f32.gmra.mxu0 %v5306
        %v5334 = vpop.f32.mrf.mxu0
        %v5335 = vadd.f32 %v5290, %v5334
        %5336 = vmatmul.f32.gmra.mxu0 %v5309
        %v5337 = vpop.f32.mrf.mxu0
        %v5338 = vadd.f32 %v5295, %v5337
        %5339 = vmatmul.f32.gmra.mxu0 %v5312
        %v5340 = vpop.f32.mrf.mxu0
        %v5341 = vadd.f32 %v5300, %v5340
        %5342 = vdwg.mxu0
        %5343 = vmatpush.msra.mxu0 0.0
        %5344 = vmatpush.msra.mxu0 0.0
        %5345 = vmatpush.msra.mxu0 0.0
        %5346 = vmatpush.msra.mxu0 0.0
        %5347 = vmatpush.msra.mxu0 %v5261
        %5348 = vmatpush.msra.mxu0 %v5245
        %5349 = vmatpush.msra.mxu0 %v5229
        %5350 = vmatpush.msra.mxu0 %v5213
        %5351 = vmatpush.msra.mxu0 %v5259
        %5352 = vmatpush.msra.mxu0 %v5243
        %5353 = vmatpush.msra.mxu0 %v5227
        %5354 = vmatpush.msra.mxu0 %v5211
        %5355 = vmatpush.msra.mxu0 %v5259
        %5356 = vmatpush.msra.mxu0 %v5243
        %5357 = vmatpush.msra.mxu0 %v5227
        %5358 = vmatpush.msra.mxu0 %v5211
        %5359 = vmatmul.f32.gmra.mxu0 %v5303
        %v5360 = vpop.f32.mrf.mxu0
        %v5361 = vadd.f32 %v5285, %v5360
        %5362 = vmatmul.f32.gmra.mxu0 %v5306
        %v5363 = vpop.f32.mrf.mxu0
        %v5364 = vadd.f32 %v5290, %v5363
        %5365 = vmatmul.f32.gmra.mxu0 %v5309
        %v5366 = vpop.f32.mrf.mxu0
        %v5367 = vadd.f32 %v5295, %v5366
        %5368 = vmatmul.f32.gmra.mxu0 %v5312
        %v5369 = vpop.f32.mrf.mxu0
        %v5370 = vadd.f32 %v5300, %v5369
        %5371 = vdwg.mxu0
        %5372 = vmatpush.msra.mxu0 0.0
        %5373 = vmatpush.msra.mxu0 0.0
        %5374 = vmatpush.msra.mxu0 0.0
        %5375 = vmatpush.msra.mxu0 0.0
        %5376 = vmatpush.msra.mxu0 %v5262
        %5377 = vmatpush.msra.mxu0 %v5246
        %5378 = vmatpush.msra.mxu0 %v5230
        %5379 = vmatpush.msra.mxu0 %v5214
        %5380 = vmatpush.msra.mxu0 %v5260
        %5381 = vmatpush.msra.mxu0 %v5244
        %5382 = vmatpush.msra.mxu0 %v5228
        %5383 = vmatpush.msra.mxu0 %v5212
        %5384 = vmatpush.msra.mxu0 %v5258
        %5385 = vmatpush.msra.mxu0 %v5242
        %5386 = vmatpush.msra.mxu0 %v5226
        %5387 = vmatpush.msra.mxu0 %v5210
        %5388 = vmatmul.f32.gmra.mxu0 %v5303
        %v5389 = vpop.f32.mrf.mxu0
        %v5390 = vadd.f32 %v5285, %v5389
        %5391 = vmatmul.f32.gmra.mxu0 %v5306
        %v5392 = vpop.f32.mrf.mxu0
        %v5393 = vadd.f32 %v5290, %v5392
        %5394 = vmatmul.f32.gmra.mxu0 %v5309
        %v5395 = vpop.f32.mrf.mxu0
        %v5396 = vadd.f32 %v5295, %v5395
        %5397 = vmatmul.f32.gmra.mxu0 %v5312
        %v5398 = vpop.f32.mrf.mxu0
        %v5399 = vadd.f32 %v5300, %v5398
        %5400 = vdwg.mxu0
        %5401 = vmatpush.msra.mxu0 0.0
        %5402 = vmatpush.msra.mxu0 0.0
        %5403 = vmatpush.msra.mxu0 0.0
        %5404 = vmatpush.msra.mxu0 0.0
        %5405 = vmatpush.msra.mxu0 %v5263
        %5406 = vmatpush.msra.mxu0 %v5247
        %5407 = vmatpush.msra.mxu0 %v5231
        %5408 = vmatpush.msra.mxu0 %v5215
        %5409 = vmatpush.msra.mxu0 %v5261
        %5410 = vmatpush.msra.mxu0 %v5245
        %5411 = vmatpush.msra.mxu0 %v5229
        %5412 = vmatpush.msra.mxu0 %v5213
        %5413 = vmatpush.msra.mxu0 %v5259
        %5414 = vmatpush.msra.mxu0 %v5243
        %5415 = vmatpush.msra.mxu0 %v5227
        %5416 = vmatpush.msra.mxu0 %v5211
        %5417 = vmatmul.f32.gmra.mxu0 %v5303
        %v5418 = vpop.f32.mrf.mxu0
        %v5419 = vadd.f32 %v5285, %v5418
        %5420 = vmatmul.f32.gmra.mxu0 %v5306
        %v5421 = vpop.f32.mrf.mxu0
        %v5422 = vadd.f32 %v5290, %v5421
        %5423 = vmatmul.f32.gmra.mxu0 %v5309
        %v5424 = vpop.f32.mrf.mxu0
        %v5425 = vadd.f32 %v5295, %v5424
        %5426 = vmatmul.f32.gmra.mxu0 %v5312
        %v5427 = vpop.f32.mrf.mxu0
        %v5428 = vadd.f32 %v5300, %v5427
        %5429 = vdwg.mxu0
        %5430 = vmatpush.msra.mxu0 0.0
        %5431 = vmatpush.msra.mxu0 0.0
        %5432 = vmatpush.msra.mxu0 0.0
        %5433 = vmatpush.msra.mxu0 0.0
        %5434 = vmatpush.msra.mxu0 %v5264
        %5435 = vmatpush.msra.mxu0 %v5248
        %5436 = vmatpush.msra.mxu0 %v5232
        %5437 = vmatpush.msra.mxu0 %v5216
        %5438 = vmatpush.msra.mxu0 %v5262
        %5439 = vmatpush.msra.mxu0 %v5246
        %5440 = vmatpush.msra.mxu0 %v5230
        %5441 = vmatpush.msra.mxu0 %v5214
        %5442 = vmatpush.msra.mxu0 %v5260
        %5443 = vmatpush.msra.mxu0 %v5244
        %5444 = vmatpush.msra.mxu0 %v5228
        %5445 = vmatpush.msra.mxu0 %v5212
        %5446 = vmatmul.f32.gmra.mxu0 %v5303
        %v5447 = vpop.f32.mrf.mxu0
        %v5448 = vadd.f32 %v5285, %v5447
        %5449 = vmatmul.f32.gmra.mxu0 %v5306
        %v5450 = vpop.f32.mrf.mxu0
        %v5451 = vadd.f32 %v5290, %v5450
        %5452 = vmatmul.f32.gmra.mxu0 %v5309
        %v5453 = vpop.f32.mrf.mxu0
        %v5454 = vadd.f32 %v5295, %v5453
        %5455 = vmatmul.f32.gmra.mxu0 %v5312
        %v5456 = vpop.f32.mrf.mxu0
        %v5457 = vadd.f32 %v5300, %v5456
        %5458 = vdwg.mxu0
        %5459 = vmatpush.msra.mxu0 0.0
        %5460 = vmatpush.msra.mxu0 0.0
        %5461 = vmatpush.msra.mxu0 0.0
        %5462 = vmatpush.msra.mxu0 0.0
        %5463 = vmatpush.msra.mxu0 %v5265
        %5464 = vmatpush.msra.mxu0 %v5249
        %5465 = vmatpush.msra.mxu0 %v5233
        %5466 = vmatpush.msra.mxu0 %v5217
        %5467 = vmatpush.msra.mxu0 %v5263
        %5468 = vmatpush.msra.mxu0 %v5247
        %5469 = vmatpush.msra.mxu0 %v5231
        %5470 = vmatpush.msra.mxu0 %v5215
        %5471 = vmatpush.msra.mxu0 %v5261
        %5472 = vmatpush.msra.mxu0 %v5245
        %5473 = vmatpush.msra.mxu0 %v5229
        %5474 = vmatpush.msra.mxu0 %v5213
        %5475 = vmatmul.f32.gmra.mxu0 %v5303
        %v5476 = vpop.f32.mrf.mxu0
        %v5477 = vadd.f32 %v5285, %v5476
        %5478 = vmatmul.f32.gmra.mxu0 %v5306
        %v5479 = vpop.f32.mrf.mxu0
        %v5480 = vadd.f32 %v5290, %v5479
        %5481 = vmatmul.f32.gmra.mxu0 %v5309
        %v5482 = vpop.f32.mrf.mxu0
        %v5483 = vadd.f32 %v5295, %v5482
        %5484 = vmatmul.f32.gmra.mxu0 %v5312
        %v5485 = vpop.f32.mrf.mxu0
        %v5486 = vadd.f32 %v5300, %v5485
        %5487 = vdwg.mxu0
        %5488 = vmatpush.msra.mxu0 0.0
        %5489 = vmatpush.msra.mxu0 0.0
        %5490 = vmatpush.msra.mxu0 0.0
        %5491 = vmatpush.msra.mxu0 0.0
        %5492 = vmatpush.msra.mxu0 %v5266
        %5493 = vmatpush.msra.mxu0 %v5250
        %5494 = vmatpush.msra.mxu0 %v5234
        %5495 = vmatpush.msra.mxu0 %v5218
        %5496 = vmatpush.msra.mxu0 %v5264
        %5497 = vmatpush.msra.mxu0 %v5248
        %5498 = vmatpush.msra.mxu0 %v5232
        %5499 = vmatpush.msra.mxu0 %v5216
        %5500 = vmatpush.msra.mxu0 %v5262
        %5501 = vmatpush.msra.mxu0 %v5246
        %5502 = vmatpush.msra.mxu0 %v5230
        %5503 = vmatpush.msra.mxu0 %v5214
        %5504 = vmatmul.f32.gmra.mxu0 %v5303
        %v5505 = vpop.f32.mrf.mxu0
        %v5506 = vadd.f32 %v5285, %v5505
        %5507 = vmatmul.f32.gmra.mxu0 %v5306
        %v5508 = vpop.f32.mrf.mxu0
        %v5509 = vadd.f32 %v5290, %v5508
        %5510 = vmatmul.f32.gmra.mxu0 %v5309
        %v5511 = vpop.f32.mrf.mxu0
        %v5512 = vadd.f32 %v5295, %v5511
        %5513 = vmatmul.f32.gmra.mxu0 %v5312
        %v5514 = vpop.f32.mrf.mxu0
        %v5515 = vadd.f32 %v5300, %v5514
        %5516 = vdwg.mxu0
        %5517 = vmatpush.msra.mxu0 0.0
        %5518 = vmatpush.msra.mxu0 0.0
        %5519 = vmatpush.msra.mxu0 0.0
        %5520 = vmatpush.msra.mxu0 0.0
        %5521 = vmatpush.msra.mxu0 %v5267
        %5522 = vmatpush.msra.mxu0 %v5251
        %5523 = vmatpush.msra.mxu0 %v5235
        %5524 = vmatpush.msra.mxu0 %v5219
        %5525 = vmatpush.msra.mxu0 %v5265
        %5526 = vmatpush.msra.mxu0 %v5249
        %5527 = vmatpush.msra.mxu0 %v5233
        %5528 = vmatpush.msra.mxu0 %v5217
        %5529 = vmatpush.msra.mxu0 %v5263
        %5530 = vmatpush.msra.mxu0 %v5247
        %5531 = vmatpush.msra.mxu0 %v5231
        %5532 = vmatpush.msra.mxu0 %v5215
        %5533 = vmatmul.f32.gmra.mxu0 %v5303
        %v5534 = vpop.f32.mrf.mxu0
        %v5535 = vadd.f32 %v5285, %v5534
        %5536 = vmatmul.f32.gmra.mxu0 %v5306
        %v5537 = vpop.f32.mrf.mxu0
        %v5538 = vadd.f32 %v5290, %v5537
        %5539 = vmatmul.f32.gmra.mxu0 %v5309
        %v5540 = vpop.f32.mrf.mxu0
        %v5541 = vadd.f32 %v5295, %v5540
        %5542 = vmatmul.f32.gmra.mxu0 %v5312
        %v5543 = vpop.f32.mrf.mxu0
        %v5544 = vadd.f32 %v5300, %v5543
        %5545 = vdwg.mxu0
        %5546 = vmatpush.msra.mxu0 0.0
        %5547 = vmatpush.msra.mxu0 0.0
        %5548 = vmatpush.msra.mxu0 0.0
        %5549 = vmatpush.msra.mxu0 0.0
        %5550 = vmatpush.msra.mxu0 %v5268
        %5551 = vmatpush.msra.mxu0 %v5252
        %5552 = vmatpush.msra.mxu0 %v5236
        %5553 = vmatpush.msra.mxu0 %v5220
        %5554 = vmatpush.msra.mxu0 %v5266
        %5555 = vmatpush.msra.mxu0 %v5250
        %5556 = vmatpush.msra.mxu0 %v5234
        %5557 = vmatpush.msra.mxu0 %v5218
        %5558 = vmatpush.msra.mxu0 %v5264
        %5559 = vmatpush.msra.mxu0 %v5248
        %5560 = vmatpush.msra.mxu0 %v5232
        %5561 = vmatpush.msra.mxu0 %v5216
        %5562 = vmatmul.f32.gmra.mxu0 %v5303
        %v5563 = vpop.f32.mrf.mxu0
        %v5564 = vadd.f32 %v5285, %v5563
        %5565 = vmatmul.f32.gmra.mxu0 %v5306
        %v5566 = vpop.f32.mrf.mxu0
        %v5567 = vadd.f32 %v5290, %v5566
        %5568 = vmatmul.f32.gmra.mxu0 %v5309
        %v5569 = vpop.f32.mrf.mxu0
        %v5570 = vadd.f32 %v5295, %v5569
        %5571 = vmatmul.f32.gmra.mxu0 %v5312
        %v5572 = vpop.f32.mrf.mxu0
        %v5573 = vadd.f32 %v5300, %v5572
        %5574 = vdwg.mxu0
        %5575 = vmatpush.msra.mxu0 0.0
        %5576 = vmatpush.msra.mxu0 0.0
        %5577 = vmatpush.msra.mxu0 0.0
        %5578 = vmatpush.msra.mxu0 0.0
        %5579 = vmatpush.msra.mxu0 %v5269
        %5580 = vmatpush.msra.mxu0 %v5253
        %5581 = vmatpush.msra.mxu0 %v5237
        %5582 = vmatpush.msra.mxu0 %v5221
        %5583 = vmatpush.msra.mxu0 %v5267
        %5584 = vmatpush.msra.mxu0 %v5251
        %5585 = vmatpush.msra.mxu0 %v5235
        %5586 = vmatpush.msra.mxu0 %v5219
        %5587 = vmatpush.msra.mxu0 %v5265
        %5588 = vmatpush.msra.mxu0 %v5249
        %5589 = vmatpush.msra.mxu0 %v5233
        %5590 = vmatpush.msra.mxu0 %v5217
        %5591 = vmatmul.f32.gmra.mxu0 %v5303
        %v5592 = vpop.f32.mrf.mxu0
        %v5593 = vadd.f32 %v5285, %v5592
        %5594 = vmatmul.f32.gmra.mxu0 %v5306
        %v5595 = vpop.f32.mrf.mxu0
        %v5596 = vadd.f32 %v5290, %v5595
        %5597 = vmatmul.f32.gmra.mxu0 %v5309
        %v5598 = vpop.f32.mrf.mxu0
        %v5599 = vadd.f32 %v5295, %v5598
        %5600 = vmatmul.f32.gmra.mxu0 %v5312
        %v5601 = vpop.f32.mrf.mxu0
        %v5602 = vadd.f32 %v5300, %v5601
        %5603 = vdwg.mxu0
        %5604 = vmatpush.msra.mxu0 0.0
        %5605 = vmatpush.msra.mxu0 0.0
        %5606 = vmatpush.msra.mxu0 0.0
        %5607 = vmatpush.msra.mxu0 0.0
        %5608 = vmatpush.msra.mxu0 %v5270
        %5609 = vmatpush.msra.mxu0 %v5254
        %5610 = vmatpush.msra.mxu0 %v5238
        %5611 = vmatpush.msra.mxu0 %v5222
        %5612 = vmatpush.msra.mxu0 %v5268
        %5613 = vmatpush.msra.mxu0 %v5252
        %5614 = vmatpush.msra.mxu0 %v5236
        %5615 = vmatpush.msra.mxu0 %v5220
        %5616 = vmatpush.msra.mxu0 %v5266
        %5617 = vmatpush.msra.mxu0 %v5250
        %5618 = vmatpush.msra.mxu0 %v5234
        %5619 = vmatpush.msra.mxu0 %v5218
        %5620 = vmatmul.f32.gmra.mxu0 %v5303
        %v5621 = vpop.f32.mrf.mxu0
        %v5622 = vadd.f32 %v5285, %v5621
        %5623 = vmatmul.f32.gmra.mxu0 %v5306
        %v5624 = vpop.f32.mrf.mxu0
        %v5625 = vadd.f32 %v5290, %v5624
        %5626 = vmatmul.f32.gmra.mxu0 %v5309
        %v5627 = vpop.f32.mrf.mxu0
        %v5628 = vadd.f32 %v5295, %v5627
        %5629 = vmatmul.f32.gmra.mxu0 %v5312
        %v5630 = vpop.f32.mrf.mxu0
        %v5631 = vadd.f32 %v5300, %v5630
        %5632 = vdwg.mxu0
        %5633 = vmatpush.msra.mxu0 0.0
        %5634 = vmatpush.msra.mxu0 0.0
        %5635 = vmatpush.msra.mxu0 0.0
        %5636 = vmatpush.msra.mxu0 0.0
        %5637 = vmatpush.msra.mxu0 %v5271
        %5638 = vmatpush.msra.mxu0 %v5255
        %5639 = vmatpush.msra.mxu0 %v5239
        %5640 = vmatpush.msra.mxu0 %v5223
        %5641 = vmatpush.msra.mxu0 %v5269
        %5642 = vmatpush.msra.mxu0 %v5253
        %5643 = vmatpush.msra.mxu0 %v5237
        %5644 = vmatpush.msra.mxu0 %v5221
        %5645 = vmatpush.msra.mxu0 %v5267
        %5646 = vmatpush.msra.mxu0 %v5251
        %5647 = vmatpush.msra.mxu0 %v5235
        %5648 = vmatpush.msra.mxu0 %v5219
        %5649 = vmatmul.f32.gmra.mxu0 %v5303
        %v5650 = vpop.f32.mrf.mxu0
        %v5651 = vadd.f32 %v5285, %v5650
        %5652 = vmatmul.f32.gmra.mxu0 %v5306
        %v5653 = vpop.f32.mrf.mxu0
        %v5654 = vadd.f32 %v5290, %v5653
        %5655 = vmatmul.f32.gmra.mxu0 %v5309
        %v5656 = vpop.f32.mrf.mxu0
        %v5657 = vadd.f32 %v5295, %v5656
        %5658 = vmatmul.f32.gmra.mxu0 %v5312
        %v5659 = vpop.f32.mrf.mxu0
        %v5660 = vadd.f32 %v5300, %v5659
        %5661 = vdwg.mxu0
        %5662 = vmatpush.msra.mxu0 0.0
        %5663 = vmatpush.msra.mxu0 0.0
        %5664 = vmatpush.msra.mxu0 0.0
        %5665 = vmatpush.msra.mxu0 0.0
        %5666 = vmatpush.msra.mxu0 %v5272
        %5667 = vmatpush.msra.mxu0 %v5256
        %5668 = vmatpush.msra.mxu0 %v5240
        %5669 = vmatpush.msra.mxu0 %v5224
        %5670 = vmatpush.msra.mxu0 %v5270
        %5671 = vmatpush.msra.mxu0 %v5254
        %5672 = vmatpush.msra.mxu0 %v5238
        %5673 = vmatpush.msra.mxu0 %v5222
        %5674 = vmatpush.msra.mxu0 %v5268
        %5675 = vmatpush.msra.mxu0 %v5252
        %5676 = vmatpush.msra.mxu0 %v5236
        %5677 = vmatpush.msra.mxu0 %v5220
        %5678 = vmatmul.f32.gmra.mxu0 %v5303
        %v5679 = vpop.f32.mrf.mxu0
        %v5680 = vadd.f32 %v5285, %v5679
        %5681 = vmatmul.f32.gmra.mxu0 %v5306
        %v5682 = vpop.f32.mrf.mxu0
        %v5683 = vadd.f32 %v5290, %v5682
        %5684 = vmatmul.f32.gmra.mxu0 %v5309
        %v5685 = vpop.f32.mrf.mxu0
        %v5686 = vadd.f32 %v5295, %v5685
        %5687 = vmatmul.f32.gmra.mxu0 %v5312
        %v5688 = vpop.f32.mrf.mxu0
        %v5689 = vadd.f32 %v5300, %v5688
        %5690 = vdwg.mxu0
        %5691 = vmatpush.msra.mxu0 0.0
        %5692 = vmatpush.msra.mxu0 0.0
        %5693 = vmatpush.msra.mxu0 0.0
        %5694 = vmatpush.msra.mxu0 0.0
        %5695 = vmatpush.msra.mxu0 %v5273
        %5696 = vmatpush.msra.mxu0 %v5257
        %5697 = vmatpush.msra.mxu0 %v5241
        %5698 = vmatpush.msra.mxu0 %v5225
        %5699 = vmatpush.msra.mxu0 %v5271
        %5700 = vmatpush.msra.mxu0 %v5255
        %5701 = vmatpush.msra.mxu0 %v5239
        %5702 = vmatpush.msra.mxu0 %v5223
        %5703 = vmatpush.msra.mxu0 %v5269
        %5704 = vmatpush.msra.mxu0 %v5253
        %5705 = vmatpush.msra.mxu0 %v5237
        %5706 = vmatpush.msra.mxu0 %v5221
        %5707 = vmatmul.f32.gmra.mxu0 %v5303
        %v5708 = vpop.f32.mrf.mxu0
        %v5709 = vadd.f32 %v5285, %v5708
        %5710 = vmatmul.f32.gmra.mxu0 %v5306
        %v5711 = vpop.f32.mrf.mxu0
        %v5712 = vadd.f32 %v5290, %v5711
        %5713 = vmatmul.f32.gmra.mxu0 %v5309
        %v5714 = vpop.f32.mrf.mxu0
        %v5715 = vadd.f32 %v5295, %v5714
        %5716 = vmatmul.f32.gmra.mxu0 %v5312
        %v5717 = vpop.f32.mrf.mxu0
        %v5718 = vadd.f32 %v5300, %v5717
        %5719 = vdwg.mxu0
        %5720 = vmatpush.msra.mxu0 0.0
        %5721 = vmatpush.msra.mxu0 0.0
        %5722 = vmatpush.msra.mxu0 0.0
        %5723 = vmatpush.msra.mxu0 0.0
        %5724 = vmatpush.msra.mxu0 %v5272
        %5725 = vmatpush.msra.mxu0 %v5256
        %5726 = vmatpush.msra.mxu0 %v5240
        %5727 = vmatpush.msra.mxu0 %v5224
        %5728 = vmatpush.msra.mxu0 %v5272
        %5729 = vmatpush.msra.mxu0 %v5256
        %5730 = vmatpush.msra.mxu0 %v5240
        %5731 = vmatpush.msra.mxu0 %v5224
        %5732 = vmatpush.msra.mxu0 %v5270
        %5733 = vmatpush.msra.mxu0 %v5254
        %5734 = vmatpush.msra.mxu0 %v5238
        %5735 = vmatpush.msra.mxu0 %v5222
        %5736 = vmatmul.f32.gmra.mxu0 %v5303
        %v5737 = vpop.f32.mrf.mxu0
        %v5738 = vadd.f32 %v5285, %v5737
        %5739 = vmatmul.f32.gmra.mxu0 %v5306
        %v5740 = vpop.f32.mrf.mxu0
        %v5741 = vadd.f32 %v5290, %v5740
        %5742 = vmatmul.f32.gmra.mxu0 %v5309
        %v5743 = vpop.f32.mrf.mxu0
        %v5744 = vadd.f32 %v5295, %v5743
        %5745 = vmatmul.f32.gmra.mxu0 %v5312
        %v5746 = vpop.f32.mrf.mxu0
        %v5747 = vadd.f32 %v5300, %v5746
        %5748 = vdwg.mxu0
        %5749 = vmatpush.msra.mxu0 0.0
        %5750 = vmatpush.msra.mxu0 0.0
        %5751 = vmatpush.msra.mxu0 0.0
        %5752 = vmatpush.msra.mxu0 0.0
        %5753 = vmatpush.msra.mxu0 %v5273
        %5754 = vmatpush.msra.mxu0 %v5257
        %5755 = vmatpush.msra.mxu0 %v5241
        %5756 = vmatpush.msra.mxu0 %v5225
        %5757 = vmatpush.msra.mxu0 %v5273
        %5758 = vmatpush.msra.mxu0 %v5257
        %5759 = vmatpush.msra.mxu0 %v5241
        %5760 = vmatpush.msra.mxu0 %v5225
        %5761 = vmatpush.msra.mxu0 %v5271
        %5762 = vmatpush.msra.mxu0 %v5255
        %5763 = vmatpush.msra.mxu0 %v5239
        %5764 = vmatpush.msra.mxu0 %v5223
        %5765 = vmatmul.f32.gmra.mxu0 %v5303
        %v5766 = vpop.f32.mrf.mxu0
        %v5767 = vadd.f32 %v5285, %v5766
        %5768 = vmatmul.f32.gmra.mxu0 %v5306
        %v5769 = vpop.f32.mrf.mxu0
        %v5770 = vadd.f32 %v5290, %v5769
        %5771 = vmatmul.f32.gmra.mxu0 %v5309
        %v5772 = vpop.f32.mrf.mxu0
        %v5773 = vadd.f32 %v5295, %v5772
        %5774 = vmatmul.f32.gmra.mxu0 %v5312
        %v5775 = vpop.f32.mrf.mxu0
        %v5776 = vadd.f32 %v5300, %v5775
        %5777 = vdwg.mxu0
        %v5778 = vadd.f32 %v5332, %v650
        %v5779 = vadd.f32 %v5361, %v651
        %v5780 = vadd.f32 %v5390, %v652
        %v5781 = vadd.f32 %v5419, %v653
        %v5782 = vadd.f32 %v5448, %v654
        %v5783 = vadd.f32 %v5477, %v655
        %v5784 = vadd.f32 %v5506, %v656
        %v5785 = vadd.f32 %v5535, %v657
        %v5786 = vadd.f32 %v5564, %v658
        %v5787 = vadd.f32 %v5593, %v659
        %v5788 = vadd.f32 %v5622, %v660
        %v5789 = vadd.f32 %v5651, %v661
        %v5790 = vadd.f32 %v5680, %v662
        %v5791 = vadd.f32 %v5709, %v663
        %v5792 = vadd.f32 %v5738, %v664
        %v5793 = vadd.f32 %v5767, %v665
        %v5794 = vadd.f32 %v5335, %v666
        %v5795 = vadd.f32 %v5364, %v667
        %v5796 = vadd.f32 %v5393, %v668
        %v5797 = vadd.f32 %v5422, %v669
        %v5798 = vadd.f32 %v5451, %v670
        %v5799 = vadd.f32 %v5480, %v671
        %v5800 = vadd.f32 %v5509, %v672
        %v5801 = vadd.f32 %v5538, %v673
        %v5802 = vadd.f32 %v5567, %v674
        %v5803 = vadd.f32 %v5596, %v675
        %v5804 = vadd.f32 %v5625, %v676
        %v5805 = vadd.f32 %v5654, %v677
        %v5806 = vadd.f32 %v5683, %v678
        %v5807 = vadd.f32 %v5712, %v679
        %v5808 = vadd.f32 %v5741, %v680
        %v5809 = vadd.f32 %v5770, %v681
        %v5810 = vadd.f32 %v5338, %v682
        %v5811 = vadd.f32 %v5367, %v683
        %v5812 = vadd.f32 %v5396, %v684
        %v5813 = vadd.f32 %v5425, %v685
        %v5814 = vadd.f32 %v5454, %v686
        %v5815 = vadd.f32 %v5483, %v687
        %v5816 = vadd.f32 %v5512, %v688
        %v5817 = vadd.f32 %v5541, %v689
        %v5818 = vadd.f32 %v5570, %v690
        %v5819 = vadd.f32 %v5599, %v691
        %v5820 = vadd.f32 %v5628, %v692
        %v5821 = vadd.f32 %v5657, %v693
        %v5822 = vadd.f32 %v5686, %v694
        %v5823 = vadd.f32 %v5715, %v695
        %v5824 = vadd.f32 %v5744, %v696
        %v5825 = vadd.f32 %v5773, %v697
        %v5826 = vadd.f32 %v5341, %v698
        %v5827 = vadd.f32 %v5370, %v699
        %v5828 = vadd.f32 %v5399, %v700
        %v5829 = vadd.f32 %v5428, %v701
        %v5830 = vadd.f32 %v5457, %v702
        %v5831 = vadd.f32 %v5486, %v703
        %v5832 = vadd.f32 %v5515, %v704
        %v5833 = vadd.f32 %v5544, %v705
        %v5834 = vadd.f32 %v5573, %v706
        %v5835 = vadd.f32 %v5602, %v707
        %v5836 = vadd.f32 %v5631, %v708
        %v5837 = vadd.f32 %v5660, %v709
        %v5838 = vadd.f32 %v5689, %v710
        %v5839 = vadd.f32 %v5718, %v711
        %v5840 = vadd.f32 %v5747, %v712
        %v5841 = vadd.f32 %v5776, %v713
        %5842 = vst [vmem:[%s649] sm:$0xff] %v5778
        %5843 = vst [vmem:[%s649 + $0x8] sm:$0xff] %v5779
        %5844 = vst [vmem:[%s649 + $0x10] sm:$0xff] %v5780
        %5845 = vst [vmem:[%s649 + $0x18] sm:$0xff] %v5781
        %5846 = vst [vmem:[%s649 + $0x20] sm:$0xff] %v5782
        %5847 = vst [vmem:[%s649 + $0x28] sm:$0xff] %v5783
        %5848 = vst [vmem:[%s649 + $0x30] sm:$0xff] %v5784
        %5849 = vst [vmem:[%s649 + $0x38] sm:$0xff] %v5785
        %5850 = vst [vmem:[%s649 + $0x40] sm:$0xff] %v5786
        %5851 = vst [vmem:[%s649 + $0x48] sm:$0xff] %v5787
        %5852 = vst [vmem:[%s649 + $0x50] sm:$0xff] %v5788
        %5853 = vst [vmem:[%s649 + $0x58] sm:$0xff] %v5789
        %5854 = vst [vmem:[%s649 + $0x60] sm:$0xff] %v5790
        %5855 = vst [vmem:[%s649 + $0x68] sm:$0xff] %v5791
        %5856 = vst [vmem:[%s649 + $0x70] sm:$0xff] %v5792
        %5857 = vst [vmem:[%s649 + $0x78] sm:$0xff] %v5793
        %5858 = vst [vmem:[%s649 + $0x80] sm:$0xff] %v5794
        %5859 = vst [vmem:[%s649 + $0x88] sm:$0xff] %v5795
        %5860 = vst [vmem:[%s649 + $0x90] sm:$0xff] %v5796
        %5861 = vst [vmem:[%s649 + $0x98] sm:$0xff] %v5797
        %5862 = vst [vmem:[%s649 + $0xa0] sm:$0xff] %v5798
        %5863 = vst [vmem:[%s649 + $0xa8] sm:$0xff] %v5799
        %5864 = vst [vmem:[%s649 + $0xb0] sm:$0xff] %v5800
        %5865 = vst [vmem:[%s649 + $0xb8] sm:$0xff] %v5801
        %5866 = vst [vmem:[%s649 + $0xc0] sm:$0xff] %v5802
        %5867 = vst [vmem:[%s649 + $0xc8] sm:$0xff] %v5803
        %5868 = vst [vmem:[%s649 + $0xd0] sm:$0xff] %v5804
        %5869 = vst [vmem:[%s649 + $0xd8] sm:$0xff] %v5805
        %5870 = vst [vmem:[%s649 + $0xe0] sm:$0xff] %v5806
        %5871 = vst [vmem:[%s649 + $0xe8] sm:$0xff] %v5807
        %5872 = vst [vmem:[%s649 + $0xf0] sm:$0xff] %v5808
        %5873 = vst [vmem:[%s649 + $0xf8] sm:$0xff] %v5809
        %5874 = vst [vmem:[%s649 + $0x100] sm:$0xff] %v5810
        %5875 = vst [vmem:[%s649 + $0x108] sm:$0xff] %v5811
        %5876 = vst [vmem:[%s649 + $0x110] sm:$0xff] %v5812
        %5877 = vst [vmem:[%s649 + $0x118] sm:$0xff] %v5813
        %5878 = vst [vmem:[%s649 + $0x120] sm:$0xff] %v5814
        %5879 = vst [vmem:[%s649 + $0x128] sm:$0xff] %v5815
        %5880 = vst [vmem:[%s649 + $0x130] sm:$0xff] %v5816
        %5881 = vst [vmem:[%s649 + $0x138] sm:$0xff] %v5817
        %5882 = vst [vmem:[%s649 + $0x140] sm:$0xff] %v5818
        %5883 = vst [vmem:[%s649 + $0x148] sm:$0xff] %v5819
        %5884 = vst [vmem:[%s649 + $0x150] sm:$0xff] %v5820
        %5885 = vst [vmem:[%s649 + $0x158] sm:$0xff] %v5821
        %5886 = vst [vmem:[%s649 + $0x160] sm:$0xff] %v5822
        %5887 = vst [vmem:[%s649 + $0x168] sm:$0xff] %v5823
        %5888 = vst [vmem:[%s649 + $0x170] sm:$0xff] %v5824
        %5889 = vst [vmem:[%s649 + $0x178] sm:$0xff] %v5825
        %5890 = vst [vmem:[%s649 + $0x180] sm:$0xff] %v5826
        %5891 = vst [vmem:[%s649 + $0x188] sm:$0xff] %v5827
        %5892 = vst [vmem:[%s649 + $0x190] sm:$0xff] %v5828
        %5893 = vst [vmem:[%s649 + $0x198] sm:$0xff] %v5829
        %5894 = vst [vmem:[%s649 + $0x1a0] sm:$0xff] %v5830
        %5895 = vst [vmem:[%s649 + $0x1a8] sm:$0xff] %v5831
        %5896 = vst [vmem:[%s649 + $0x1b0] sm:$0xff] %v5832
        %5897 = vst [vmem:[%s649 + $0x1b8] sm:$0xff] %v5833
        %5898 = vst [vmem:[%s649 + $0x1c0] sm:$0xff] %v5834
        %5899 = vst [vmem:[%s649 + $0x1c8] sm:$0xff] %v5835
        %5900 = vst [vmem:[%s649 + $0x1d0] sm:$0xff] %v5836
        %5901 = vst [vmem:[%s649 + $0x1d8] sm:$0xff] %v5837
        %5902 = vst [vmem:[%s649 + $0x1e0] sm:$0xff] %v5838
        %5903 = vst [vmem:[%s649 + $0x1e8] sm:$0xff] %v5839
        %5904 = vst [vmem:[%s649 + $0x1f0] sm:$0xff] %v5840
        %5905 = vst [vmem:[%s649 + $0x1f8] sm:$0xff] %v5841
        %s5906 = sand.u32 %s470, 1
        %s5907 = scalar_lea.sflag [#allocation4], %s5906
        %s5908 = sand.u32 %s470, 1
        %s5909 = smul.addr %s5908, 512
        %s5910 = scalar_lea.vmem [#allocation5], %s5909
        // Predicated region
        $region105: #{tpu_custom_call.1} parent=99 // pred_check
          %p5911 = pneg %p480
        $region106: #{tpu_custom_call.1} parent=99 // pred_check_branch
          %5913 = sbr.rel (%p5911) target = $region108
        $region107: #{tpu_custom_call.1} parent=99 // pred_region
          %5915 = vsyncadd %s5907, 0
          %s5916 = smul.addr %s37, 64
          %s5917 = smul.addr %s5916, 8
          %s5918 = scalar_lea.hbm %s20, %s5917
          %s5919 = sshll.u32 %s5910, 4
          %s5920 = int_to_ptr.vmem [resolvable:$true] %s5919
          %s5921 = sshll.u32 %s5918, 4
          %s5922 = int_to_ptr.hbm [resolvable:$true] %s5921
          %5927 = dma.vmem_to_hbm [thread:$0]  %s5920, 8192, %s5922, %s5907, 2048, 2048, 128
        $region108: #{tpu_custom_call.1} parent=99 // pred_fallthru
          _
      $region100: #{tpu_custom_call.1} parent=5 // pred_fallthru
        _
      %p5928 = scmp.le.s32.totalorder 2, %s32
      // Predicated region
      $region109: #{tpu_custom_call.1} parent=5 // pred_check
        %p5929 = pneg %p5928
      $region110: #{tpu_custom_call.1} parent=5 // pred_check_branch
        %5931 = sbr.rel (%p5929) target = $region112
      $region111: #{tpu_custom_call.1} parent=5 // pred_region
        %s5932 = ssub.s32 %s32, 2
        // Predicated region
        $region113: #{tpu_custom_call.1} parent=111 // pred_check
          %p5933 = pneg %p486
        $region114: #{tpu_custom_call.1} parent=111 // pred_check_branch
          %5935 = sbr.rel (%p5933) target = $region116
        $region115: #{tpu_custom_call.1} parent=111 // pred_region
          %s5936 = sand.u32 %s471, 1
          %s5937 = scalar_lea.sflag [#allocation4], %s5936
          %s5938 = sand.u32 %s471, 1
          %s5939 = smul.addr %s5938, 512
          %s5940 = scalar_lea.vmem [#allocation5], %s5939
          %5942 = dma.done %s5937, 8192
        $region116: #{tpu_custom_call.1} parent=111 // pred_fallthru
          _
      $region112: #{tpu_custom_call.1} parent=5 // pred_fallthru
        _
    $region6: #{tpu_custom_call.1} parent=1 // loop_footer
      %s36 = sadd.s32 1, %s32
    $region7: #{tpu_custom_call.1} parent=1 // loop_footer_branch
      %31 = sbr.rel target = $region3
    $region8: #{tpu_custom_call.1} parent=1 // loop_exit
      _
    %5943 = vsyncpa [#allocation3], 1
    %s5944 = scalar_lea.sflag [#allocation3], 1
    %5945 = vsyncpa %s5944, 1
    %5946 = vsyncpa [#allocation4], 1
    %s5947 = scalar_lea.sflag [#allocation4], 1
    %5948 = vsyncpa %s5947, 1

</llo_original>
